<compile_context>
chip_gen: v6e
topology: v6e:2x2x1
jax: 0.10.0
libtpu: 0.0.40
codegen_flags: <defaults>
</compile_context>

<pallas_src>
import functools
import math

import jax
import jax.numpy as jnp
from jax.experimental import pallas as pl
from jax.experimental.pallas import tpu as pltpu

SEQUENCE_LENGTH = 7
LN_EPS = 1e-5
OUT_PAD = 128  # lane-dense output slab width


# ------------------------------ kernel helpers ------------------------------ #

def _layernorm(x, w, b):
    mu = jnp.mean(x, axis=-1, keepdims=True)
    var = jnp.mean((x - mu) ** 2, axis=-1, keepdims=True)
    return (x - mu) * jax.lax.rsqrt(var + LN_EPS) * w + b


# --------------------------------- kernel ----------------------------------- #

def fused_transformer_kernel(nhead, num_layers, b_blk, S, H,
                             x_ref,         # (1, M, Din)        bf16
                             emb_w_ref,     # (Din, H)           bf16
                             pe_ref,        # (M, H)             f32  (pos_enc + emb bias)
                             wqkv_ref,      # (L, 3*nhead, H, hd) bf16  (scale folded in q)
                             bqkv_ref,      # (L, 3*nhead, 1, hd) f32
                             wout_ref,      # (L, nhead, hd, H)  bf16
                             lin1_w_ref,    # (L, H, 4H)         bf16
                             lin2_w_ref,    # (L, 4H, H)         bf16
                             bias_ref,      # (L, 8, LANE_W)     f32  (lane-aligned rows)
                             mask_ref,      # (M, M)             f32  (only used if b_blk > 1)
                             pool_mat_ref,  # (b_blk, M)         bf16 (0/1 entries)
                             pool_w_ref,    # (H, OUT_PAD)       bf16
                             pool_b_ref,    # (1, OUT_PAD)       f32
                             o_ref):        # (1, b_blk, OUT_PAD) f32
    M = b_blk * S
    F = 4 * H
    nh3 = 3 * nhead

    # ---------------- embedding: x @ W_emb^T + (pos_enc + b_emb) ----------------
    h = jnp.dot(x_ref[0], emb_w_ref[...],
                preferred_element_type=jnp.float32) + pe_ref[...]

    # NOTE: static unroll is fine for a handful of layers; switch to lax.fori_loop
    # over the stacked (L, ...) refs if num_layers grows (bounds vreg live ranges).
    for l in range(num_layers):
        bias = bias_ref[l]                       # (8, LANE_W); each row starts at lane 0
        out_b  = bias[0:1, 0:H]
        ln1_w  = bias[1:2, 0:H]
        ln1_b  = bias[2:3, 0:H]
        lin1_b = bias[3:4, 0:F]
        lin2_b = bias[4:5, 0:H]
        ln2_w  = bias[5:6, 0:H]
        ln2_b  = bias[6:7, 0:H]

        hb = h.astype(jnp.bfloat16)

        # -------- self-attention, heads batched on a leading axis (no lane relayouts)
        h_bc = jnp.broadcast_to(hb[None], (nh3, M, H))
        qkv = jnp.einsum('hmk,hkd->hmd', h_bc, wqkv_ref[l],
                         preferred_element_type=jnp.float32) + bqkv_ref[l]
        q = qkv[0:nhead]                         # 1/sqrt(hd) already folded on host
        k = qkv[nhead:2 * nhead]
        v = qkv[2 * nhead:3 * nhead]

        s = jnp.einsum('hqd,hkd->hqk', q.astype(jnp.bfloat16), k.astype(jnp.bfloat16),
                       preferred_element_type=jnp.float32)
        if b_blk > 1:                            # cross-batch mask, precomputed on host
            s = s + mask_ref[...][None]
        s = s - jnp.max(s, axis=-1, keepdims=True)
        p = jnp.exp(s)
        p = p * pl.reciprocal(jnp.sum(p, axis=-1, keepdims=True), approx=True)

        pv = jnp.einsum('hqk,hkd->hqd', p.astype(jnp.bfloat16), v.astype(jnp.bfloat16),
                        preferred_element_type=jnp.float32)
        attn = jnp.einsum('hmd,hdk->hmk', pv.astype(jnp.bfloat16), wout_ref[l],
                          preferred_element_type=jnp.float32)
        attn = jnp.sum(attn, axis=0) + out_b     # sum over heads (leading-dim adds)

        h1 = _layernorm(h + attn, ln1_w, ln1_b)

        # ---------------- feed-forward (H -> 4H -> H, ReLU) -------------------------
        ff = jnp.dot(h1.astype(jnp.bfloat16), lin1_w_ref[l],
                     preferred_element_type=jnp.float32) + lin1_b
        ff = jnp.maximum(ff, 0.0)
        ff = jnp.dot(ff.astype(jnp.bfloat16), lin2_w_ref[l],
                     preferred_element_type=jnp.float32) + lin2_b

        h = _layernorm(h1 + ff, ln2_w, ln2_b)

    # -------- mean pool over seq (0/1 bf16 matmul, exact 1/S in f32) + output proj ---
    pooled = jnp.dot(pool_mat_ref[...], h.astype(jnp.bfloat16),
                     preferred_element_type=jnp.float32) * (1.0 / S)
    o_ref[0] = jnp.dot(pooled.astype(jnp.bfloat16), pool_w_ref[...],
                       preferred_element_type=jnp.float32) + pool_b_ref[...]


# ------------------------------ host-side packing ---------------------------- #

def pack_params(params, nhead, b_blk):
    """Pre-split per-head weights, fold q scale + emb bias, pack lane-aligned biases,
    and precompute the cross-batch mask / mean-pool matrix for one batch block."""
    H, Din = params['emb_w'].shape
    S = SEQUENCE_LENGTH
    O = params['out_w'].shape[0]
    hd = H // nhead
    F = 4 * H
    LW = ((max(F, 128) + 127) // 128) * 128
    M_blk = b_blk * S
    scale = 1.0 / math.sqrt(hd)

    emb_wT = params['emb_w'].T.astype(jnp.bfloat16)                              # (Din, H)
    pe_row = (params['pos_enc'] + params['emb_b']).reshape(S, H).astype(jnp.float32)
    pe = jnp.tile(pe_row, (b_blk, 1))                                            # (M_blk, H)

    qscale = jnp.concatenate([jnp.full((nhead, 1, 1), scale, jnp.float32),
                              jnp.ones((2 * nhead, 1, 1), jnp.float32)], axis=0)

    wqkv_l, bqkv_l, wout_l, lin1_l, lin2_l, bias_l = [], [], [], [], [], []
    for lp in params['layers']:
        Wi = lp['in_w']                                                          # (3H, H)
        Wt = jnp.transpose(Wi.reshape(3, nhead, hd, H), (0, 1, 3, 2))
        Wt = Wt.reshape(3 * nhead, H, hd) * qscale                               # scale -> q
        br = lp['in_b'].reshape(3 * nhead, 1, hd).astype(jnp.float32) * qscale
        wqkv_l.append(Wt.astype(jnp.bfloat16))
        bqkv_l.append(br)

        wout_l.append(lp['out_w'].T.reshape(nhead, hd, H).astype(jnp.bfloat16))  # (nh,hd,H)
        lin1_l.append(lp['lin1_w'].T.astype(jnp.bfloat16))                       # (H, 4H)
        lin2_l.append(lp['lin2_w'].T.astype(jnp.bfloat16))                       # (4H, H)

        def row(v, n):
            return jnp.zeros((LW,), jnp.float32).at[:n].set(
                v.reshape(-1).astype(jnp.float32))
        bias_l.append(jnp.stack([
            row(lp['out_b'], H), row(lp['ln1_w'], H), row(lp['ln1_b'], H),
            row(lp['lin1_b'], F), row(lp['lin2_b'], H),
            row(lp['ln2_w'], H), row(lp['ln2_b'], H),
            jnp.zeros((LW,), jnp.float32)]))

    # cross-batch additive mask + 0/1 mean-pool matrix (no int div/mod in the kernel)
    idx = jnp.arange(M_blk) // S
    neg_mask = jnp.where(idx[:, None] == idx[None, :], 0.0, -1e30).astype(jnp.float32)
    pool_mat = (idx[None, :] == jnp.arange(b_blk)[:, None]).astype(jnp.bfloat16)

    pool_wT = jnp.zeros((H, OUT_PAD), jnp.float32).at[:, :O].set(
        params['out_w'].T).astype(jnp.bfloat16)
    pool_b = jnp.zeros((1, OUT_PAD), jnp.float32).at[:, :O].set(
        params['out_b'].reshape(-1))

    return dict(emb_wT=emb_wT, pe=pe,
                wqkv=jnp.stack(wqkv_l), bqkv=jnp.stack(bqkv_l), wout=jnp.stack(wout_l),
                lin1_wT=jnp.stack(lin1_l), lin2_wT=jnp.stack(lin2_l),
                bias_pack=jnp.stack(bias_l), neg_mask=neg_mask, pool_mat=pool_mat,
                pool_wT=pool_wT, pool_b=pool_b)


# ------------------------------- host wrapper --------------------------------- #

def transformer_feature_extractor(x, packed, *, nhead, hidden_dim, num_layers,
                                  output_dim, b_blk=1):
    """b_blk: batch elements per grid program. For large inference batches raise it so
    M_blk = b_blk*S is ~128 (v5e) / ~256 (v6e/v7x) rows, while keeping the per-block
    (nhead, M_blk, M_blk) scores within v7x's 64 MiB VMEM."""
    B, S, Din = x.shape
    assert B % b_blk == 0
    Bg = B // b_blk
    M_blk = b_blk * S

    x_in = x.astype(jnp.bfloat16).reshape(Bg, M_blk, Din)

    def resident(arr):                     # full-array block, constant index -> stays in VMEM
        nd = arr.ndim
        return pl.BlockSpec(arr.shape, lambda g, nd=nd: (0,) * nd)

    weights = (packed['emb_wT'], packed['pe'], packed['wqkv'], packed['bqkv'],
               packed['wout'], packed['lin1_wT'], packed['lin2_wT'],
               packed['bias_pack'], packed['neg_mask'], packed['pool_mat'],
               packed['pool_wT'], packed['pool_b'])

    out = pl.pallas_call(
        functools.partial(fused_transformer_kernel, nhead, num_layers, b_blk, S,
                          hidden_dim),
        out_shape=jax.ShapeDtypeStruct((Bg, b_blk, OUT_PAD), jnp.float32),
        grid=(Bg,),
        in_specs=[pl.BlockSpec((1, M_blk, Din), lambda g: (g, 0, 0))]
                 + [resident(w) for w in weights],
        out_specs=pl.BlockSpec((1, b_blk, OUT_PAD), lambda g: (g, 0, 0)),
        compiler_params=pltpu.CompilerParams(dimension_semantics=("parallel",)),
    )(x_in, *weights)

    return out.reshape(B, OUT_PAD)[:, :output_dim]


# ------------------------------- param init ---------------------------------- #

def init_params(key, input_dim, nhead, hidden_dim, num_layers, output_dim):
    H, F = hidden_dim, hidden_dim * 4

    def nrm(k, shape, scale=0.02):
        return (scale * jax.random.normal(k, shape)).astype(jnp.float32)

    keys = jax.random.split(key, 2 + 6 * num_layers)
    ki = iter(keys)

    params = {
        'emb_w': nrm(next(ki), (H, input_dim)),
        'emb_b': jnp.zeros((1, 1, H), jnp.float32),
        'pos_enc': jnp.zeros((1, SEQUENCE_LENGTH, H), jnp.float32),
        'out_w': nrm(next(ki), (output_dim, H)),
        'out_b': jnp.zeros((1, output_dim), jnp.float32),
        'layers': [],
    }
    for _ in range(num_layers):
        params['layers'].append({
            'in_w':   nrm(next(ki), (3 * H, H)),
            'in_b':   jnp.zeros((1, 1, 3 * H), jnp.float32),
            'out_w':  nrm(next(ki), (H, H)),
            'out_b':  jnp.zeros((1, 1, H), jnp.float32),
            'ln1_w':  jnp.ones((1, 1, H), jnp.float32),
            'ln1_b':  jnp.zeros((1, 1, H), jnp.float32),
            'lin1_w': nrm(next(ki), (F, H)),
            'lin1_b': nrm(next(ki), (1, 1, F)),
            'lin2_w': nrm(next(ki), (H, F)),
            'lin2_b': nrm(next(ki), (1, 1, H)),
            'ln2_w':  jnp.ones((1, 1, H), jnp.float32),
            'ln2_b':  jnp.zeros((1, 1, H), jnp.float32),
        })
    return params


# ------------------------- pure-JAX f32 reference ----------------------------- #

def _ln_ref(x, w, b):
    mu = jnp.mean(x, axis=-1, keepdims=True)
    var = jnp.mean((x - mu) ** 2, axis=-1, keepdims=True)
    return (x - mu) / jnp.sqrt(var + LN_EPS) * w + b


def reference_forward(x, params, nhead):
    H = params['emb_w'].shape[0]
    hd = H // nhead
    B, S, _ = x.shape
    h = jnp.einsum('bsi,hi->bsh', x, params['emb_w']) + params['emb_b'] + params['pos_enc']
    for lp in params['layers']:
        qkv = jnp.einsum('bsh,oh->bso', h, lp['in_w']) + lp['in_b'].reshape(1, 1, -1)
        q, k, v = qkv[..., :H], qkv[..., H:2 * H], qkv[..., 2 * H:]
        heads = lambda t: t.reshape(B, S, nhead, hd).transpose(0, 2, 1, 3)
        q, k, v = heads(q) / math.sqrt(hd), heads(k), heads(v)
        p = jax.nn.softmax(jnp.einsum('bhqd,bhkd->bhqk', q, k), axis=-1)
        a = jnp.einsum('bhqk,bhkd->bhqd', p, v).transpose(0, 2, 1, 3).reshape(B, S, H)
        a = jnp.einsum('bsh,oh->bso', a, lp['out_w']) + lp['out_b'].reshape(1, 1, -1)
        h = _ln_ref(h + a, lp['ln1_w'].reshape(-1), lp['ln1_b'].reshape(-1))
        ff = jnp.maximum(jnp.einsum('bsh,fh->bsf', h, lp['lin1_w'])
                         + lp['lin1_b'].reshape(1, 1, -1), 0.0)
        ff = jnp.einsum('bsf,hf->bsh', ff, lp['lin2_w']) + lp['lin2_b'].reshape(1, 1, -1)
        h = _ln_ref(h + ff, lp['ln2_w'].reshape(-1), lp['ln2_b'].reshape(-1))
    pooled = jnp.mean(h, axis=1)
    return pooled @ params['out_w'].T + params['out_b'].reshape(1, -1)


# ----------------------------------- main ------------------------------------ #

if __name__ == "__main__":
    B = 2
    INPUT_DIM = 16
    NHEAD = 4
    HIDDEN_DIM = 32
    NUM_LAYERS = 2
    OUTPUT_DIM = 8
    B_BLK = 1   # grid=(2,): both v7x TensorCores; raise for larger inference batches

    key = jax.random.PRNGKey(0)
    k_x, k_p = jax.random.split(key)

    x = jax.random.normal(k_x, (B, SEQUENCE_LENGTH, INPUT_DIM), dtype=jnp.float32)
    params = init_params(k_p, INPUT_DIM, NHEAD, HIDDEN_DIM, NUM_LAYERS, OUTPUT_DIM)
    packed = pack_params(params, NHEAD, B_BLK)

    out = transformer_feature_extractor(
        x, packed, nhead=NHEAD, hidden_dim=HIDDEN_DIM,
        num_layers=NUM_LAYERS, output_dim=OUTPUT_DIM, b_blk=B_BLK)
    out = jax.block_until_ready(out)

    ref = reference_forward(x, params, NHEAD)
    err = float(jnp.max(jnp.abs(out - ref)))

    assert out.shape == (B, OUTPUT_DIM), out.shape
    assert bool(jnp.all(jnp.isfinite(out)))
    # bf16 matmuls + approx softmax reciprocal vs. exact f32 reference: loose tolerance
    assert err < 5e-2, f"max abs err vs f32 reference: {err}"
    print("KERNEL_OK")
</pallas_src>

<mosaic_0001>
module attributes {stable_mosaic.version = 11 : i64} {
  func.func @fused_transformer_kernel(%arg0: i32, %arg1: memref<1x7x16xbf16, #tpu.memory_space<vmem>>, %arg2: memref<16x32xbf16, #tpu.memory_space<vmem>>, %arg3: memref<7x32xf32, #tpu.memory_space<vmem>>, %arg4: memref<2x12x32x8xbf16, #tpu.memory_space<vmem>>, %arg5: memref<2x12x1x8xf32, #tpu.memory_space<vmem>>, %arg6: memref<2x4x8x32xbf16, #tpu.memory_space<vmem>>, %arg7: memref<2x32x128xbf16, #tpu.memory_space<vmem>>, %arg8: memref<2x128x32xbf16, #tpu.memory_space<vmem>>, %arg9: memref<2x8x128xf32, #tpu.memory_space<vmem>>, %arg10: memref<7x7xf32, #tpu.memory_space<vmem>>, %arg11: memref<1x7xbf16, #tpu.memory_space<vmem>>, %arg12: memref<32x128xbf16, #tpu.memory_space<vmem>>, %arg13: memref<1x128xf32, #tpu.memory_space<vmem>>, %arg14: memref<1x1x128xf32, #tpu.memory_space<vmem>>) attributes {dimension_semantics = [#tpu.dimension_semantics<parallel>], iteration_bounds = array<i64: 2>, scalar_prefetch = 0 : i64, scratch_operands = 0 : i64, tpu.core_type = #tpu.core_type<tc>, window_params = [{transform_indices = @transform_0, window_bounds = array<i64: 1, 7, 16>}, {pipeline_mode = #tpu.pipeline_mode<synchronous>, transform_indices = @transform_1, window_bounds = array<i64: 16, 32>}, {pipeline_mode = #tpu.pipeline_mode<synchronous>, transform_indices = @transform_2, window_bounds = array<i64: 7, 32>}, {pipeline_mode = #tpu.pipeline_mode<synchronous>, transform_indices = @transform_3, window_bounds = array<i64: 2, 12, 32, 8>}, {pipeline_mode = #tpu.pipeline_mode<synchronous>, transform_indices = @transform_4, window_bounds = array<i64: 2, 12, 1, 8>}, {pipeline_mode = #tpu.pipeline_mode<synchronous>, transform_indices = @transform_5, window_bounds = array<i64: 2, 4, 8, 32>}, {pipeline_mode = #tpu.pipeline_mode<synchronous>, transform_indices = @transform_6, window_bounds = array<i64: 2, 32, 128>}, {pipeline_mode = #tpu.pipeline_mode<synchronous>, transform_indices = @transform_7, window_bounds = array<i64: 2, 128, 32>}, {pipeline_mode = #tpu.pipeline_mode<synchronous>, transform_indices = @transform_8, window_bounds = array<i64: 2, 8, 128>}, {pipeline_mode = #tpu.pipeline_mode<synchronous>, transform_indices = @transform_9, window_bounds = array<i64: 7, 7>}, {pipeline_mode = #tpu.pipeline_mode<synchronous>, transform_indices = @transform_10, window_bounds = array<i64: 1, 7>}, {pipeline_mode = #tpu.pipeline_mode<synchronous>, transform_indices = @transform_11, window_bounds = array<i64: 32, 128>}, {pipeline_mode = #tpu.pipeline_mode<synchronous>, transform_indices = @transform_12, window_bounds = array<i64: 1, 128>}, {transform_indices = @transform_13, window_bounds = array<i64: 1, 1, 128>}]} {
    %c0 = arith.constant 0 : index
    %c0_0 = arith.constant 0 : index
    %c0_1 = arith.constant 0 : index
    %0 = vector.load %arg1[%c0, %c0_0, %c0_1] : memref<1x7x16xbf16, #tpu.memory_space<vmem>>, vector<1x7x16xbf16>
    %1 = vector.shape_cast %0 : vector<1x7x16xbf16> to vector<7x16xbf16>
    %c0_2 = arith.constant 0 : index
    %c0_3 = arith.constant 0 : index
    %2 = vector.load %arg2[%c0_2, %c0_3] : memref<16x32xbf16, #tpu.memory_space<vmem>>, vector<16x32xbf16>
    %cst = arith.constant dense<0.000000e+00> : vector<7x32xf32>
    %3 = tpu.matmul %1, %2, %cst {dimension_numbers = #tpu.dot_dimension_numbers<[1], [0], [0], [1], [0, 0, 1, 1], [], []>} : vector<7x16xbf16>, vector<16x32xbf16>, vector<7x32xf32> -> vector<7x32xf32>
    %c0_4 = arith.constant 0 : index
    %c0_5 = arith.constant 0 : index
    %4 = vector.load %arg3[%c0_4, %c0_5] : memref<7x32xf32, #tpu.memory_space<vmem>>, vector<7x32xf32>
    %5 = arith.addf %3, %4 : vector<7x32xf32>
    %c0_6 = arith.constant 0 : index
    %c0_7 = arith.constant 0 : index
    %c0_8 = arith.constant 0 : index
    %6 = vector.load %arg9[%c0_6, %c0_7, %c0_8] : memref<2x8x128xf32, #tpu.memory_space<vmem>>, vector<1x8x128xf32>
    %7 = vector.shape_cast %6 : vector<1x8x128xf32> to vector<8x128xf32>
    %8 = vector.extract_strided_slice %7 {offsets = [0, 0], sizes = [1, 32], strides = [1, 1]} : vector<8x128xf32> to vector<1x32xf32>
    %9 = vector.extract_strided_slice %7 {offsets = [1, 0], sizes = [1, 32], strides = [1, 1]} : vector<8x128xf32> to vector<1x32xf32>
    %10 = vector.extract_strided_slice %7 {offsets = [2, 0], sizes = [1, 32], strides = [1, 1]} : vector<8x128xf32> to vector<1x32xf32>
    %11 = vector.extract_strided_slice %7 {offsets = [3, 0], sizes = [1, 128], strides = [1, 1]} : vector<8x128xf32> to vector<1x128xf32>
    %12 = vector.extract_strided_slice %7 {offsets = [4, 0], sizes = [1, 32], strides = [1, 1]} : vector<8x128xf32> to vector<1x32xf32>
    %13 = vector.extract_strided_slice %7 {offsets = [5, 0], sizes = [1, 32], strides = [1, 1]} : vector<8x128xf32> to vector<1x32xf32>
    %14 = vector.extract_strided_slice %7 {offsets = [6, 0], sizes = [1, 32], strides = [1, 1]} : vector<8x128xf32> to vector<1x32xf32>
    %15 = arith.truncf %5 : vector<7x32xf32> to vector<7x32xbf16>
    %16 = vector.shape_cast %15 : vector<7x32xbf16> to vector<1x7x32xbf16>
    %17 = vector.shape_cast %16 : vector<1x7x32xbf16> to vector<1x7x32xbf16>
    %18 = vector.broadcast %17 : vector<1x7x32xbf16> to vector<12x7x32xbf16>
    %c0_9 = arith.constant 0 : index
    %c0_10 = arith.constant 0 : index
    %c0_11 = arith.constant 0 : index
    %c0_12 = arith.constant 0 : index
    %19 = vector.load %arg4[%c0_9, %c0_10, %c0_11, %c0_12] : memref<2x12x32x8xbf16, #tpu.memory_space<vmem>>, vector<1x12x32x8xbf16>
    %20 = vector.shape_cast %19 : vector<1x12x32x8xbf16> to vector<12x32x8xbf16>
    "tpu.trace_start"() <{level = 10 : i32, message = "hmk,hkd->hmd"}> : () -> ()
    %cst_13 = arith.constant dense<0.000000e+00> : vector<12x7x8xf32>
    %21 = tpu.matmul %18, %20, %cst_13 {dimension_numbers = #tpu.dot_dimension_numbers<[2], [1], [1], [2], [0, 0, 0, 1, 1, 2], [0], [0]>} : vector<12x7x32xbf16>, vector<12x32x8xbf16>, vector<12x7x8xf32> -> vector<12x7x8xf32>
    "tpu.trace_stop"() : () -> ()
    %c0_14 = arith.constant 0 : index
    %c0_15 = arith.constant 0 : index
    %c0_16 = arith.constant 0 : index
    %c0_17 = arith.constant 0 : index
    %22 = vector.load %arg5[%c0_14, %c0_15, %c0_16, %c0_17] : memref<2x12x1x8xf32, #tpu.memory_space<vmem>>, vector<1x12x1x8xf32>
    %23 = vector.shape_cast %22 : vector<1x12x1x8xf32> to vector<12x1x8xf32>
    %24 = vector.broadcast %23 : vector<12x1x8xf32> to vector<12x7x8xf32>
    %25 = arith.addf %21, %24 : vector<12x7x8xf32>
    %26 = vector.extract_strided_slice %25 {offsets = [0, 0, 0], sizes = [4, 7, 8], strides = [1, 1, 1]} : vector<12x7x8xf32> to vector<4x7x8xf32>
    %27 = vector.extract_strided_slice %25 {offsets = [4, 0, 0], sizes = [4, 7, 8], strides = [1, 1, 1]} : vector<12x7x8xf32> to vector<4x7x8xf32>
    %28 = vector.extract_strided_slice %25 {offsets = [8, 0, 0], sizes = [4, 7, 8], strides = [1, 1, 1]} : vector<12x7x8xf32> to vector<4x7x8xf32>
    %29 = arith.truncf %26 : vector<4x7x8xf32> to vector<4x7x8xbf16>
    %30 = arith.truncf %27 : vector<4x7x8xf32> to vector<4x7x8xbf16>
    "tpu.trace_start"() <{level = 10 : i32, message = "hqd,hkd->hqk"}> : () -> ()
    %cst_18 = arith.constant dense<0.000000e+00> : vector<4x7x7xf32>
    %31 = tpu.matmul %29, %30, %cst_18 {dimension_numbers = #tpu.dot_dimension_numbers<[2], [2], [1], [1], [0, 0, 0, 1, 1, 1], [0], [0]>} : vector<4x7x8xbf16>, vector<4x7x8xbf16>, vector<4x7x7xf32> -> vector<4x7x7xf32>
    "tpu.trace_stop"() : () -> ()
    %cst_19 = arith.constant dense<0xFF800000> : vector<4x7xf32>
    %32 = vector.multi_reduction <maximumf>, %31, %cst_19 [2] : vector<4x7x7xf32> to vector<4x7xf32>
    %33 = vector.shape_cast %32 : vector<4x7xf32> to vector<4x7x1xf32>
    %34 = vector.broadcast %33 : vector<4x7x1xf32> to vector<4x7x7xf32>
    %35 = arith.subf %31, %34 : vector<4x7x7xf32>
    %36 = math.exp %35 : vector<4x7x7xf32>
    %cst_20 = arith.constant dense<0.000000e+00> : vector<4x7xf32>
    %37 = vector.multi_reduction <add>, %36, %cst_20 [2] : vector<4x7x7xf32> to vector<4x7xf32>
    %38 = vector.shape_cast %37 : vector<4x7xf32> to vector<4x7x1xf32>
    %39 = tpu.reciprocal %38 {approx = true} : vector<4x7x1xf32> -> vector<4x7x1xf32>
    %40 = vector.broadcast %39 : vector<4x7x1xf32> to vector<4x7x7xf32>
    %41 = arith.mulf %36, %40 : vector<4x7x7xf32>
    %42 = arith.truncf %41 : vector<4x7x7xf32> to vector<4x7x7xbf16>
    %43 = arith.truncf %28 : vector<4x7x8xf32> to vector<4x7x8xbf16>
    "tpu.trace_start"() <{level = 10 : i32, message = "hqk,hkd->hqd"}> : () -> ()
    %cst_21 = arith.constant dense<0.000000e+00> : vector<4x7x8xf32>
    %44 = tpu.matmul %42, %43, %cst_21 {dimension_numbers = #tpu.dot_dimension_numbers<[2], [1], [1], [2], [0, 0, 0, 1, 1, 2], [0], [0]>} : vector<4x7x7xbf16>, vector<4x7x8xbf16>, vector<4x7x8xf32> -> vector<4x7x8xf32>
    "tpu.trace_stop"() : () -> ()
    %45 = arith.truncf %44 : vector<4x7x8xf32> to vector<4x7x8xbf16>
    %c0_22 = arith.constant 0 : index
    %c0_23 = arith.constant 0 : index
    %c0_24 = arith.constant 0 : index
    %c0_25 = arith.constant 0 : index
    %46 = vector.load %arg6[%c0_22, %c0_23, %c0_24, %c0_25] : memref<2x4x8x32xbf16, #tpu.memory_space<vmem>>, vector<1x4x8x32xbf16>
    %47 = vector.shape_cast %46 : vector<1x4x8x32xbf16> to vector<4x8x32xbf16>
    "tpu.trace_start"() <{level = 10 : i32, message = "hmd,hdk->hmk"}> : () -> ()
    %cst_26 = arith.constant dense<0.000000e+00> : vector<4x7x32xf32>
    %48 = tpu.matmul %45, %47, %cst_26 {dimension_numbers = #tpu.dot_dimension_numbers<[2], [1], [1], [2], [0, 0, 0, 1, 1, 2], [0], [0]>} : vector<4x7x8xbf16>, vector<4x8x32xbf16>, vector<4x7x32xf32> -> vector<4x7x32xf32>
    "tpu.trace_stop"() : () -> ()
    %cst_27 = arith.constant dense<0.000000e+00> : vector<7x32xf32>
    %49 = vector.multi_reduction <add>, %48, %cst_27 [0] : vector<4x7x32xf32> to vector<7x32xf32>
    %50 = vector.broadcast %8 : vector<1x32xf32> to vector<7x32xf32>
    %51 = arith.addf %49, %50 : vector<7x32xf32>
    %52 = arith.addf %5, %51 : vector<7x32xf32>
    %cst_28 = arith.constant dense<0.000000e+00> : vector<7xf32>
    %53 = vector.multi_reduction <add>, %52, %cst_28 [1] : vector<7x32xf32> to vector<7xf32>
    %54 = vector.shape_cast %53 : vector<7xf32> to vector<7x1xf32>
    %cst_29 = arith.constant 3.200000e+01 : f32
    %55 = vector.broadcast %cst_29 : f32 to vector<7x1xf32>
    %56 = arith.divf %54, %55 : vector<7x1xf32>
    %57 = vector.broadcast %56 : vector<7x1xf32> to vector<7x32xf32>
    %58 = arith.subf %52, %57 : vector<7x32xf32>
    %59 = arith.mulf %58, %58 : vector<7x32xf32>
    %cst_30 = arith.constant dense<0.000000e+00> : vector<7xf32>
    %60 = vector.multi_reduction <add>, %59, %cst_30 [1] : vector<7x32xf32> to vector<7xf32>
    %61 = vector.shape_cast %60 : vector<7xf32> to vector<7x1xf32>
    %cst_31 = arith.constant 3.200000e+01 : f32
    %62 = vector.broadcast %cst_31 : f32 to vector<7x1xf32>
    %63 = arith.divf %61, %62 : vector<7x1xf32>
    %64 = vector.broadcast %56 : vector<7x1xf32> to vector<7x32xf32>
    %65 = arith.subf %52, %64 : vector<7x32xf32>
    %cst_32 = arith.constant 9.99999974E-6 : f32
    %66 = vector.broadcast %cst_32 : f32 to vector<7x1xf32>
    %67 = arith.addf %63, %66 : vector<7x1xf32>
    %68 = math.rsqrt %67 : vector<7x1xf32>
    %69 = vector.broadcast %68 : vector<7x1xf32> to vector<7x32xf32>
    %70 = arith.mulf %65, %69 : vector<7x32xf32>
    %71 = vector.broadcast %9 : vector<1x32xf32> to vector<7x32xf32>
    %72 = arith.mulf %70, %71 : vector<7x32xf32>
    %73 = vector.broadcast %10 : vector<1x32xf32> to vector<7x32xf32>
    %74 = arith.addf %72, %73 : vector<7x32xf32>
    %75 = arith.truncf %74 : vector<7x32xf32> to vector<7x32xbf16>
    %c0_33 = arith.constant 0 : index
    %c0_34 = arith.constant 0 : index
    %c0_35 = arith.constant 0 : index
    %76 = vector.load %arg7[%c0_33, %c0_34, %c0_35] : memref<2x32x128xbf16, #tpu.memory_space<vmem>>, vector<1x32x128xbf16>
    %77 = vector.shape_cast %76 : vector<1x32x128xbf16> to vector<32x128xbf16>
    %cst_36 = arith.constant dense<0.000000e+00> : vector<7x128xf32>
    %78 = tpu.matmul %75, %77, %cst_36 {dimension_numbers = #tpu.dot_dimension_numbers<[1], [0], [0], [1], [0, 0, 1, 1], [], []>} : vector<7x32xbf16>, vector<32x128xbf16>, vector<7x128xf32> -> vector<7x128xf32>
    %79 = vector.broadcast %11 : vector<1x128xf32> to vector<7x128xf32>
    %80 = arith.addf %78, %79 : vector<7x128xf32>
    %cst_37 = arith.constant 0.000000e+00 : f32
    %81 = vector.broadcast %cst_37 : f32 to vector<7x128xf32>
    %82 = arith.maximumf %80, %81 : vector<7x128xf32>
    %83 = arith.truncf %82 : vector<7x128xf32> to vector<7x128xbf16>
    %c0_38 = arith.constant 0 : index
    %c0_39 = arith.constant 0 : index
    %c0_40 = arith.constant 0 : index
    %84 = vector.load %arg8[%c0_38, %c0_39, %c0_40] : memref<2x128x32xbf16, #tpu.memory_space<vmem>>, vector<1x128x32xbf16>
    %85 = vector.shape_cast %84 : vector<1x128x32xbf16> to vector<128x32xbf16>
    %cst_41 = arith.constant dense<0.000000e+00> : vector<7x32xf32>
    %86 = tpu.matmul %83, %85, %cst_41 {dimension_numbers = #tpu.dot_dimension_numbers<[1], [0], [0], [1], [0, 0, 1, 1], [], []>} : vector<7x128xbf16>, vector<128x32xbf16>, vector<7x32xf32> -> vector<7x32xf32>
    %87 = vector.broadcast %12 : vector<1x32xf32> to vector<7x32xf32>
    %88 = arith.addf %86, %87 : vector<7x32xf32>
    %89 = arith.addf %74, %88 : vector<7x32xf32>
    %cst_42 = arith.constant dense<0.000000e+00> : vector<7xf32>
    %90 = vector.multi_reduction <add>, %89, %cst_42 [1] : vector<7x32xf32> to vector<7xf32>
    %91 = vector.shape_cast %90 : vector<7xf32> to vector<7x1xf32>
    %cst_43 = arith.constant 3.200000e+01 : f32
    %92 = vector.broadcast %cst_43 : f32 to vector<7x1xf32>
    %93 = arith.divf %91, %92 : vector<7x1xf32>
    %94 = vector.broadcast %93 : vector<7x1xf32> to vector<7x32xf32>
    %95 = arith.subf %89, %94 : vector<7x32xf32>
    %96 = arith.mulf %95, %95 : vector<7x32xf32>
    %cst_44 = arith.constant dense<0.000000e+00> : vector<7xf32>
    %97 = vector.multi_reduction <add>, %96, %cst_44 [1] : vector<7x32xf32> to vector<7xf32>
    %98 = vector.shape_cast %97 : vector<7xf32> to vector<7x1xf32>
    %cst_45 = arith.constant 3.200000e+01 : f32
    %99 = vector.broadcast %cst_45 : f32 to vector<7x1xf32>
    %100 = arith.divf %98, %99 : vector<7x1xf32>
    %101 = vector.broadcast %93 : vector<7x1xf32> to vector<7x32xf32>
    %102 = arith.subf %89, %101 : vector<7x32xf32>
    %cst_46 = arith.constant 9.99999974E-6 : f32
    %103 = vector.broadcast %cst_46 : f32 to vector<7x1xf32>
    %104 = arith.addf %100, %103 : vector<7x1xf32>
    %105 = math.rsqrt %104 : vector<7x1xf32>
    %106 = vector.broadcast %105 : vector<7x1xf32> to vector<7x32xf32>
    %107 = arith.mulf %102, %106 : vector<7x32xf32>
    %108 = vector.broadcast %13 : vector<1x32xf32> to vector<7x32xf32>
    %109 = arith.mulf %107, %108 : vector<7x32xf32>
    %110 = vector.broadcast %14 : vector<1x32xf32> to vector<7x32xf32>
    %111 = arith.addf %109, %110 : vector<7x32xf32>
    %c1 = arith.constant 1 : index
    %c0_47 = arith.constant 0 : index
    %c0_48 = arith.constant 0 : index
    %112 = vector.load %arg9[%c1, %c0_47, %c0_48] : memref<2x8x128xf32, #tpu.memory_space<vmem>>, vector<1x8x128xf32>
    %113 = vector.shape_cast %112 : vector<1x8x128xf32> to vector<8x128xf32>
    %114 = vector.extract_strided_slice %113 {offsets = [0, 0], sizes = [1, 32], strides = [1, 1]} : vector<8x128xf32> to vector<1x32xf32>
    %115 = vector.extract_strided_slice %113 {offsets = [1, 0], sizes = [1, 32], strides = [1, 1]} : vector<8x128xf32> to vector<1x32xf32>
    %116 = vector.extract_strided_slice %113 {offsets = [2, 0], sizes = [1, 32], strides = [1, 1]} : vector<8x128xf32> to vector<1x32xf32>
    %117 = vector.extract_strided_slice %113 {offsets = [3, 0], sizes = [1, 128], strides = [1, 1]} : vector<8x128xf32> to vector<1x128xf32>
    %118 = vector.extract_strided_slice %113 {offsets = [4, 0], sizes = [1, 32], strides = [1, 1]} : vector<8x128xf32> to vector<1x32xf32>
    %119 = vector.extract_strided_slice %113 {offsets = [5, 0], sizes = [1, 32], strides = [1, 1]} : vector<8x128xf32> to vector<1x32xf32>
    %120 = vector.extract_strided_slice %113 {offsets = [6, 0], sizes = [1, 32], strides = [1, 1]} : vector<8x128xf32> to vector<1x32xf32>
    %121 = arith.truncf %111 : vector<7x32xf32> to vector<7x32xbf16>
    %122 = vector.shape_cast %121 : vector<7x32xbf16> to vector<1x7x32xbf16>
    %123 = vector.shape_cast %122 : vector<1x7x32xbf16> to vector<1x7x32xbf16>
    %124 = vector.broadcast %123 : vector<1x7x32xbf16> to vector<12x7x32xbf16>
    %c1_49 = arith.constant 1 : index
    %c0_50 = arith.constant 0 : index
    %c0_51 = arith.constant 0 : index
    %c0_52 = arith.constant 0 : index
    %125 = vector.load %arg4[%c1_49, %c0_50, %c0_51, %c0_52] : memref<2x12x32x8xbf16, #tpu.memory_space<vmem>>, vector<1x12x32x8xbf16>
    %126 = vector.shape_cast %125 : vector<1x12x32x8xbf16> to vector<12x32x8xbf16>
    "tpu.trace_start"() <{level = 10 : i32, message = "hmk,hkd->hmd"}> : () -> ()
    %cst_53 = arith.constant dense<0.000000e+00> : vector<12x7x8xf32>
    %127 = tpu.matmul %124, %126, %cst_53 {dimension_numbers = #tpu.dot_dimension_numbers<[2], [1], [1], [2], [0, 0, 0, 1, 1, 2], [0], [0]>} : vector<12x7x32xbf16>, vector<12x32x8xbf16>, vector<12x7x8xf32> -> vector<12x7x8xf32>
    "tpu.trace_stop"() : () -> ()
    %c1_54 = arith.constant 1 : index
    %c0_55 = arith.constant 0 : index
    %c0_56 = arith.constant 0 : index
    %c0_57 = arith.constant 0 : index
    %128 = vector.load %arg5[%c1_54, %c0_55, %c0_56, %c0_57] : memref<2x12x1x8xf32, #tpu.memory_space<vmem>>, vector<1x12x1x8xf32>
    %129 = vector.shape_cast %128 : vector<1x12x1x8xf32> to vector<12x1x8xf32>
    %130 = vector.broadcast %129 : vector<12x1x8xf32> to vector<12x7x8xf32>
    %131 = arith.addf %127, %130 : vector<12x7x8xf32>
    %132 = vector.extract_strided_slice %131 {offsets = [0, 0, 0], sizes = [4, 7, 8], strides = [1, 1, 1]} : vector<12x7x8xf32> to vector<4x7x8xf32>
    %133 = vector.extract_strided_slice %131 {offsets = [4, 0, 0], sizes = [4, 7, 8], strides = [1, 1, 1]} : vector<12x7x8xf32> to vector<4x7x8xf32>
    %134 = vector.extract_strided_slice %131 {offsets = [8, 0, 0], sizes = [4, 7, 8], strides = [1, 1, 1]} : vector<12x7x8xf32> to vector<4x7x8xf32>
    %135 = arith.truncf %132 : vector<4x7x8xf32> to vector<4x7x8xbf16>
    %136 = arith.truncf %133 : vector<4x7x8xf32> to vector<4x7x8xbf16>
    "tpu.trace_start"() <{level = 10 : i32, message = "hqd,hkd->hqk"}> : () -> ()
    %cst_58 = arith.constant dense<0.000000e+00> : vector<4x7x7xf32>
    %137 = tpu.matmul %135, %136, %cst_58 {dimension_numbers = #tpu.dot_dimension_numbers<[2], [2], [1], [1], [0, 0, 0, 1, 1, 1], [0], [0]>} : vector<4x7x8xbf16>, vector<4x7x8xbf16>, vector<4x7x7xf32> -> vector<4x7x7xf32>
    "tpu.trace_stop"() : () -> ()
    %cst_59 = arith.constant dense<0xFF800000> : vector<4x7xf32>
    %138 = vector.multi_reduction <maximumf>, %137, %cst_59 [2] : vector<4x7x7xf32> to vector<4x7xf32>
    %139 = vector.shape_cast %138 : vector<4x7xf32> to vector<4x7x1xf32>
    %140 = vector.broadcast %139 : vector<4x7x1xf32> to vector<4x7x7xf32>
    %141 = arith.subf %137, %140 : vector<4x7x7xf32>
    %142 = math.exp %141 : vector<4x7x7xf32>
    %cst_60 = arith.constant dense<0.000000e+00> : vector<4x7xf32>
    %143 = vector.multi_reduction <add>, %142, %cst_60 [2] : vector<4x7x7xf32> to vector<4x7xf32>
    %144 = vector.shape_cast %143 : vector<4x7xf32> to vector<4x7x1xf32>
    %145 = tpu.reciprocal %144 {approx = true} : vector<4x7x1xf32> -> vector<4x7x1xf32>
    %146 = vector.broadcast %145 : vector<4x7x1xf32> to vector<4x7x7xf32>
    %147 = arith.mulf %142, %146 : vector<4x7x7xf32>
    %148 = arith.truncf %147 : vector<4x7x7xf32> to vector<4x7x7xbf16>
    %149 = arith.truncf %134 : vector<4x7x8xf32> to vector<4x7x8xbf16>
    "tpu.trace_start"() <{level = 10 : i32, message = "hqk,hkd->hqd"}> : () -> ()
    %cst_61 = arith.constant dense<0.000000e+00> : vector<4x7x8xf32>
    %150 = tpu.matmul %148, %149, %cst_61 {dimension_numbers = #tpu.dot_dimension_numbers<[2], [1], [1], [2], [0, 0, 0, 1, 1, 2], [0], [0]>} : vector<4x7x7xbf16>, vector<4x7x8xbf16>, vector<4x7x8xf32> -> vector<4x7x8xf32>
    "tpu.trace_stop"() : () -> ()
    %151 = arith.truncf %150 : vector<4x7x8xf32> to vector<4x7x8xbf16>
    %c1_62 = arith.constant 1 : index
    %c0_63 = arith.constant 0 : index
    %c0_64 = arith.constant 0 : index
    %c0_65 = arith.constant 0 : index
    %152 = vector.load %arg6[%c1_62, %c0_63, %c0_64, %c0_65] : memref<2x4x8x32xbf16, #tpu.memory_space<vmem>>, vector<1x4x8x32xbf16>
    %153 = vector.shape_cast %152 : vector<1x4x8x32xbf16> to vector<4x8x32xbf16>
    "tpu.trace_start"() <{level = 10 : i32, message = "hmd,hdk->hmk"}> : () -> ()
    %cst_66 = arith.constant dense<0.000000e+00> : vector<4x7x32xf32>
    %154 = tpu.matmul %151, %153, %cst_66 {dimension_numbers = #tpu.dot_dimension_numbers<[2], [1], [1], [2], [0, 0, 0, 1, 1, 2], [0], [0]>} : vector<4x7x8xbf16>, vector<4x8x32xbf16>, vector<4x7x32xf32> -> vector<4x7x32xf32>
    "tpu.trace_stop"() : () -> ()
    %cst_67 = arith.constant dense<0.000000e+00> : vector<7x32xf32>
    %155 = vector.multi_reduction <add>, %154, %cst_67 [0] : vector<4x7x32xf32> to vector<7x32xf32>
    %156 = vector.broadcast %114 : vector<1x32xf32> to vector<7x32xf32>
    %157 = arith.addf %155, %156 : vector<7x32xf32>
    %158 = arith.addf %111, %157 : vector<7x32xf32>
    %cst_68 = arith.constant dense<0.000000e+00> : vector<7xf32>
    %159 = vector.multi_reduction <add>, %158, %cst_68 [1] : vector<7x32xf32> to vector<7xf32>
    %160 = vector.shape_cast %159 : vector<7xf32> to vector<7x1xf32>
    %cst_69 = arith.constant 3.200000e+01 : f32
    %161 = vector.broadcast %cst_69 : f32 to vector<7x1xf32>
    %162 = arith.divf %160, %161 : vector<7x1xf32>
    %163 = vector.broadcast %162 : vector<7x1xf32> to vector<7x32xf32>
    %164 = arith.subf %158, %163 : vector<7x32xf32>
    %165 = arith.mulf %164, %164 : vector<7x32xf32>
    %cst_70 = arith.constant dense<0.000000e+00> : vector<7xf32>
    %166 = vector.multi_reduction <add>, %165, %cst_70 [1] : vector<7x32xf32> to vector<7xf32>
    %167 = vector.shape_cast %166 : vector<7xf32> to vector<7x1xf32>
    %cst_71 = arith.constant 3.200000e+01 : f32
    %168 = vector.broadcast %cst_71 : f32 to vector<7x1xf32>
    %169 = arith.divf %167, %168 : vector<7x1xf32>
    %170 = vector.broadcast %162 : vector<7x1xf32> to vector<7x32xf32>
    %171 = arith.subf %158, %170 : vector<7x32xf32>
    %cst_72 = arith.constant 9.99999974E-6 : f32
    %172 = vector.broadcast %cst_72 : f32 to vector<7x1xf32>
    %173 = arith.addf %169, %172 : vector<7x1xf32>
    %174 = math.rsqrt %173 : vector<7x1xf32>
    %175 = vector.broadcast %174 : vector<7x1xf32> to vector<7x32xf32>
    %176 = arith.mulf %171, %175 : vector<7x32xf32>
    %177 = vector.broadcast %115 : vector<1x32xf32> to vector<7x32xf32>
    %178 = arith.mulf %176, %177 : vector<7x32xf32>
    %179 = vector.broadcast %116 : vector<1x32xf32> to vector<7x32xf32>
    %180 = arith.addf %178, %179 : vector<7x32xf32>
    %181 = arith.truncf %180 : vector<7x32xf32> to vector<7x32xbf16>
    %c1_73 = arith.constant 1 : index
    %c0_74 = arith.constant 0 : index
    %c0_75 = arith.constant 0 : index
    %182 = vector.load %arg7[%c1_73, %c0_74, %c0_75] : memref<2x32x128xbf16, #tpu.memory_space<vmem>>, vector<1x32x128xbf16>
    %183 = vector.shape_cast %182 : vector<1x32x128xbf16> to vector<32x128xbf16>
    %cst_76 = arith.constant dense<0.000000e+00> : vector<7x128xf32>
    %184 = tpu.matmul %181, %183, %cst_76 {dimension_numbers = #tpu.dot_dimension_numbers<[1], [0], [0], [1], [0, 0, 1, 1], [], []>} : vector<7x32xbf16>, vector<32x128xbf16>, vector<7x128xf32> -> vector<7x128xf32>
    %185 = vector.broadcast %117 : vector<1x128xf32> to vector<7x128xf32>
    %186 = arith.addf %184, %185 : vector<7x128xf32>
    %cst_77 = arith.constant 0.000000e+00 : f32
    %187 = vector.broadcast %cst_77 : f32 to vector<7x128xf32>
    %188 = arith.maximumf %186, %187 : vector<7x128xf32>
    %189 = arith.truncf %188 : vector<7x128xf32> to vector<7x128xbf16>
    %c1_78 = arith.constant 1 : index
    %c0_79 = arith.constant 0 : index
    %c0_80 = arith.constant 0 : index
    %190 = vector.load %arg8[%c1_78, %c0_79, %c0_80] : memref<2x128x32xbf16, #tpu.memory_space<vmem>>, vector<1x128x32xbf16>
    %191 = vector.shape_cast %190 : vector<1x128x32xbf16> to vector<128x32xbf16>
    %cst_81 = arith.constant dense<0.000000e+00> : vector<7x32xf32>
    %192 = tpu.matmul %189, %191, %cst_81 {dimension_numbers = #tpu.dot_dimension_numbers<[1], [0], [0], [1], [0, 0, 1, 1], [], []>} : vector<7x128xbf16>, vector<128x32xbf16>, vector<7x32xf32> -> vector<7x32xf32>
    %193 = vector.broadcast %118 : vector<1x32xf32> to vector<7x32xf32>
    %194 = arith.addf %192, %193 : vector<7x32xf32>
    %195 = arith.addf %180, %194 : vector<7x32xf32>
    %cst_82 = arith.constant dense<0.000000e+00> : vector<7xf32>
    %196 = vector.multi_reduction <add>, %195, %cst_82 [1] : vector<7x32xf32> to vector<7xf32>
    %197 = vector.shape_cast %196 : vector<7xf32> to vector<7x1xf32>
    %cst_83 = arith.constant 3.200000e+01 : f32
    %198 = vector.broadcast %cst_83 : f32 to vector<7x1xf32>
    %199 = arith.divf %197, %198 : vector<7x1xf32>
    %200 = vector.broadcast %199 : vector<7x1xf32> to vector<7x32xf32>
    %201 = arith.subf %195, %200 : vector<7x32xf32>
    %202 = arith.mulf %201, %201 : vector<7x32xf32>
    %cst_84 = arith.constant dense<0.000000e+00> : vector<7xf32>
    %203 = vector.multi_reduction <add>, %202, %cst_84 [1] : vector<7x32xf32> to vector<7xf32>
    %204 = vector.shape_cast %203 : vector<7xf32> to vector<7x1xf32>
    %cst_85 = arith.constant 3.200000e+01 : f32
    %205 = vector.broadcast %cst_85 : f32 to vector<7x1xf32>
    %206 = arith.divf %204, %205 : vector<7x1xf32>
    %207 = vector.broadcast %199 : vector<7x1xf32> to vector<7x32xf32>
    %208 = arith.subf %195, %207 : vector<7x32xf32>
    %cst_86 = arith.constant 9.99999974E-6 : f32
    %209 = vector.broadcast %cst_86 : f32 to vector<7x1xf32>
    %210 = arith.addf %206, %209 : vector<7x1xf32>
    %211 = math.rsqrt %210 : vector<7x1xf32>
    %212 = vector.broadcast %211 : vector<7x1xf32> to vector<7x32xf32>
    %213 = arith.mulf %208, %212 : vector<7x32xf32>
    %214 = vector.broadcast %119 : vector<1x32xf32> to vector<7x32xf32>
    %215 = arith.mulf %213, %214 : vector<7x32xf32>
    %216 = vector.broadcast %120 : vector<1x32xf32> to vector<7x32xf32>
    %217 = arith.addf %215, %216 : vector<7x32xf32>
    %c0_87 = arith.constant 0 : index
    %c0_88 = arith.constant 0 : index
    %218 = vector.load %arg11[%c0_87, %c0_88] : memref<1x7xbf16, #tpu.memory_space<vmem>>, vector<1x7xbf16>
    %219 = arith.truncf %217 : vector<7x32xf32> to vector<7x32xbf16>
    %cst_89 = arith.constant dense<0.000000e+00> : vector<1x32xf32>
    %220 = tpu.matmul %218, %219, %cst_89 {dimension_numbers = #tpu.dot_dimension_numbers<[1], [0], [0], [1], [0, 0, 1, 1], [], []>} : vector<1x7xbf16>, vector<7x32xbf16>, vector<1x32xf32> -> vector<1x32xf32>
    %cst_90 = arith.constant 0.142857149 : f32
    %221 = vector.broadcast %cst_90 : f32 to vector<1x32xf32>
    %222 = arith.mulf %220, %221 : vector<1x32xf32>
    %223 = arith.truncf %222 : vector<1x32xf32> to vector<1x32xbf16>
    %c0_91 = arith.constant 0 : index
    %c0_92 = arith.constant 0 : index
    %224 = vector.load %arg12[%c0_91, %c0_92] : memref<32x128xbf16, #tpu.memory_space<vmem>>, vector<32x128xbf16>
    %cst_93 = arith.constant dense<0.000000e+00> : vector<1x128xf32>
    %225 = tpu.matmul %223, %224, %cst_93 {dimension_numbers = #tpu.dot_dimension_numbers<[1], [0], [0], [1], [0, 0, 1, 1], [], []>} : vector<1x32xbf16>, vector<32x128xbf16>, vector<1x128xf32> -> vector<1x128xf32>
    %c0_94 = arith.constant 0 : index
    %c0_95 = arith.constant 0 : index
    %226 = vector.load %arg13[%c0_94, %c0_95] : memref<1x128xf32, #tpu.memory_space<vmem>>, vector<1x128xf32>
    %227 = arith.addf %225, %226 : vector<1x128xf32>
    %c0_96 = arith.constant 0 : index
    %c0_97 = arith.constant 0 : index
    %c0_98 = arith.constant 0 : index
    %228 = vector.load %arg14[%c0_96, %c0_97, %c0_98] : memref<1x1x128xf32, #tpu.memory_space<vmem>>, vector<1x1x128xf32>
    %229 = vector.shape_cast %228 : vector<1x1x128xf32> to vector<1x128xf32>
    %230 = vector.shape_cast %227 : vector<1x128xf32> to vector<1x1x128xf32>
    tpu.vector_store %arg14[%c0_96, %c0_97, %c0_98], %230 {strides = array<i32>} : memref<1x1x128xf32, #tpu.memory_space<vmem>>, vector<1x1x128xf32>,
    return
  }
  func.func @transform_0(%arg0: i32) -> (i32, i32, i32) {
    %c0_i32 = arith.constant 0 : i32
    %c0_i32_0 = arith.constant 0 : i32
    %c0_i32_1 = arith.constant 0 : i32
    return %arg0, %c0_i32, %c0_i32_0 : i32, i32, i32
  }
  func.func @transform_1(%arg0: i32) -> (i32, i32) {
    %c0_i32 = arith.constant 0 : i32
    %c0_i32_0 = arith.constant 0 : i32
    %c0_i32_1 = arith.constant 0 : i32
    return %c0_i32, %c0_i32_0 : i32, i32
  }
  func.func @transform_2(%arg0: i32) -> (i32, i32) {
    %c0_i32 = arith.constant 0 : i32
    %c0_i32_0 = arith.constant 0 : i32
    %c0_i32_1 = arith.constant 0 : i32
    return %c0_i32, %c0_i32_0 : i32, i32
  }
  func.func @transform_3(%arg0: i32) -> (i32, i32, i32, i32) {
    %c0_i32 = arith.constant 0 : i32
    %c0_i32_0 = arith.constant 0 : i32
    %c0_i32_1 = arith.constant 0 : i32
    %c0_i32_2 = arith.constant 0 : i32
    %c0_i32_3 = arith.constant 0 : i32
    return %c0_i32, %c0_i32_0, %c0_i32_1, %c0_i32_2 : i32, i32, i32, i32
  }
  func.func @transform_4(%arg0: i32) -> (i32, i32, i32, i32) {
    %c0_i32 = arith.constant 0 : i32
    %c0_i32_0 = arith.constant 0 : i32
    %c0_i32_1 = arith.constant 0 : i32
    %c0_i32_2 = arith.constant 0 : i32
    %c0_i32_3 = arith.constant 0 : i32
    return %c0_i32, %c0_i32_0, %c0_i32_1, %c0_i32_2 : i32, i32, i32, i32
  }
  func.func @transform_5(%arg0: i32) -> (i32, i32, i32, i32) {
    %c0_i32 = arith.constant 0 : i32
    %c0_i32_0 = arith.constant 0 : i32
    %c0_i32_1 = arith.constant 0 : i32
    %c0_i32_2 = arith.constant 0 : i32
    %c0_i32_3 = arith.constant 0 : i32
    return %c0_i32, %c0_i32_0, %c0_i32_1, %c0_i32_2 : i32, i32, i32, i32
  }
  func.func @transform_6(%arg0: i32) -> (i32, i32, i32) {
    %c0_i32 = arith.constant 0 : i32
    %c0_i32_0 = arith.constant 0 : i32
    %c0_i32_1 = arith.constant 0 : i32
    %c0_i32_2 = arith.constant 0 : i32
    return %c0_i32, %c0_i32_0, %c0_i32_1 : i32, i32, i32
  }
  func.func @transform_7(%arg0: i32) -> (i32, i32, i32) {
    %c0_i32 = arith.constant 0 : i32
    %c0_i32_0 = arith.constant 0 : i32
    %c0_i32_1 = arith.constant 0 : i32
    %c0_i32_2 = arith.constant 0 : i32
    return %c0_i32, %c0_i32_0, %c0_i32_1 : i32, i32, i32
  }
  func.func @transform_8(%arg0: i32) -> (i32, i32, i32) {
    %c0_i32 = arith.constant 0 : i32
    %c0_i32_0 = arith.constant 0 : i32
    %c0_i32_1 = arith.constant 0 : i32
    %c0_i32_2 = arith.constant 0 : i32
    return %c0_i32, %c0_i32_0, %c0_i32_1 : i32, i32, i32
  }
  func.func @transform_9(%arg0: i32) -> (i32, i32) {
    %c0_i32 = arith.constant 0 : i32
    %c0_i32_0 = arith.constant 0 : i32
    %c0_i32_1 = arith.constant 0 : i32
    return %c0_i32, %c0_i32_0 : i32, i32
  }
  func.func @transform_10(%arg0: i32) -> (i32, i32) {
    %c0_i32 = arith.constant 0 : i32
    %c0_i32_0 = arith.constant 0 : i32
    %c0_i32_1 = arith.constant 0 : i32
    return %c0_i32, %c0_i32_0 : i32, i32
  }
  func.func @transform_11(%arg0: i32) -> (i32, i32) {
    %c0_i32 = arith.constant 0 : i32
    %c0_i32_0 = arith.constant 0 : i32
    %c0_i32_1 = arith.constant 0 : i32
    return %c0_i32, %c0_i32_0 : i32, i32
  }
  func.func @transform_12(%arg0: i32) -> (i32, i32) {
    %c0_i32 = arith.constant 0 : i32
    %c0_i32_0 = arith.constant 0 : i32
    %c0_i32_1 = arith.constant 0 : i32
    return %c0_i32, %c0_i32_0 : i32, i32
  }
  func.func @transform_13(%arg0: i32) -> (i32, i32, i32) {
    %c0_i32 = arith.constant 0 : i32
    %c0_i32_0 = arith.constant 0 : i32
    %c0_i32_1 = arith.constant 0 : i32
    return %arg0, %c0_i32, %c0_i32_0 : i32, i32, i32
  }
}

</mosaic_0001>

<llo_original>
// kernel: tpu_custom_call.1
$region0: #{tpu_custom_call.1}
  #allocation0 [shape = 'u32[]', space=smem, size = 0x4, offset = 0x4, fixed_abs, tag = 'smem constant byte address 0x4 - core index']
  #allocation1 [shape = 'u32[144,128]{1,0:T(1,128)}', space=vmem, size = 0x12000, scoped, tag = 'internal scratch']
  %s0 = inlined_call_operand.vmem [shape: bf16[2,7,16], index: 0, kind: input, shape index: {}]
  %s1 = inlined_call_operand.vmem [shape: bf16[16,32], index: 1, kind: input, shape index: {}]
  %s2 = inlined_call_operand.vmem [shape: f32[7,32], index: 2, kind: input, shape index: {}]
  %s3 = inlined_call_operand.vmem [shape: bf16[2,12,32,8], index: 3, kind: input, shape index: {}]
  %s4 = inlined_call_operand.vmem [shape: f32[2,12,1,8], index: 4, kind: input, shape index: {}]
  %s5 = inlined_call_operand.vmem [shape: bf16[2,4,8,32], index: 5, kind: input, shape index: {}]
  %s6 = inlined_call_operand.vmem [shape: bf16[2,32,128], index: 6, kind: input, shape index: {}]
  %s7 = inlined_call_operand.vmem [shape: bf16[2,128,32], index: 7, kind: input, shape index: {}]
  %s8 = inlined_call_operand.vmem [shape: f32[2,8,128], index: 8, kind: input, shape index: {}]
  %s9 = inlined_call_operand.vmem [shape: f32[7,7], index: 9, kind: input, shape index: {}]
  %s10 = inlined_call_operand.vmem [shape: bf16[1,7], index: 10, kind: input, shape index: {}]
  %s11 = inlined_call_operand.vmem [shape: bf16[32,128], index: 11, kind: input, shape index: {}]
  %s12 = inlined_call_operand.vmem [shape: f32[1,128], index: 12, kind: input, shape index: {}]
  %s13 = inlined_call_operand.hbm [shape: f32[2,1,128], index: 13, kind: output, shape index: {}]
  %s14 = sld [smem:[#allocation0]]
  $region85: #{tpu_custom_call.1} parent=0
    _
  %s16 = ssub.s32 1, %s14
  %s17 = scalar_select 0, %s16, %s14
  $region1: #{tpu_custom_call.1} parent=0
    #allocation2 [shape = 'u8[1024]{0}', space=vmem, size = 0x400, scoped, tag = 'output window, operand 0']
    #allocation3 [shape = 's32[2]{0}', space=sflag, size = 0x8, scoped, tag = 'scoped memory for tpu_custom_call.1']
    %18 = vsyncpa [#allocation3], 0
    %s19 = scalar_lea.sflag [#allocation3], 1
    %20 = vsyncpa %s19, 0
    loop: start=0, step=1, limit=4
    $region2: #{tpu_custom_call.1} parent=1 // loop_pre_header
      _
    $region3: #{tpu_custom_call.1} parent=1 // loop_header
      %s22 = sphi 0, %s26
      %p23 = scmp.ge.s32.totalorder %s22, 4
      %s32 = sphi 0, %s34
      %s35 = sphi 0, %s32
      %s36 = sphi 0, %s35
      %s52 = sphi 0, %s36
      %s56 = sphi 0, %s56
      %s58 = sphi 0, %s56
      %s59 = sphi 0, %s58
      %s73 = sphi 0, %s59
      %s77 = sphi 0, %s77
      %s79 = sphi 0, %s77
      %s80 = sphi 0, %s79
      %s94 = sphi 0, %s80
      %s98 = sphi 0, %s98
      %s100 = sphi 0, %s98
      %s101 = sphi 0, %s100
      %s115 = sphi 0, %s101
      %s119 = sphi 0, %s119
      %s121 = sphi 0, %s119
      %s122 = sphi 0, %s121
      %s136 = sphi 0, %s122
      %s140 = sphi 0, %s140
      %s142 = sphi 0, %s140
      %s143 = sphi 0, %s142
      %s157 = sphi 0, %s143
      %s161 = sphi 0, %s161
      %s163 = sphi 0, %s161
      %s164 = sphi 0, %s163
      %s178 = sphi 0, %s164
      %s182 = sphi 0, %s182
      %s184 = sphi 0, %s182
      %s185 = sphi 0, %s184
      %s199 = sphi 0, %s185
      %s203 = sphi 0, %s203
      %s205 = sphi 0, %s203
      %s206 = sphi 0, %s205
      %s220 = sphi 0, %s206
      %s224 = sphi 0, %s224
      %s226 = sphi 0, %s224
      %s227 = sphi 0, %s226
      %s241 = sphi 0, %s227
      %s245 = sphi 0, %s245
      %s247 = sphi 0, %s245
      %s248 = sphi 0, %s247
      %s262 = sphi 0, %s248
      %s266 = sphi 0, %s266
      %s268 = sphi 0, %s266
      %s269 = sphi 0, %s268
      %s283 = sphi 0, %s269
      %s287 = sphi 0, %s287
      %s289 = sphi 0, %s287
      %s290 = sphi 0, %s289
      %s304 = sphi 0, %s290
      %s310 = sphi 0, %s312
      %s313 = sphi 0, %s310
      %s314 = sphi 0, %s313
      %s330 = sphi 0, %s314
    $region4: #{tpu_custom_call.1} parent=1 // loop_header_branch
      %25 = sbr.rel (%p23) target = $region8
    $region5: #{tpu_custom_call.1} parent=1 // loop_body
      %s27 = ssub.s32 %s22, 1
      %s28 = ssub.s32 %s22, 2
      %s29 = sadd.s32 %s22, 1
      %s30 = ssub.s32 %s22, %s29
      %p31 = scmp.eq.s32.totalorder %s30, 0
      %s33 = sadd.s32 %s32, 1
      %s34 = scalar_select %p31, %s32, %s33
      %p37 = pneg %p31
      %p38 = scmp.eq.s32.totalorder %s22, 1
      %p39 = por %p37, %p38
      %p40 = scmp.ne.s32.totalorder %s32, %s35
      %p41 = scmp.eq.s32.totalorder %s22, 0
      %p42 = por %p40, %p41
      %p43 = scmp.ne.s32.totalorder %s32, %s35
      %p44 = scmp.eq.s32.totalorder %s27, 1
      %p45 = por %p43, %p44
      %p46 = scmp.ne.s32.totalorder %s35, %s36
      %p47 = scmp.eq.s32.totalorder %s27, 0
      %p48 = por %p46, %p47
      %p49 = scmp.ne.s32.totalorder %s35, %s36
      %p50 = scmp.eq.s32.totalorder %s28, 1
      %p51 = por %p49, %p50
      %p53 = scmp.ne.s32.totalorder %s36, %s52
      %p54 = scmp.eq.s32.totalorder %s28, 0
      %p55 = por %p53, %p54
      %s57 = sadd.s32 %s56, 1
      %p60 = scmp.eq.s32.totalorder %s22, 1
      %p61 = scmp.ne.s32.totalorder %s56, %s58
      %p62 = scmp.eq.s32.totalorder %s22, 0
      %p63 = por %p61, %p62
      %p64 = scmp.ne.s32.totalorder %s56, %s58
      %p65 = scmp.eq.s32.totalorder %s27, 1
      %p66 = por %p64, %p65
      %p67 = scmp.ne.s32.totalorder %s58, %s59
      %p68 = scmp.eq.s32.totalorder %s27, 0
      %p69 = por %p67, %p68
      %p70 = scmp.ne.s32.totalorder %s58, %s59
      %p71 = scmp.eq.s32.totalorder %s28, 1
      %p72 = por %p70, %p71
      %p74 = scmp.ne.s32.totalorder %s59, %s73
      %p75 = scmp.eq.s32.totalorder %s28, 0
      %p76 = por %p74, %p75
      %s78 = sadd.s32 %s77, 1
      %p81 = scmp.eq.s32.totalorder %s22, 1
      %p82 = scmp.ne.s32.totalorder %s77, %s79
      %p83 = scmp.eq.s32.totalorder %s22, 0
      %p84 = por %p82, %p83
      %p85 = scmp.ne.s32.totalorder %s77, %s79
      %p86 = scmp.eq.s32.totalorder %s27, 1
      %p87 = por %p85, %p86
      %p88 = scmp.ne.s32.totalorder %s79, %s80
      %p89 = scmp.eq.s32.totalorder %s27, 0
      %p90 = por %p88, %p89
      %p91 = scmp.ne.s32.totalorder %s79, %s80
      %p92 = scmp.eq.s32.totalorder %s28, 1
      %p93 = por %p91, %p92
      %p95 = scmp.ne.s32.totalorder %s80, %s94
      %p96 = scmp.eq.s32.totalorder %s28, 0
      %p97 = por %p95, %p96
      %s99 = sadd.s32 %s98, 1
      %p102 = scmp.eq.s32.totalorder %s22, 1
      %p103 = scmp.ne.s32.totalorder %s98, %s100
      %p104 = scmp.eq.s32.totalorder %s22, 0
      %p105 = por %p103, %p104
      %p106 = scmp.ne.s32.totalorder %s98, %s100
      %p107 = scmp.eq.s32.totalorder %s27, 1
      %p108 = por %p106, %p107
      %p109 = scmp.ne.s32.totalorder %s100, %s101
      %p110 = scmp.eq.s32.totalorder %s27, 0
      %p111 = por %p109, %p110
      %p112 = scmp.ne.s32.totalorder %s100, %s101
      %p113 = scmp.eq.s32.totalorder %s28, 1
      %p114 = por %p112, %p113
      %p116 = scmp.ne.s32.totalorder %s101, %s115
      %p117 = scmp.eq.s32.totalorder %s28, 0
      %p118 = por %p116, %p117
      %s120 = sadd.s32 %s119, 1
      %p123 = scmp.eq.s32.totalorder %s22, 1
      %p124 = scmp.ne.s32.totalorder %s119, %s121
      %p125 = scmp.eq.s32.totalorder %s22, 0
      %p126 = por %p124, %p125
      %p127 = scmp.ne.s32.totalorder %s119, %s121
      %p128 = scmp.eq.s32.totalorder %s27, 1
      %p129 = por %p127, %p128
      %p130 = scmp.ne.s32.totalorder %s121, %s122
      %p131 = scmp.eq.s32.totalorder %s27, 0
      %p132 = por %p130, %p131
      %p133 = scmp.ne.s32.totalorder %s121, %s122
      %p134 = scmp.eq.s32.totalorder %s28, 1
      %p135 = por %p133, %p134
      %p137 = scmp.ne.s32.totalorder %s122, %s136
      %p138 = scmp.eq.s32.totalorder %s28, 0
      %p139 = por %p137, %p138
      %s141 = sadd.s32 %s140, 1
      %p144 = scmp.eq.s32.totalorder %s22, 1
      %p145 = scmp.ne.s32.totalorder %s140, %s142
      %p146 = scmp.eq.s32.totalorder %s22, 0
      %p147 = por %p145, %p146
      %p148 = scmp.ne.s32.totalorder %s140, %s142
      %p149 = scmp.eq.s32.totalorder %s27, 1
      %p150 = por %p148, %p149
      %p151 = scmp.ne.s32.totalorder %s142, %s143
      %p152 = scmp.eq.s32.totalorder %s27, 0
      %p153 = por %p151, %p152
      %p154 = scmp.ne.s32.totalorder %s142, %s143
      %p155 = scmp.eq.s32.totalorder %s28, 1
      %p156 = por %p154, %p155
      %p158 = scmp.ne.s32.totalorder %s143, %s157
      %p159 = scmp.eq.s32.totalorder %s28, 0
      %p160 = por %p158, %p159
      %s162 = sadd.s32 %s161, 1
      %p165 = scmp.eq.s32.totalorder %s22, 1
      %p166 = scmp.ne.s32.totalorder %s161, %s163
      %p167 = scmp.eq.s32.totalorder %s22, 0
      %p168 = por %p166, %p167
      %p169 = scmp.ne.s32.totalorder %s161, %s163
      %p170 = scmp.eq.s32.totalorder %s27, 1
      %p171 = por %p169, %p170
      %p172 = scmp.ne.s32.totalorder %s163, %s164
      %p173 = scmp.eq.s32.totalorder %s27, 0
      %p174 = por %p172, %p173
      %p175 = scmp.ne.s32.totalorder %s163, %s164
      %p176 = scmp.eq.s32.totalorder %s28, 1
      %p177 = por %p175, %p176
      %p179 = scmp.ne.s32.totalorder %s164, %s178
      %p180 = scmp.eq.s32.totalorder %s28, 0
      %p181 = por %p179, %p180
      %s183 = sadd.s32 %s182, 1
      %p186 = scmp.eq.s32.totalorder %s22, 1
      %p187 = scmp.ne.s32.totalorder %s182, %s184
      %p188 = scmp.eq.s32.totalorder %s22, 0
      %p189 = por %p187, %p188
      %p190 = scmp.ne.s32.totalorder %s182, %s184
      %p191 = scmp.eq.s32.totalorder %s27, 1
      %p192 = por %p190, %p191
      %p193 = scmp.ne.s32.totalorder %s184, %s185
      %p194 = scmp.eq.s32.totalorder %s27, 0
      %p195 = por %p193, %p194
      %p196 = scmp.ne.s32.totalorder %s184, %s185
      %p197 = scmp.eq.s32.totalorder %s28, 1
      %p198 = por %p196, %p197
      %p200 = scmp.ne.s32.totalorder %s185, %s199
      %p201 = scmp.eq.s32.totalorder %s28, 0
      %p202 = por %p200, %p201
      %s204 = sadd.s32 %s203, 1
      %p207 = scmp.eq.s32.totalorder %s22, 1
      %p208 = scmp.ne.s32.totalorder %s203, %s205
      %p209 = scmp.eq.s32.totalorder %s22, 0
      %p210 = por %p208, %p209
      %p211 = scmp.ne.s32.totalorder %s203, %s205
      %p212 = scmp.eq.s32.totalorder %s27, 1
      %p213 = por %p211, %p212
      %p214 = scmp.ne.s32.totalorder %s205, %s206
      %p215 = scmp.eq.s32.totalorder %s27, 0
      %p216 = por %p214, %p215
      %p217 = scmp.ne.s32.totalorder %s205, %s206
      %p218 = scmp.eq.s32.totalorder %s28, 1
      %p219 = por %p217, %p218
      %p221 = scmp.ne.s32.totalorder %s206, %s220
      %p222 = scmp.eq.s32.totalorder %s28, 0
      %p223 = por %p221, %p222
      %s225 = sadd.s32 %s224, 1
      %p228 = scmp.eq.s32.totalorder %s22, 1
      %p229 = scmp.ne.s32.totalorder %s224, %s226
      %p230 = scmp.eq.s32.totalorder %s22, 0
      %p231 = por %p229, %p230
      %p232 = scmp.ne.s32.totalorder %s224, %s226
      %p233 = scmp.eq.s32.totalorder %s27, 1
      %p234 = por %p232, %p233
      %p235 = scmp.ne.s32.totalorder %s226, %s227
      %p236 = scmp.eq.s32.totalorder %s27, 0
      %p237 = por %p235, %p236
      %p238 = scmp.ne.s32.totalorder %s226, %s227
      %p239 = scmp.eq.s32.totalorder %s28, 1
      %p240 = por %p238, %p239
      %p242 = scmp.ne.s32.totalorder %s227, %s241
      %p243 = scmp.eq.s32.totalorder %s28, 0
      %p244 = por %p242, %p243
      %s246 = sadd.s32 %s245, 1
      %p249 = scmp.eq.s32.totalorder %s22, 1
      %p250 = scmp.ne.s32.totalorder %s245, %s247
      %p251 = scmp.eq.s32.totalorder %s22, 0
      %p252 = por %p250, %p251
      %p253 = scmp.ne.s32.totalorder %s245, %s247
      %p254 = scmp.eq.s32.totalorder %s27, 1
      %p255 = por %p253, %p254
      %p256 = scmp.ne.s32.totalorder %s247, %s248
      %p257 = scmp.eq.s32.totalorder %s27, 0
      %p258 = por %p256, %p257
      %p259 = scmp.ne.s32.totalorder %s247, %s248
      %p260 = scmp.eq.s32.totalorder %s28, 1
      %p261 = por %p259, %p260
      %p263 = scmp.ne.s32.totalorder %s248, %s262
      %p264 = scmp.eq.s32.totalorder %s28, 0
      %p265 = por %p263, %p264
      %s267 = sadd.s32 %s266, 1
      %p270 = scmp.eq.s32.totalorder %s22, 1
      %p271 = scmp.ne.s32.totalorder %s266, %s268
      %p272 = scmp.eq.s32.totalorder %s22, 0
      %p273 = por %p271, %p272
      %p274 = scmp.ne.s32.totalorder %s266, %s268
      %p275 = scmp.eq.s32.totalorder %s27, 1
      %p276 = por %p274, %p275
      %p277 = scmp.ne.s32.totalorder %s268, %s269
      %p278 = scmp.eq.s32.totalorder %s27, 0
      %p279 = por %p277, %p278
      %p280 = scmp.ne.s32.totalorder %s268, %s269
      %p281 = scmp.eq.s32.totalorder %s28, 1
      %p282 = por %p280, %p281
      %p284 = scmp.ne.s32.totalorder %s269, %s283
      %p285 = scmp.eq.s32.totalorder %s28, 0
      %p286 = por %p284, %p285
      %s288 = sadd.s32 %s287, 1
      %p291 = scmp.eq.s32.totalorder %s22, 1
      %p292 = scmp.ne.s32.totalorder %s287, %s289
      %p293 = scmp.eq.s32.totalorder %s22, 0
      %p294 = por %p292, %p293
      %p295 = scmp.ne.s32.totalorder %s287, %s289
      %p296 = scmp.eq.s32.totalorder %s27, 1
      %p297 = por %p295, %p296
      %p298 = scmp.ne.s32.totalorder %s289, %s290
      %p299 = scmp.eq.s32.totalorder %s27, 0
      %p300 = por %p298, %p299
      %p301 = scmp.ne.s32.totalorder %s289, %s290
      %p302 = scmp.eq.s32.totalorder %s28, 1
      %p303 = por %p301, %p302
      %p305 = scmp.ne.s32.totalorder %s290, %s304
      %p306 = scmp.eq.s32.totalorder %s28, 0
      %p307 = por %p305, %p306
      %s308 = ssub.s32 %s22, %s29
      %p309 = scmp.eq.s32.totalorder %s308, 0
      %s311 = sadd.s32 %s310, 1
      %s312 = scalar_select %p309, %s310, %s311
      %p315 = pneg %p309
      %p316 = scmp.eq.s32.totalorder %s22, 1
      %p317 = por %p315, %p316
      %p318 = scmp.ne.s32.totalorder %s310, %s313
      %p319 = scmp.eq.s32.totalorder %s22, 0
      %p320 = por %p318, %p319
      %p321 = scmp.ne.s32.totalorder %s310, %s313
      %p322 = scmp.eq.s32.totalorder %s27, 1
      %p323 = por %p321, %p322
      %p324 = scmp.ne.s32.totalorder %s313, %s314
      %p325 = scmp.eq.s32.totalorder %s27, 0
      %p326 = por %p324, %p325
      %p327 = scmp.ne.s32.totalorder %s313, %s314
      %p328 = scmp.eq.s32.totalorder %s28, 1
      %p329 = por %p327, %p328
      %p331 = scmp.ne.s32.totalorder %s314, %s330
      %p332 = scmp.eq.s32.totalorder %s28, 0
      %p333 = por %p331, %p332
      %p334 = scmp.le.s32.totalorder 1, %s22
      %p335 = scmp.lt.s32.totalorder %s22, 3
      %p336 = pnand %p334, %p335
      %p337 = pneg %p336
      // Predicated region
      $region9: #{tpu_custom_call.1} parent=5 // pred_check
        _
      $region10: #{tpu_custom_call.1} parent=5 // pred_check_branch
        %339 = sbr.rel (%p336) target = $region12
      $region11: #{tpu_custom_call.1} parent=5 // pred_region
        %s340 = ssub.s32 %s22, 1
        // Predicated region
        $region13: #{tpu_custom_call.1} parent=11 // pred_check
          %p341 = pneg %p69
        $region14: #{tpu_custom_call.1} parent=11 // pred_check_branch
          %343 = sbr.rel (%p341) target = $region16
        $region15: #{tpu_custom_call.1} parent=11 // pred_region
          _
        $region16: #{tpu_custom_call.1} parent=11 // pred_fallthru
          _
        // Predicated region
        $region17: #{tpu_custom_call.1} parent=11 // pred_check
          %p344 = pneg %p90
        $region18: #{tpu_custom_call.1} parent=11 // pred_check_branch
          %346 = sbr.rel (%p344) target = $region20
        $region19: #{tpu_custom_call.1} parent=11 // pred_region
          _
        $region20: #{tpu_custom_call.1} parent=11 // pred_fallthru
          _
        // Predicated region
        $region21: #{tpu_custom_call.1} parent=11 // pred_check
          %p347 = pneg %p111
        $region22: #{tpu_custom_call.1} parent=11 // pred_check_branch
          %349 = sbr.rel (%p347) target = $region24
        $region23: #{tpu_custom_call.1} parent=11 // pred_region
          _
        $region24: #{tpu_custom_call.1} parent=11 // pred_fallthru
          _
        // Predicated region
        $region25: #{tpu_custom_call.1} parent=11 // pred_check
          %p350 = pneg %p132
        $region26: #{tpu_custom_call.1} parent=11 // pred_check_branch
          %352 = sbr.rel (%p350) target = $region28
        $region27: #{tpu_custom_call.1} parent=11 // pred_region
          _
        $region28: #{tpu_custom_call.1} parent=11 // pred_fallthru
          _
        // Predicated region
        $region29: #{tpu_custom_call.1} parent=11 // pred_check
          %p353 = pneg %p153
        $region30: #{tpu_custom_call.1} parent=11 // pred_check_branch
          %355 = sbr.rel (%p353) target = $region32
        $region31: #{tpu_custom_call.1} parent=11 // pred_region
          _
        $region32: #{tpu_custom_call.1} parent=11 // pred_fallthru
          _
        // Predicated region
        $region33: #{tpu_custom_call.1} parent=11 // pred_check
          %p356 = pneg %p174
        $region34: #{tpu_custom_call.1} parent=11 // pred_check_branch
          %358 = sbr.rel (%p356) target = $region36
        $region35: #{tpu_custom_call.1} parent=11 // pred_region
          _
        $region36: #{tpu_custom_call.1} parent=11 // pred_fallthru
          _
        // Predicated region
        $region37: #{tpu_custom_call.1} parent=11 // pred_check
          %p359 = pneg %p195
        $region38: #{tpu_custom_call.1} parent=11 // pred_check_branch
          %361 = sbr.rel (%p359) target = $region40
        $region39: #{tpu_custom_call.1} parent=11 // pred_region
          _
        $region40: #{tpu_custom_call.1} parent=11 // pred_fallthru
          _
        // Predicated region
        $region41: #{tpu_custom_call.1} parent=11 // pred_check
          %p362 = pneg %p216
        $region42: #{tpu_custom_call.1} parent=11 // pred_check_branch
          %364 = sbr.rel (%p362) target = $region44
        $region43: #{tpu_custom_call.1} parent=11 // pred_region
          _
        $region44: #{tpu_custom_call.1} parent=11 // pred_fallthru
          _
        // Predicated region
        $region45: #{tpu_custom_call.1} parent=11 // pred_check
          %p365 = pneg %p237
        $region46: #{tpu_custom_call.1} parent=11 // pred_check_branch
          %367 = sbr.rel (%p365) target = $region48
        $region47: #{tpu_custom_call.1} parent=11 // pred_region
          _
        $region48: #{tpu_custom_call.1} parent=11 // pred_fallthru
          _
        // Predicated region
        $region49: #{tpu_custom_call.1} parent=11 // pred_check
          %p368 = pneg %p258
        $region50: #{tpu_custom_call.1} parent=11 // pred_check_branch
          %370 = sbr.rel (%p368) target = $region52
        $region51: #{tpu_custom_call.1} parent=11 // pred_region
          _
        $region52: #{tpu_custom_call.1} parent=11 // pred_fallthru
          _
        // Predicated region
        $region53: #{tpu_custom_call.1} parent=11 // pred_check
          %p371 = pneg %p279
        $region54: #{tpu_custom_call.1} parent=11 // pred_check_branch
          %373 = sbr.rel (%p371) target = $region56
        $region55: #{tpu_custom_call.1} parent=11 // pred_region
          _
        $region56: #{tpu_custom_call.1} parent=11 // pred_fallthru
          _
        // Predicated region
        $region57: #{tpu_custom_call.1} parent=11 // pred_check
          %p374 = pneg %p300
        $region58: #{tpu_custom_call.1} parent=11 // pred_check_branch
          %376 = sbr.rel (%p374) target = $region60
        $region59: #{tpu_custom_call.1} parent=11 // pred_region
          _
        $region60: #{tpu_custom_call.1} parent=11 // pred_fallthru
          _
      $region12: #{tpu_custom_call.1} parent=5 // pred_fallthru
        _
      %p377 = scmp.lt.s32.totalorder %s22, 2
      // Predicated region
      $region61: #{tpu_custom_call.1} parent=5 // pred_check
        %p378 = pneg %p377
      $region62: #{tpu_custom_call.1} parent=5 // pred_check_branch
        %380 = sbr.rel (%p378) target = $region64
      $region63: #{tpu_custom_call.1} parent=5 // pred_region
        // Predicated region
        $region65: #{tpu_custom_call.1} parent=63 // pred_check
          %p381 = pneg %p42
        $region66: #{tpu_custom_call.1} parent=63 // pred_check_branch
          %383 = sbr.rel (%p381) target = $region68
        $region67: #{tpu_custom_call.1} parent=63 // pred_region
          %p384 = scmp.lt.s32.totalorder %s22, 1
          %s385 = scalar_select %p384, %s22, 1
          %s386 = smul.addr %s385, 4
          %s387 = scalar_lea.vmem %s0, %s386
        $region68: #{tpu_custom_call.1} parent=63 // pred_fallthru
          _
      $region64: #{tpu_custom_call.1} parent=5 // pred_fallthru
        _
      %p388 = scmp.le.s32.totalorder 1, %s22
      %p389 = scmp.lt.s32.totalorder %s22, 3
      %p390 = pnand %p388, %p389
      %p391 = pneg %p390
      // Predicated region
      $region69: #{tpu_custom_call.1} parent=5 // pred_check
        _
      $region70: #{tpu_custom_call.1} parent=5 // pred_check_branch
        %393 = sbr.rel (%p390) target = $region72
      $region71: #{tpu_custom_call.1} parent=5 // pred_region
        %s394 = ssub.s32 %s22, 1
        %p395 = scmp.lt.s32.totalorder %s27, 1
        %s396 = scalar_select %p395, %s27, 1
        %s397 = smul.addr %s396, 4
        %s398 = scalar_lea.vmem %s0, %s397
        %p399 = pneg %p48
        %p400 = pneg %p45
        %p401 = pneg %p69
        %p402 = pneg %p66
        %p403 = pneg %p90
        %p404 = pneg %p87
        %p405 = pneg %p111
        %p406 = pneg %p108
        %p407 = pneg %p132
        %p408 = pneg %p129
        %p409 = pneg %p153
        %p410 = pneg %p150
        %p411 = pneg %p174
        %p412 = pneg %p171
        %p413 = pneg %p195
        %p414 = pneg %p192
        %p415 = pneg %p216
        %p416 = pneg %p213
        %p417 = pneg %p237
        %p418 = pneg %p234
        %p419 = pneg %p258
        %p420 = pneg %p255
        %p421 = pneg %p279
        %p422 = pneg %p276
        %p423 = pneg %p300
        %p424 = pneg %p297
        %p425 = pneg %p326
        %p426 = pneg %p323
        %s427 = sand.u32 %s313, 1
        %s428 = scalar_lea.sflag [#allocation3], %s427
        %s429 = sand.u32 %s313, 1
        %s430 = scalar_lea.vmem [#allocation2], %s429
        %p431 = scmp.lt.s32.totalorder %s27, 1
        %s432 = scalar_select %p431, %s27, 1
        %s433 = smul.addr %s432, 4
        %s434 = scalar_lea.vmem %s0, %s433
        %v436 = vld [vmem:[%s434] sm:$0xf]
        %v437 = vld [vmem:[%s1] sm:$0xf]
        %v438 = vld [vmem:[%s1 + $0x4] sm:$0xf]
        %v439 = vld [vmem:[%s2] sm:$0x7f]
        %v442 = vunpack.c.l.b16 %v437
        %v443 = vunpack.c.l.b16 %v438
        %v444 = vpack.c.b16 %v443, %v442
        %vm446 = vcmask 130048
        %v448 = vsel %vm446, %v436, 0
        %450 = vmatprep.subr.bf16.mxu0 0
        %451 = vmatpush1.bf16.msra.mxu0 0
        %452 = vmatprep.subr.bf16.mxu0 0
        %453 = vmatpush1.bf16.msra.mxu0 0
        %454 = vmatprep.subr.bf16.mxu0 0
        %455 = vmatpush1.bf16.msra.mxu0 0
        %456 = vmatprep.subr.bf16.mxu0 0
        %457 = vmatpush1.bf16.msra.mxu0 0
        %458 = vmatprep.subr.bf16.mxu0 0
        %459 = vmatpush1.bf16.msra.mxu0 0
        %460 = vmatprep.subr.bf16.mxu0 0
        %461 = vmatpush1.bf16.msra.mxu0 0
        %462 = vmatprep.subr.bf16.mxu0 0
        %463 = vmatpush1.bf16.msra.mxu0 0
        %464 = vmatprep.subr.bf16.mxu0 0
        %465 = vmatpush1.bf16.msra.mxu0 %v444
        %466 = vmatprep.subr.bf16.mxu0 0
        %467 = vmatpush2.bf16.msra.mxu0 0
        %468 = vmatprep.subr.bf16.mxu0 0
        %469 = vmatpush2.bf16.msra.mxu0 0
        %470 = vmatprep.subr.bf16.mxu0 0
        %471 = vmatpush2.bf16.msra.mxu0 0
        %472 = vmatprep.subr.bf16.mxu0 0
        %473 = vmatpush2.bf16.msra.mxu0 0
        %474 = vmatprep.subr.bf16.mxu0 0
        %475 = vmatpush2.bf16.msra.mxu0 0
        %476 = vmatprep.subr.bf16.mxu0 0
        %477 = vmatpush2.bf16.msra.mxu0 0
        %478 = vmatprep.subr.bf16.mxu0 0
        %479 = vmatpush2.bf16.msra.mxu0 0
        %480 = vmatprep.subr.bf16.mxu0 0
        %481 = vmatpush2.bf16.msra.mxu0 0
        %482 = vmatprep.mubr.bf16.mxu0 0
        %483 = vmatmul.mubr.bf16.gmra.mxu0 %v448
        %v484 = vpop.f32.mrf.mxu0
        %v485 = vadd.f32 %v439, %v484
        %v486 = vpop.f32.mrf.mxu0
        %v487 = vpop.f32.mrf.mxu0
        %v488 = vpop.f32.mrf.mxu0
        %489 = vdwg.mxu0
        %v490 = vld [vmem:[%s8] sm:$0xff]
        %v491 = vpack.c.bf16 %v485, %v485
        %v492 = vld [vmem:[%s3] sm:$0xf]
        %v493 = vld [vmem:[%s3 + $0x4] sm:$0xf]
        %v494 = vld [vmem:[%s3 + $0x8] sm:$0xf]
        %v495 = vld [vmem:[%s3 + $0xc] sm:$0xf]
        %v496 = vld [vmem:[%s3 + $0x10] sm:$0xf]
        %v497 = vld [vmem:[%s3 + $0x14] sm:$0xf]
        %v498 = vld [vmem:[%s3 + $0x18] sm:$0xf]
        %v499 = vld [vmem:[%s3 + $0x1c] sm:$0xf]
        %v500 = vld [vmem:[%s3 + $0x20] sm:$0xf]
        %v501 = vld [vmem:[%s3 + $0x24] sm:$0xf]
        %v502 = vld [vmem:[%s3 + $0x28] sm:$0xf]
        %v503 = vld [vmem:[%s3 + $0x2c] sm:$0xf]
        %v504 = vld [vmem:[%s3 + $0x30] sm:$0xf]
        %v505 = vld [vmem:[%s3 + $0x34] sm:$0xf]
        %v506 = vld [vmem:[%s3 + $0x38] sm:$0xf]
        %v507 = vld [vmem:[%s3 + $0x3c] sm:$0xf]
        %v508 = vld [vmem:[%s3 + $0x40] sm:$0xf]
        %v509 = vld [vmem:[%s3 + $0x44] sm:$0xf]
        %v510 = vld [vmem:[%s3 + $0x48] sm:$0xf]
        %v511 = vld [vmem:[%s3 + $0x4c] sm:$0xf]
        %v512 = vld [vmem:[%s3 + $0x50] sm:$0xf]
        %v513 = vld [vmem:[%s3 + $0x54] sm:$0xf]
        %v514 = vld [vmem:[%s3 + $0x58] sm:$0xf]
        %v515 = vld [vmem:[%s3 + $0x5c] sm:$0xf]
        %v516 = vld [vmem:[%s3 + $0x60] sm:$0xf]
        %v517 = vld [vmem:[%s3 + $0x64] sm:$0xf]
        %v518 = vld [vmem:[%s3 + $0x68] sm:$0xf]
        %v519 = vld [vmem:[%s3 + $0x6c] sm:$0xf]
        %v520 = vld [vmem:[%s3 + $0x70] sm:$0xf]
        %v521 = vld [vmem:[%s3 + $0x74] sm:$0xf]
        %v522 = vld [vmem:[%s3 + $0x78] sm:$0xf]
        %v523 = vld [vmem:[%s3 + $0x7c] sm:$0xf]
        %v524 = vld [vmem:[%s3 + $0x80] sm:$0xf]
        %v525 = vld [vmem:[%s3 + $0x84] sm:$0xf]
        %v526 = vld [vmem:[%s3 + $0x88] sm:$0xf]
        %v527 = vld [vmem:[%s3 + $0x8c] sm:$0xf]
        %v528 = vld [vmem:[%s3 + $0x90] sm:$0xf]
        %v529 = vld [vmem:[%s3 + $0x94] sm:$0xf]
        %v530 = vld [vmem:[%s3 + $0x98] sm:$0xf]
        %v531 = vld [vmem:[%s3 + $0x9c] sm:$0xf]
        %v532 = vld [vmem:[%s3 + $0xa0] sm:$0xf]
        %v533 = vld [vmem:[%s3 + $0xa4] sm:$0xf]
        %v534 = vld [vmem:[%s3 + $0xa8] sm:$0xf]
        %v535 = vld [vmem:[%s3 + $0xac] sm:$0xf]
        %v536 = vld [vmem:[%s3 + $0xb0] sm:$0xf]
        %v537 = vld [vmem:[%s3 + $0xb4] sm:$0xf]
        %v538 = vld [vmem:[%s3 + $0xb8] sm:$0xf]
        %v539 = vld [vmem:[%s3 + $0xbc] sm:$0xf]
        %v540 = vld [vmem:[%s4] sm:$0x1]
        %v541 = vld [vmem:[%s4 + $0x1] sm:$0x1]
        %v542 = vld [vmem:[%s4 + $0x2] sm:$0x1]
        %v543 = vld [vmem:[%s4 + $0x3] sm:$0x1]
        %v544 = vld [vmem:[%s4 + $0x4] sm:$0x1]
        %v545 = vld [vmem:[%s4 + $0x5] sm:$0x1]
        %v546 = vld [vmem:[%s4 + $0x6] sm:$0x1]
        %v547 = vld [vmem:[%s4 + $0x7] sm:$0x1]
        %v548 = vld [vmem:[%s4 + $0x8] sm:$0x1]
        %v549 = vld [vmem:[%s4 + $0x9] sm:$0x1]
        %v550 = vld [vmem:[%s4 + $0xa] sm:$0x1]
        %v551 = vld [vmem:[%s4 + $0xb] sm:$0x1]
        %v564 = vlaneseq
        %v565 = vshrl.u32 %v564, 7
        %v566 = vsub.s32 0, %v565
        %v567 = vrot.slane %v540, %v566
        %v568 = vlaneseq
        %v569 = vshrl.u32 %v568, 7
        %v570 = vsub.s32 0, %v569
        %v571 = vrot.slane %v541, %v570
        %v572 = vlaneseq
        %v573 = vshrl.u32 %v572, 7
        %v574 = vsub.s32 0, %v573
        %v575 = vrot.slane %v542, %v574
        %v576 = vlaneseq
        %v577 = vshrl.u32 %v576, 7
        %v578 = vsub.s32 0, %v577
        %v579 = vrot.slane %v543, %v578
        %v580 = vlaneseq
        %v581 = vshrl.u32 %v580, 7
        %v582 = vsub.s32 0, %v581
        %v583 = vrot.slane %v544, %v582
        %v584 = vlaneseq
        %v585 = vshrl.u32 %v584, 7
        %v586 = vsub.s32 0, %v585
        %v587 = vrot.slane %v545, %v586
        %v588 = vlaneseq
        %v589 = vshrl.u32 %v588, 7
        %v590 = vsub.s32 0, %v589
        %v591 = vrot.slane %v546, %v590
        %v592 = vlaneseq
        %v593 = vshrl.u32 %v592, 7
        %v594 = vsub.s32 0, %v593
        %v595 = vrot.slane %v547, %v594
        %v596 = vlaneseq
        %v597 = vshrl.u32 %v596, 7
        %v598 = vsub.s32 0, %v597
        %v599 = vrot.slane %v548, %v598
        %v600 = vlaneseq
        %v601 = vshrl.u32 %v600, 7
        %v602 = vsub.s32 0, %v601
        %v603 = vrot.slane %v549, %v602
        %v604 = vlaneseq
        %v605 = vshrl.u32 %v604, 7
        %v606 = vsub.s32 0, %v605
        %v607 = vrot.slane %v550, %v606
        %v608 = vlaneseq
        %v609 = vshrl.u32 %v608, 7
        %v610 = vsub.s32 0, %v609
        %v611 = vrot.slane %v551, %v610
        %v628 = vunpack.c.l.b16 %v492
        %v629 = vunpack.c.l.b16 %v493
        %v630 = vunpack.c.l.b16 %v494
        %v631 = vunpack.c.l.b16 %v495
        %v632 = vpack.c.b16 %v629, %v628
        %v633 = vpack.c.b16 %v631, %v630
        %vm636 = vcmask 261120
        %v638 = vsel %vm636, %v491, 0
        %640 = vmatprep.subr.bf16.mxu0 0
        %641 = vmatpush1.bf16.msra.mxu0 0
        %642 = vmatprep.subr.bf16.mxu0 0
        %643 = vmatpush1.bf16.msra.mxu0 0
        %644 = vmatprep.subr.bf16.mxu0 0
        %645 = vmatpush1.bf16.msra.mxu0 0
        %646 = vmatprep.subr.bf16.mxu0 0
        %647 = vmatpush1.bf16.msra.mxu0 0
        %648 = vmatprep.subr.bf16.mxu0 0
        %649 = vmatpush1.bf16.msra.mxu0 0
        %650 = vmatprep.subr.bf16.mxu0 0
        %651 = vmatpush1.bf16.msra.mxu0 0
        %652 = vmatprep.subr.bf16.mxu0 0
        %653 = vmatpush1.bf16.msra.mxu0 %v633
        %654 = vmatprep.subr.bf16.mxu0 0
        %655 = vmatpush1.bf16.msra.mxu0 %v632
        %656 = vmatprep.subr.bf16.mxu0 0
        %657 = vmatpush2.bf16.msra.mxu0 0
        %658 = vmatprep.subr.bf16.mxu0 0
        %659 = vmatpush2.bf16.msra.mxu0 0
        %660 = vmatprep.subr.bf16.mxu0 0
        %661 = vmatpush2.bf16.msra.mxu0 0
        %662 = vmatprep.subr.bf16.mxu0 0
        %663 = vmatpush2.bf16.msra.mxu0 0
        %664 = vmatprep.subr.bf16.mxu0 0
        %665 = vmatpush2.bf16.msra.mxu0 0
        %666 = vmatprep.subr.bf16.mxu0 0
        %667 = vmatpush2.bf16.msra.mxu0 0
        %668 = vmatprep.subr.bf16.mxu0 0
        %669 = vmatpush2.bf16.msra.mxu0 0
        %670 = vmatprep.subr.bf16.mxu0 0
        %671 = vmatpush2.bf16.msra.mxu0 0
        %672 = vmatprep.mubr.bf16.mxu0 0
        %673 = vmatmul.mubr.bf16.gmra.mxu0 %v638
        %v674 = vpop.f32.mrf.mxu0
        %v675 = vadd.f32 %v567, %v674
        %v676 = vpop.f32.mrf.mxu0
        %v677 = vpop.f32.mrf.mxu0
        %v678 = vpop.f32.mrf.mxu0
        %679 = vdwg.mxu0
        %v684 = vunpack.c.l.b16 %v496
        %v685 = vunpack.c.l.b16 %v497
        %v686 = vunpack.c.l.b16 %v498
        %v687 = vunpack.c.l.b16 %v499
        %v688 = vpack.c.b16 %v685, %v684
        %v689 = vpack.c.b16 %v687, %v686
        %692 = vmatprep.subr.bf16.mxu0 0
        %693 = vmatpush1.bf16.msra.mxu0 0
        %694 = vmatprep.subr.bf16.mxu0 0
        %695 = vmatpush1.bf16.msra.mxu0 0
        %696 = vmatprep.subr.bf16.mxu0 0
        %697 = vmatpush1.bf16.msra.mxu0 0
        %698 = vmatprep.subr.bf16.mxu0 0
        %699 = vmatpush1.bf16.msra.mxu0 0
        %700 = vmatprep.subr.bf16.mxu0 0
        %701 = vmatpush1.bf16.msra.mxu0 0
        %702 = vmatprep.subr.bf16.mxu0 0
        %703 = vmatpush1.bf16.msra.mxu0 0
        %704 = vmatprep.subr.bf16.mxu0 0
        %705 = vmatpush1.bf16.msra.mxu0 %v689
        %706 = vmatprep.subr.bf16.mxu0 0
        %707 = vmatpush1.bf16.msra.mxu0 %v688
        %708 = vmatprep.subr.bf16.mxu0 0
        %709 = vmatpush2.bf16.msra.mxu0 0
        %710 = vmatprep.subr.bf16.mxu0 0
        %711 = vmatpush2.bf16.msra.mxu0 0
        %712 = vmatprep.subr.bf16.mxu0 0
        %713 = vmatpush2.bf16.msra.mxu0 0
        %714 = vmatprep.subr.bf16.mxu0 0
        %715 = vmatpush2.bf16.msra.mxu0 0
        %716 = vmatprep.subr.bf16.mxu0 0
        %717 = vmatpush2.bf16.msra.mxu0 0
        %718 = vmatprep.subr.bf16.mxu0 0
        %719 = vmatpush2.bf16.msra.mxu0 0
        %720 = vmatprep.subr.bf16.mxu0 0
        %721 = vmatpush2.bf16.msra.mxu0 0
        %722 = vmatprep.subr.bf16.mxu0 0
        %723 = vmatpush2.bf16.msra.mxu0 0
        %724 = vmatprep.mubr.bf16.mxu0 0
        %725 = vmatmul.mubr.bf16.gmra.mxu0 %v638
        %v726 = vpop.f32.mrf.mxu0
        %v727 = vadd.f32 %v571, %v726
        %v728 = vpop.f32.mrf.mxu0
        %v729 = vpop.f32.mrf.mxu0
        %v730 = vpop.f32.mrf.mxu0
        %731 = vdwg.mxu0
        %v736 = vunpack.c.l.b16 %v500
        %v737 = vunpack.c.l.b16 %v501
        %v738 = vunpack.c.l.b16 %v502
        %v739 = vunpack.c.l.b16 %v503
        %v740 = vpack.c.b16 %v737, %v736
        %v741 = vpack.c.b16 %v739, %v738
        %744 = vmatprep.subr.bf16.mxu0 0
        %745 = vmatpush1.bf16.msra.mxu0 0
        %746 = vmatprep.subr.bf16.mxu0 0
        %747 = vmatpush1.bf16.msra.mxu0 0
        %748 = vmatprep.subr.bf16.mxu0 0
        %749 = vmatpush1.bf16.msra.mxu0 0
        %750 = vmatprep.subr.bf16.mxu0 0
        %751 = vmatpush1.bf16.msra.mxu0 0
        %752 = vmatprep.subr.bf16.mxu0 0
        %753 = vmatpush1.bf16.msra.mxu0 0
        %754 = vmatprep.subr.bf16.mxu0 0
        %755 = vmatpush1.bf16.msra.mxu0 0
        %756 = vmatprep.subr.bf16.mxu0 0
        %757 = vmatpush1.bf16.msra.mxu0 %v741
        %758 = vmatprep.subr.bf16.mxu0 0
        %759 = vmatpush1.bf16.msra.mxu0 %v740
        %760 = vmatprep.subr.bf16.mxu0 0
        %761 = vmatpush2.bf16.msra.mxu0 0
        %762 = vmatprep.subr.bf16.mxu0 0
        %763 = vmatpush2.bf16.msra.mxu0 0
        %764 = vmatprep.subr.bf16.mxu0 0
        %765 = vmatpush2.bf16.msra.mxu0 0
        %766 = vmatprep.subr.bf16.mxu0 0
        %767 = vmatpush2.bf16.msra.mxu0 0
        %768 = vmatprep.subr.bf16.mxu0 0
        %769 = vmatpush2.bf16.msra.mxu0 0
        %770 = vmatprep.subr.bf16.mxu0 0
        %771 = vmatpush2.bf16.msra.mxu0 0
        %772 = vmatprep.subr.bf16.mxu0 0
        %773 = vmatpush2.bf16.msra.mxu0 0
        %774 = vmatprep.subr.bf16.mxu0 0
        %775 = vmatpush2.bf16.msra.mxu0 0
        %776 = vmatprep.mubr.bf16.mxu0 0
        %777 = vmatmul.mubr.bf16.gmra.mxu0 %v638
        %v778 = vpop.f32.mrf.mxu0
        %v779 = vadd.f32 %v575, %v778
        %v780 = vpop.f32.mrf.mxu0
        %v781 = vpop.f32.mrf.mxu0
        %v782 = vpop.f32.mrf.mxu0
        %783 = vdwg.mxu0
        %v788 = vunpack.c.l.b16 %v504
        %v789 = vunpack.c.l.b16 %v505
        %v790 = vunpack.c.l.b16 %v506
        %v791 = vunpack.c.l.b16 %v507
        %v792 = vpack.c.b16 %v789, %v788
        %v793 = vpack.c.b16 %v791, %v790
        %796 = vmatprep.subr.bf16.mxu0 0
        %797 = vmatpush1.bf16.msra.mxu0 0
        %798 = vmatprep.subr.bf16.mxu0 0
        %799 = vmatpush1.bf16.msra.mxu0 0
        %800 = vmatprep.subr.bf16.mxu0 0
        %801 = vmatpush1.bf16.msra.mxu0 0
        %802 = vmatprep.subr.bf16.mxu0 0
        %803 = vmatpush1.bf16.msra.mxu0 0
        %804 = vmatprep.subr.bf16.mxu0 0
        %805 = vmatpush1.bf16.msra.mxu0 0
        %806 = vmatprep.subr.bf16.mxu0 0
        %807 = vmatpush1.bf16.msra.mxu0 0
        %808 = vmatprep.subr.bf16.mxu0 0
        %809 = vmatpush1.bf16.msra.mxu0 %v793
        %810 = vmatprep.subr.bf16.mxu0 0
        %811 = vmatpush1.bf16.msra.mxu0 %v792
        %812 = vmatprep.subr.bf16.mxu0 0
        %813 = vmatpush2.bf16.msra.mxu0 0
        %814 = vmatprep.subr.bf16.mxu0 0
        %815 = vmatpush2.bf16.msra.mxu0 0
        %816 = vmatprep.subr.bf16.mxu0 0
        %817 = vmatpush2.bf16.msra.mxu0 0
        %818 = vmatprep.subr.bf16.mxu0 0
        %819 = vmatpush2.bf16.msra.mxu0 0
        %820 = vmatprep.subr.bf16.mxu0 0
        %821 = vmatpush2.bf16.msra.mxu0 0
        %822 = vmatprep.subr.bf16.mxu0 0
        %823 = vmatpush2.bf16.msra.mxu0 0
        %824 = vmatprep.subr.bf16.mxu0 0
        %825 = vmatpush2.bf16.msra.mxu0 0
        %826 = vmatprep.subr.bf16.mxu0 0
        %827 = vmatpush2.bf16.msra.mxu0 0
        %828 = vmatprep.mubr.bf16.mxu0 0
        %829 = vmatmul.mubr.bf16.gmra.mxu0 %v638
        %v830 = vpop.f32.mrf.mxu0
        %v831 = vadd.f32 %v579, %v830
        %v832 = vpop.f32.mrf.mxu0
        %v833 = vpop.f32.mrf.mxu0
        %v834 = vpop.f32.mrf.mxu0
        %835 = vdwg.mxu0
        %v840 = vunpack.c.l.b16 %v508
        %v841 = vunpack.c.l.b16 %v509
        %v842 = vunpack.c.l.b16 %v510
        %v843 = vunpack.c.l.b16 %v511
        %v844 = vpack.c.b16 %v841, %v840
        %v845 = vpack.c.b16 %v843, %v842
        %848 = vmatprep.subr.bf16.mxu0 0
        %849 = vmatpush1.bf16.msra.mxu0 0
        %850 = vmatprep.subr.bf16.mxu0 0
        %851 = vmatpush1.bf16.msra.mxu0 0
        %852 = vmatprep.subr.bf16.mxu0 0
        %853 = vmatpush1.bf16.msra.mxu0 0
        %854 = vmatprep.subr.bf16.mxu0 0
        %855 = vmatpush1.bf16.msra.mxu0 0
        %856 = vmatprep.subr.bf16.mxu0 0
        %857 = vmatpush1.bf16.msra.mxu0 0
        %858 = vmatprep.subr.bf16.mxu0 0
        %859 = vmatpush1.bf16.msra.mxu0 0
        %860 = vmatprep.subr.bf16.mxu0 0
        %861 = vmatpush1.bf16.msra.mxu0 %v845
        %862 = vmatprep.subr.bf16.mxu0 0
        %863 = vmatpush1.bf16.msra.mxu0 %v844
        %864 = vmatprep.subr.bf16.mxu0 0
        %865 = vmatpush2.bf16.msra.mxu0 0
        %866 = vmatprep.subr.bf16.mxu0 0
        %867 = vmatpush2.bf16.msra.mxu0 0
        %868 = vmatprep.subr.bf16.mxu0 0
        %869 = vmatpush2.bf16.msra.mxu0 0
        %870 = vmatprep.subr.bf16.mxu0 0
        %871 = vmatpush2.bf16.msra.mxu0 0
        %872 = vmatprep.subr.bf16.mxu0 0
        %873 = vmatpush2.bf16.msra.mxu0 0
        %874 = vmatprep.subr.bf16.mxu0 0
        %875 = vmatpush2.bf16.msra.mxu0 0
        %876 = vmatprep.subr.bf16.mxu0 0
        %877 = vmatpush2.bf16.msra.mxu0 0
        %878 = vmatprep.subr.bf16.mxu0 0
        %879 = vmatpush2.bf16.msra.mxu0 0
        %880 = vmatprep.mubr.bf16.mxu0 0
        %881 = vmatmul.mubr.bf16.gmra.mxu0 %v638
        %v882 = vpop.f32.mrf.mxu0
        %v883 = vadd.f32 %v583, %v882
        %v884 = vpop.f32.mrf.mxu0
        %v885 = vpop.f32.mrf.mxu0
        %v886 = vpop.f32.mrf.mxu0
        %887 = vdwg.mxu0
        %v892 = vunpack.c.l.b16 %v512
        %v893 = vunpack.c.l.b16 %v513
        %v894 = vunpack.c.l.b16 %v514
        %v895 = vunpack.c.l.b16 %v515
        %v896 = vpack.c.b16 %v893, %v892
        %v897 = vpack.c.b16 %v895, %v894
        %900 = vmatprep.subr.bf16.mxu0 0
        %901 = vmatpush1.bf16.msra.mxu0 0
        %902 = vmatprep.subr.bf16.mxu0 0
        %903 = vmatpush1.bf16.msra.mxu0 0
        %904 = vmatprep.subr.bf16.mxu0 0
        %905 = vmatpush1.bf16.msra.mxu0 0
        %906 = vmatprep.subr.bf16.mxu0 0
        %907 = vmatpush1.bf16.msra.mxu0 0
        %908 = vmatprep.subr.bf16.mxu0 0
        %909 = vmatpush1.bf16.msra.mxu0 0
        %910 = vmatprep.subr.bf16.mxu0 0
        %911 = vmatpush1.bf16.msra.mxu0 0
        %912 = vmatprep.subr.bf16.mxu0 0
        %913 = vmatpush1.bf16.msra.mxu0 %v897
        %914 = vmatprep.subr.bf16.mxu0 0
        %915 = vmatpush1.bf16.msra.mxu0 %v896
        %916 = vmatprep.subr.bf16.mxu0 0
        %917 = vmatpush2.bf16.msra.mxu0 0
        %918 = vmatprep.subr.bf16.mxu0 0
        %919 = vmatpush2.bf16.msra.mxu0 0
        %920 = vmatprep.subr.bf16.mxu0 0
        %921 = vmatpush2.bf16.msra.mxu0 0
        %922 = vmatprep.subr.bf16.mxu0 0
        %923 = vmatpush2.bf16.msra.mxu0 0
        %924 = vmatprep.subr.bf16.mxu0 0
        %925 = vmatpush2.bf16.msra.mxu0 0
        %926 = vmatprep.subr.bf16.mxu0 0
        %927 = vmatpush2.bf16.msra.mxu0 0
        %928 = vmatprep.subr.bf16.mxu0 0
        %929 = vmatpush2.bf16.msra.mxu0 0
        %930 = vmatprep.subr.bf16.mxu0 0
        %931 = vmatpush2.bf16.msra.mxu0 0
        %932 = vmatprep.mubr.bf16.mxu0 0
        %933 = vmatmul.mubr.bf16.gmra.mxu0 %v638
        %v934 = vpop.f32.mrf.mxu0
        %v935 = vadd.f32 %v587, %v934
        %v936 = vpop.f32.mrf.mxu0
        %v937 = vpop.f32.mrf.mxu0
        %v938 = vpop.f32.mrf.mxu0
        %939 = vdwg.mxu0
        %v944 = vunpack.c.l.b16 %v516
        %v945 = vunpack.c.l.b16 %v517
        %v946 = vunpack.c.l.b16 %v518
        %v947 = vunpack.c.l.b16 %v519
        %v948 = vpack.c.b16 %v945, %v944
        %v949 = vpack.c.b16 %v947, %v946
        %952 = vmatprep.subr.bf16.mxu0 0
        %953 = vmatpush1.bf16.msra.mxu0 0
        %954 = vmatprep.subr.bf16.mxu0 0
        %955 = vmatpush1.bf16.msra.mxu0 0
        %956 = vmatprep.subr.bf16.mxu0 0
        %957 = vmatpush1.bf16.msra.mxu0 0
        %958 = vmatprep.subr.bf16.mxu0 0
        %959 = vmatpush1.bf16.msra.mxu0 0
        %960 = vmatprep.subr.bf16.mxu0 0
        %961 = vmatpush1.bf16.msra.mxu0 0
        %962 = vmatprep.subr.bf16.mxu0 0
        %963 = vmatpush1.bf16.msra.mxu0 0
        %964 = vmatprep.subr.bf16.mxu0 0
        %965 = vmatpush1.bf16.msra.mxu0 %v949
        %966 = vmatprep.subr.bf16.mxu0 0
        %967 = vmatpush1.bf16.msra.mxu0 %v948
        %968 = vmatprep.subr.bf16.mxu0 0
        %969 = vmatpush2.bf16.msra.mxu0 0
        %970 = vmatprep.subr.bf16.mxu0 0
        %971 = vmatpush2.bf16.msra.mxu0 0
        %972 = vmatprep.subr.bf16.mxu0 0
        %973 = vmatpush2.bf16.msra.mxu0 0
        %974 = vmatprep.subr.bf16.mxu0 0
        %975 = vmatpush2.bf16.msra.mxu0 0
        %976 = vmatprep.subr.bf16.mxu0 0
        %977 = vmatpush2.bf16.msra.mxu0 0
        %978 = vmatprep.subr.bf16.mxu0 0
        %979 = vmatpush2.bf16.msra.mxu0 0
        %980 = vmatprep.subr.bf16.mxu0 0
        %981 = vmatpush2.bf16.msra.mxu0 0
        %982 = vmatprep.subr.bf16.mxu0 0
        %983 = vmatpush2.bf16.msra.mxu0 0
        %984 = vmatprep.mubr.bf16.mxu0 0
        %985 = vmatmul.mubr.bf16.gmra.mxu0 %v638
        %v986 = vpop.f32.mrf.mxu0
        %v987 = vadd.f32 %v591, %v986
        %v988 = vpop.f32.mrf.mxu0
        %v989 = vpop.f32.mrf.mxu0
        %v990 = vpop.f32.mrf.mxu0
        %991 = vdwg.mxu0
        %v996 = vunpack.c.l.b16 %v520
        %v997 = vunpack.c.l.b16 %v521
        %v998 = vunpack.c.l.b16 %v522
        %v999 = vunpack.c.l.b16 %v523
        %v1000 = vpack.c.b16 %v997, %v996
        %v1001 = vpack.c.b16 %v999, %v998
        %1004 = vmatprep.subr.bf16.mxu0 0
        %1005 = vmatpush1.bf16.msra.mxu0 0
        %1006 = vmatprep.subr.bf16.mxu0 0
        %1007 = vmatpush1.bf16.msra.mxu0 0
        %1008 = vmatprep.subr.bf16.mxu0 0
        %1009 = vmatpush1.bf16.msra.mxu0 0
        %1010 = vmatprep.subr.bf16.mxu0 0
        %1011 = vmatpush1.bf16.msra.mxu0 0
        %1012 = vmatprep.subr.bf16.mxu0 0
        %1013 = vmatpush1.bf16.msra.mxu0 0
        %1014 = vmatprep.subr.bf16.mxu0 0
        %1015 = vmatpush1.bf16.msra.mxu0 0
        %1016 = vmatprep.subr.bf16.mxu0 0
        %1017 = vmatpush1.bf16.msra.mxu0 %v1001
        %1018 = vmatprep.subr.bf16.mxu0 0
        %1019 = vmatpush1.bf16.msra.mxu0 %v1000
        %1020 = vmatprep.subr.bf16.mxu0 0
        %1021 = vmatpush2.bf16.msra.mxu0 0
        %1022 = vmatprep.subr.bf16.mxu0 0
        %1023 = vmatpush2.bf16.msra.mxu0 0
        %1024 = vmatprep.subr.bf16.mxu0 0
        %1025 = vmatpush2.bf16.msra.mxu0 0
        %1026 = vmatprep.subr.bf16.mxu0 0
        %1027 = vmatpush2.bf16.msra.mxu0 0
        %1028 = vmatprep.subr.bf16.mxu0 0
        %1029 = vmatpush2.bf16.msra.mxu0 0
        %1030 = vmatprep.subr.bf16.mxu0 0
        %1031 = vmatpush2.bf16.msra.mxu0 0
        %1032 = vmatprep.subr.bf16.mxu0 0
        %1033 = vmatpush2.bf16.msra.mxu0 0
        %1034 = vmatprep.subr.bf16.mxu0 0
        %1035 = vmatpush2.bf16.msra.mxu0 0
        %1036 = vmatprep.mubr.bf16.mxu0 0
        %1037 = vmatmul.mubr.bf16.gmra.mxu0 %v638
        %v1038 = vpop.f32.mrf.mxu0
        %v1039 = vadd.f32 %v595, %v1038
        %v1040 = vpop.f32.mrf.mxu0
        %v1041 = vpop.f32.mrf.mxu0
        %v1042 = vpop.f32.mrf.mxu0
        %1043 = vdwg.mxu0
        %v1048 = vunpack.c.l.b16 %v524
        %v1049 = vunpack.c.l.b16 %v525
        %v1050 = vunpack.c.l.b16 %v526
        %v1051 = vunpack.c.l.b16 %v527
        %v1052 = vpack.c.b16 %v1049, %v1048
        %v1053 = vpack.c.b16 %v1051, %v1050
        %1056 = vmatprep.subr.bf16.mxu0 0
        %1057 = vmatpush1.bf16.msra.mxu0 0
        %1058 = vmatprep.subr.bf16.mxu0 0
        %1059 = vmatpush1.bf16.msra.mxu0 0
        %1060 = vmatprep.subr.bf16.mxu0 0
        %1061 = vmatpush1.bf16.msra.mxu0 0
        %1062 = vmatprep.subr.bf16.mxu0 0
        %1063 = vmatpush1.bf16.msra.mxu0 0
        %1064 = vmatprep.subr.bf16.mxu0 0
        %1065 = vmatpush1.bf16.msra.mxu0 0
        %1066 = vmatprep.subr.bf16.mxu0 0
        %1067 = vmatpush1.bf16.msra.mxu0 0
        %1068 = vmatprep.subr.bf16.mxu0 0
        %1069 = vmatpush1.bf16.msra.mxu0 %v1053
        %1070 = vmatprep.subr.bf16.mxu0 0
        %1071 = vmatpush1.bf16.msra.mxu0 %v1052
        %1072 = vmatprep.subr.bf16.mxu0 0
        %1073 = vmatpush2.bf16.msra.mxu0 0
        %1074 = vmatprep.subr.bf16.mxu0 0
        %1075 = vmatpush2.bf16.msra.mxu0 0
        %1076 = vmatprep.subr.bf16.mxu0 0
        %1077 = vmatpush2.bf16.msra.mxu0 0
        %1078 = vmatprep.subr.bf16.mxu0 0
        %1079 = vmatpush2.bf16.msra.mxu0 0
        %1080 = vmatprep.subr.bf16.mxu0 0
        %1081 = vmatpush2.bf16.msra.mxu0 0
        %1082 = vmatprep.subr.bf16.mxu0 0
        %1083 = vmatpush2.bf16.msra.mxu0 0
        %1084 = vmatprep.subr.bf16.mxu0 0
        %1085 = vmatpush2.bf16.msra.mxu0 0
        %1086 = vmatprep.subr.bf16.mxu0 0
        %1087 = vmatpush2.bf16.msra.mxu0 0
        %1088 = vmatprep.mubr.bf16.mxu0 0
        %1089 = vmatmul.mubr.bf16.gmra.mxu0 %v638
        %v1090 = vpop.f32.mrf.mxu0
        %v1091 = vadd.f32 %v599, %v1090
        %v1092 = vpop.f32.mrf.mxu0
        %v1093 = vpop.f32.mrf.mxu0
        %v1094 = vpop.f32.mrf.mxu0
        %1095 = vdwg.mxu0
        %v1100 = vunpack.c.l.b16 %v528
        %v1101 = vunpack.c.l.b16 %v529
        %v1102 = vunpack.c.l.b16 %v530
        %v1103 = vunpack.c.l.b16 %v531
        %v1104 = vpack.c.b16 %v1101, %v1100
        %v1105 = vpack.c.b16 %v1103, %v1102
        %1108 = vmatprep.subr.bf16.mxu0 0
        %1109 = vmatpush1.bf16.msra.mxu0 0
        %1110 = vmatprep.subr.bf16.mxu0 0
        %1111 = vmatpush1.bf16.msra.mxu0 0
        %1112 = vmatprep.subr.bf16.mxu0 0
        %1113 = vmatpush1.bf16.msra.mxu0 0
        %1114 = vmatprep.subr.bf16.mxu0 0
        %1115 = vmatpush1.bf16.msra.mxu0 0
        %1116 = vmatprep.subr.bf16.mxu0 0
        %1117 = vmatpush1.bf16.msra.mxu0 0
        %1118 = vmatprep.subr.bf16.mxu0 0
        %1119 = vmatpush1.bf16.msra.mxu0 0
        %1120 = vmatprep.subr.bf16.mxu0 0
        %1121 = vmatpush1.bf16.msra.mxu0 %v1105
        %1122 = vmatprep.subr.bf16.mxu0 0
        %1123 = vmatpush1.bf16.msra.mxu0 %v1104
        %1124 = vmatprep.subr.bf16.mxu0 0
        %1125 = vmatpush2.bf16.msra.mxu0 0
        %1126 = vmatprep.subr.bf16.mxu0 0
        %1127 = vmatpush2.bf16.msra.mxu0 0
        %1128 = vmatprep.subr.bf16.mxu0 0
        %1129 = vmatpush2.bf16.msra.mxu0 0
        %1130 = vmatprep.subr.bf16.mxu0 0
        %1131 = vmatpush2.bf16.msra.mxu0 0
        %1132 = vmatprep.subr.bf16.mxu0 0
        %1133 = vmatpush2.bf16.msra.mxu0 0
        %1134 = vmatprep.subr.bf16.mxu0 0
        %1135 = vmatpush2.bf16.msra.mxu0 0
        %1136 = vmatprep.subr.bf16.mxu0 0
        %1137 = vmatpush2.bf16.msra.mxu0 0
        %1138 = vmatprep.subr.bf16.mxu0 0
        %1139 = vmatpush2.bf16.msra.mxu0 0
        %1140 = vmatprep.mubr.bf16.mxu0 0
        %1141 = vmatmul.mubr.bf16.gmra.mxu0 %v638
        %v1142 = vpop.f32.mrf.mxu0
        %v1143 = vadd.f32 %v603, %v1142
        %v1144 = vpop.f32.mrf.mxu0
        %v1145 = vpop.f32.mrf.mxu0
        %v1146 = vpop.f32.mrf.mxu0
        %1147 = vdwg.mxu0
        %v1152 = vunpack.c.l.b16 %v532
        %v1153 = vunpack.c.l.b16 %v533
        %v1154 = vunpack.c.l.b16 %v534
        %v1155 = vunpack.c.l.b16 %v535
        %v1156 = vpack.c.b16 %v1153, %v1152
        %v1157 = vpack.c.b16 %v1155, %v1154
        %1160 = vmatprep.subr.bf16.mxu0 0
        %1161 = vmatpush1.bf16.msra.mxu0 0
        %1162 = vmatprep.subr.bf16.mxu0 0
        %1163 = vmatpush1.bf16.msra.mxu0 0
        %1164 = vmatprep.subr.bf16.mxu0 0
        %1165 = vmatpush1.bf16.msra.mxu0 0
        %1166 = vmatprep.subr.bf16.mxu0 0
        %1167 = vmatpush1.bf16.msra.mxu0 0
        %1168 = vmatprep.subr.bf16.mxu0 0
        %1169 = vmatpush1.bf16.msra.mxu0 0
        %1170 = vmatprep.subr.bf16.mxu0 0
        %1171 = vmatpush1.bf16.msra.mxu0 0
        %1172 = vmatprep.subr.bf16.mxu0 0
        %1173 = vmatpush1.bf16.msra.mxu0 %v1157
        %1174 = vmatprep.subr.bf16.mxu0 0
        %1175 = vmatpush1.bf16.msra.mxu0 %v1156
        %1176 = vmatprep.subr.bf16.mxu0 0
        %1177 = vmatpush2.bf16.msra.mxu0 0
        %1178 = vmatprep.subr.bf16.mxu0 0
        %1179 = vmatpush2.bf16.msra.mxu0 0
        %1180 = vmatprep.subr.bf16.mxu0 0
        %1181 = vmatpush2.bf16.msra.mxu0 0
        %1182 = vmatprep.subr.bf16.mxu0 0
        %1183 = vmatpush2.bf16.msra.mxu0 0
        %1184 = vmatprep.subr.bf16.mxu0 0
        %1185 = vmatpush2.bf16.msra.mxu0 0
        %1186 = vmatprep.subr.bf16.mxu0 0
        %1187 = vmatpush2.bf16.msra.mxu0 0
        %1188 = vmatprep.subr.bf16.mxu0 0
        %1189 = vmatpush2.bf16.msra.mxu0 0
        %1190 = vmatprep.subr.bf16.mxu0 0
        %1191 = vmatpush2.bf16.msra.mxu0 0
        %1192 = vmatprep.mubr.bf16.mxu0 0
        %1193 = vmatmul.mubr.bf16.gmra.mxu0 %v638
        %v1194 = vpop.f32.mrf.mxu0
        %v1195 = vadd.f32 %v607, %v1194
        %v1196 = vpop.f32.mrf.mxu0
        %v1197 = vpop.f32.mrf.mxu0
        %v1198 = vpop.f32.mrf.mxu0
        %1199 = vdwg.mxu0
        %v1204 = vunpack.c.l.b16 %v536
        %v1205 = vunpack.c.l.b16 %v537
        %v1206 = vunpack.c.l.b16 %v538
        %v1207 = vunpack.c.l.b16 %v539
        %v1208 = vpack.c.b16 %v1205, %v1204
        %v1209 = vpack.c.b16 %v1207, %v1206
        %1212 = vmatprep.subr.bf16.mxu0 0
        %1213 = vmatpush1.bf16.msra.mxu0 0
        %1214 = vmatprep.subr.bf16.mxu0 0
        %1215 = vmatpush1.bf16.msra.mxu0 0
        %1216 = vmatprep.subr.bf16.mxu0 0
        %1217 = vmatpush1.bf16.msra.mxu0 0
        %1218 = vmatprep.subr.bf16.mxu0 0
        %1219 = vmatpush1.bf16.msra.mxu0 0
        %1220 = vmatprep.subr.bf16.mxu0 0
        %1221 = vmatpush1.bf16.msra.mxu0 0
        %1222 = vmatprep.subr.bf16.mxu0 0
        %1223 = vmatpush1.bf16.msra.mxu0 0
        %1224 = vmatprep.subr.bf16.mxu0 0
        %1225 = vmatpush1.bf16.msra.mxu0 %v1209
        %1226 = vmatprep.subr.bf16.mxu0 0
        %1227 = vmatpush1.bf16.msra.mxu0 %v1208
        %1228 = vmatprep.subr.bf16.mxu0 0
        %1229 = vmatpush2.bf16.msra.mxu0 0
        %1230 = vmatprep.subr.bf16.mxu0 0
        %1231 = vmatpush2.bf16.msra.mxu0 0
        %1232 = vmatprep.subr.bf16.mxu0 0
        %1233 = vmatpush2.bf16.msra.mxu0 0
        %1234 = vmatprep.subr.bf16.mxu0 0
        %1235 = vmatpush2.bf16.msra.mxu0 0
        %1236 = vmatprep.subr.bf16.mxu0 0
        %1237 = vmatpush2.bf16.msra.mxu0 0
        %1238 = vmatprep.subr.bf16.mxu0 0
        %1239 = vmatpush2.bf16.msra.mxu0 0
        %1240 = vmatprep.subr.bf16.mxu0 0
        %1241 = vmatpush2.bf16.msra.mxu0 0
        %1242 = vmatprep.subr.bf16.mxu0 0
        %1243 = vmatpush2.bf16.msra.mxu0 0
        %1244 = vmatprep.mubr.bf16.mxu0 0
        %1245 = vmatmul.mubr.bf16.gmra.mxu0 %v638
        %v1246 = vpop.f32.mrf.mxu0
        %v1247 = vadd.f32 %v611, %v1246
        %v1248 = vpop.f32.mrf.mxu0
        %v1249 = vpop.f32.mrf.mxu0
        %v1250 = vpop.f32.mrf.mxu0
        %1251 = vdwg.mxu0
        %v1252 = vpack.c.bf16 %v675, %v675
        %v1253 = vpack.c.bf16 %v727, %v727
        %v1254 = vpack.c.bf16 %v779, %v779
        %v1255 = vpack.c.bf16 %v831, %v831
        %v1256 = vpack.c.bf16 %v883, %v883
        %v1257 = vpack.c.bf16 %v935, %v935
        %v1258 = vpack.c.bf16 %v987, %v987
        %v1259 = vpack.c.bf16 %v1039, %v1039
        %vm1260 = vcmask 64512
        %v1262 = vsel %vm1260, %v1252, 0
        %v1265 = vsel %vm1260, %v1256, 0
        %1267 = vmatprep.subr.bf16.mxu0 0
        %1268 = vmatpush1.bf16.xpose.msra.mxu0 0
        %1269 = vmatprep.subr.bf16.mxu0 0
        %1270 = vmatpush1.bf16.xpose.msra.mxu0 0
        %1271 = vmatprep.subr.bf16.mxu0 0
        %1272 = vmatpush1.bf16.xpose.msra.mxu0 0
        %1273 = vmatprep.subr.bf16.mxu0 0
        %1274 = vmatpush1.bf16.xpose.msra.mxu0 0
        %1275 = vmatprep.subr.bf16.mxu0 0
        %1276 = vmatpush1.bf16.xpose.msra.mxu0 0
        %1277 = vmatprep.subr.bf16.mxu0 0
        %1278 = vmatpush1.bf16.xpose.msra.mxu0 0
        %1279 = vmatprep.subr.bf16.mxu0 0
        %1280 = vmatpush1.bf16.xpose.msra.mxu0 0
        %1281 = vmatprep.subr.bf16.mxu0 0
        %1282 = vmatpush1.bf16.xpose.msra.mxu0 %v1265
        %1283 = vmatprep.subr.bf16.mxu0 0
        %1284 = vmatpush2.bf16.xpose.msra.mxu0 0
        %1285 = vmatprep.subr.bf16.mxu0 0
        %1286 = vmatpush2.bf16.xpose.msra.mxu0 0
        %1287 = vmatprep.subr.bf16.mxu0 0
        %1288 = vmatpush2.bf16.xpose.msra.mxu0 0
        %1289 = vmatprep.subr.bf16.mxu0 0
        %1290 = vmatpush2.bf16.xpose.msra.mxu0 0
        %1291 = vmatprep.subr.bf16.mxu0 0
        %1292 = vmatpush2.bf16.xpose.msra.mxu0 0
        %1293 = vmatprep.subr.bf16.mxu0 0
        %1294 = vmatpush2.bf16.xpose.msra.mxu0 0
        %1295 = vmatprep.subr.bf16.mxu0 0
        %1296 = vmatpush2.bf16.xpose.msra.mxu0 0
        %1297 = vmatprep.subr.bf16.mxu0 0
        %1298 = vmatpush2.bf16.xpose.msra.mxu0 0
        %1299 = vmatprep.mubr.bf16.mxu0 0
        %1300 = vmatmul.mubr.bf16.gmra.mxu0 %v1262
        %v1301 = vpop.f32.mrf.mxu0
        %v1302 = vadd.f32 0.0, %v1301
        %v1303 = vpop.f32.mrf.mxu0
        %v1304 = vpop.f32.mrf.mxu0
        %v1305 = vpop.f32.mrf.mxu0
        %1306 = vdwg.mxu0
        %v1308 = vsel %vm1260, %v1253, 0
        %v1311 = vsel %vm1260, %v1257, 0
        %1313 = vmatprep.subr.bf16.mxu0 0
        %1314 = vmatpush1.bf16.xpose.msra.mxu0 0
        %1315 = vmatprep.subr.bf16.mxu0 0
        %1316 = vmatpush1.bf16.xpose.msra.mxu0 0
        %1317 = vmatprep.subr.bf16.mxu0 0
        %1318 = vmatpush1.bf16.xpose.msra.mxu0 0
        %1319 = vmatprep.subr.bf16.mxu0 0
        %1320 = vmatpush1.bf16.xpose.msra.mxu0 0
        %1321 = vmatprep.subr.bf16.mxu0 0
        %1322 = vmatpush1.bf16.xpose.msra.mxu0 0
        %1323 = vmatprep.subr.bf16.mxu0 0
        %1324 = vmatpush1.bf16.xpose.msra.mxu0 0
        %1325 = vmatprep.subr.bf16.mxu0 0
        %1326 = vmatpush1.bf16.xpose.msra.mxu0 0
        %1327 = vmatprep.subr.bf16.mxu0 0
        %1328 = vmatpush1.bf16.xpose.msra.mxu0 %v1311
        %1329 = vmatprep.subr.bf16.mxu0 0
        %1330 = vmatpush2.bf16.xpose.msra.mxu0 0
        %1331 = vmatprep.subr.bf16.mxu0 0
        %1332 = vmatpush2.bf16.xpose.msra.mxu0 0
        %1333 = vmatprep.subr.bf16.mxu0 0
        %1334 = vmatpush2.bf16.xpose.msra.mxu0 0
        %1335 = vmatprep.subr.bf16.mxu0 0
        %1336 = vmatpush2.bf16.xpose.msra.mxu0 0
        %1337 = vmatprep.subr.bf16.mxu0 0
        %1338 = vmatpush2.bf16.xpose.msra.mxu0 0
        %1339 = vmatprep.subr.bf16.mxu0 0
        %1340 = vmatpush2.bf16.xpose.msra.mxu0 0
        %1341 = vmatprep.subr.bf16.mxu0 0
        %1342 = vmatpush2.bf16.xpose.msra.mxu0 0
        %1343 = vmatprep.subr.bf16.mxu0 0
        %1344 = vmatpush2.bf16.xpose.msra.mxu0 0
        %1345 = vmatprep.mubr.bf16.mxu0 0
        %1346 = vmatmul.mubr.bf16.gmra.mxu0 %v1308
        %v1347 = vpop.f32.mrf.mxu0
        %v1348 = vadd.f32 0.0, %v1347
        %v1349 = vpop.f32.mrf.mxu0
        %v1350 = vpop.f32.mrf.mxu0
        %v1351 = vpop.f32.mrf.mxu0
        %1352 = vdwg.mxu0
        %v1354 = vsel %vm1260, %v1254, 0
        %v1357 = vsel %vm1260, %v1258, 0
        %1359 = vmatprep.subr.bf16.mxu0 0
        %1360 = vmatpush1.bf16.xpose.msra.mxu0 0
        %1361 = vmatprep.subr.bf16.mxu0 0
        %1362 = vmatpush1.bf16.xpose.msra.mxu0 0
        %1363 = vmatprep.subr.bf16.mxu0 0
        %1364 = vmatpush1.bf16.xpose.msra.mxu0 0
        %1365 = vmatprep.subr.bf16.mxu0 0
        %1366 = vmatpush1.bf16.xpose.msra.mxu0 0
        %1367 = vmatprep.subr.bf16.mxu0 0
        %1368 = vmatpush1.bf16.xpose.msra.mxu0 0
        %1369 = vmatprep.subr.bf16.mxu0 0
        %1370 = vmatpush1.bf16.xpose.msra.mxu0 0
        %1371 = vmatprep.subr.bf16.mxu0 0
        %1372 = vmatpush1.bf16.xpose.msra.mxu0 0
        %1373 = vmatprep.subr.bf16.mxu0 0
        %1374 = vmatpush1.bf16.xpose.msra.mxu0 %v1357
        %1375 = vmatprep.subr.bf16.mxu0 0
        %1376 = vmatpush2.bf16.xpose.msra.mxu0 0
        %1377 = vmatprep.subr.bf16.mxu0 0
        %1378 = vmatpush2.bf16.xpose.msra.mxu0 0
        %1379 = vmatprep.subr.bf16.mxu0 0
        %1380 = vmatpush2.bf16.xpose.msra.mxu0 0
        %1381 = vmatprep.subr.bf16.mxu0 0
        %1382 = vmatpush2.bf16.xpose.msra.mxu0 0
        %1383 = vmatprep.subr.bf16.mxu0 0
        %1384 = vmatpush2.bf16.xpose.msra.mxu0 0
        %1385 = vmatprep.subr.bf16.mxu0 0
        %1386 = vmatpush2.bf16.xpose.msra.mxu0 0
        %1387 = vmatprep.subr.bf16.mxu0 0
        %1388 = vmatpush2.bf16.xpose.msra.mxu0 0
        %1389 = vmatprep.subr.bf16.mxu0 0
        %1390 = vmatpush2.bf16.xpose.msra.mxu0 0
        %1391 = vmatprep.mubr.bf16.mxu0 0
        %1392 = vmatmul.mubr.bf16.gmra.mxu0 %v1354
        %v1393 = vpop.f32.mrf.mxu0
        %v1394 = vadd.f32 0.0, %v1393
        %v1395 = vpop.f32.mrf.mxu0
        %v1396 = vpop.f32.mrf.mxu0
        %v1397 = vpop.f32.mrf.mxu0
        %1398 = vdwg.mxu0
        %v1400 = vsel %vm1260, %v1255, 0
        %v1403 = vsel %vm1260, %v1259, 0
        %1405 = vmatprep.subr.bf16.mxu0 0
        %1406 = vmatpush1.bf16.xpose.msra.mxu0 0
        %1407 = vmatprep.subr.bf16.mxu0 0
        %1408 = vmatpush1.bf16.xpose.msra.mxu0 0
        %1409 = vmatprep.subr.bf16.mxu0 0
        %1410 = vmatpush1.bf16.xpose.msra.mxu0 0
        %1411 = vmatprep.subr.bf16.mxu0 0
        %1412 = vmatpush1.bf16.xpose.msra.mxu0 0
        %1413 = vmatprep.subr.bf16.mxu0 0
        %1414 = vmatpush1.bf16.xpose.msra.mxu0 0
        %1415 = vmatprep.subr.bf16.mxu0 0
        %1416 = vmatpush1.bf16.xpose.msra.mxu0 0
        %1417 = vmatprep.subr.bf16.mxu0 0
        %1418 = vmatpush1.bf16.xpose.msra.mxu0 0
        %1419 = vmatprep.subr.bf16.mxu0 0
        %1420 = vmatpush1.bf16.xpose.msra.mxu0 %v1403
        %1421 = vmatprep.subr.bf16.mxu0 0
        %1422 = vmatpush2.bf16.xpose.msra.mxu0 0
        %1423 = vmatprep.subr.bf16.mxu0 0
        %1424 = vmatpush2.bf16.xpose.msra.mxu0 0
        %1425 = vmatprep.subr.bf16.mxu0 0
        %1426 = vmatpush2.bf16.xpose.msra.mxu0 0
        %1427 = vmatprep.subr.bf16.mxu0 0
        %1428 = vmatpush2.bf16.xpose.msra.mxu0 0
        %1429 = vmatprep.subr.bf16.mxu0 0
        %1430 = vmatpush2.bf16.xpose.msra.mxu0 0
        %1431 = vmatprep.subr.bf16.mxu0 0
        %1432 = vmatpush2.bf16.xpose.msra.mxu0 0
        %1433 = vmatprep.subr.bf16.mxu0 0
        %1434 = vmatpush2.bf16.xpose.msra.mxu0 0
        %1435 = vmatprep.subr.bf16.mxu0 0
        %1436 = vmatpush2.bf16.xpose.msra.mxu0 0
        %1437 = vmatprep.mubr.bf16.mxu0 0
        %1438 = vmatmul.mubr.bf16.gmra.mxu0 %v1400
        %v1439 = vpop.f32.mrf.mxu0
        %v1440 = vadd.f32 0.0, %v1439
        %v1441 = vpop.f32.mrf.mxu0
        %v1442 = vpop.f32.mrf.mxu0
        %v1443 = vpop.f32.mrf.mxu0
        %1444 = vdwg.mxu0
        %vm1445 = vcmask 55296
        %v1446 = vsel %vm1445, %v1302, -inf
        %1447 = vmax.xlane.f32.xlu0 %v1446
        %v1448 = vpop.xlane.xlu0 %1447
        %v1449 = vsel %vm1445, %v1348, -inf
        %1450 = vmax.xlane.f32.xlu0 %v1449
        %v1451 = vpop.xlane.xlu0 %1450
        %v1452 = vsel %vm1445, %v1394, -inf
        %1453 = vmax.xlane.f32.xlu0 %v1452
        %v1454 = vpop.xlane.xlu0 %1453
        %v1455 = vsel %vm1445, %v1440, -inf
        %1456 = vmax.xlane.f32.xlu0 %v1455
        %v1457 = vpop.xlane.xlu0 %1456
        %v1458 = vsub.f32 %v1302, %v1448
        %v1459 = vsub.f32 %v1348, %v1451
        %v1460 = vsub.f32 %v1394, %v1454
        %v1461 = vsub.f32 %v1440, %v1457
        %v1462 = vmul.f32 %v1458, 1.442695
        %v1463 = vpow.pop %v1462
        %v1464 = vmul.f32 %v1459, 1.442695
        %v1465 = vpow.pop %v1464
        %v1466 = vmul.f32 %v1460, 1.442695
        %v1467 = vpow.pop %v1466
        %v1468 = vmul.f32 %v1461, 1.442695
        %v1469 = vpow.pop %v1468
        %v1470 = vsel %vm1445, %v1463, 0.0
        %1471 = vadd.xlane.f32.xlu0 %v1470
        %v1472 = vpop.xlane.xlu0 %1471
        %v1473 = vsel %vm1445, %v1465, 0.0
        %1474 = vadd.xlane.f32.xlu0 %v1473
        %v1475 = vpop.xlane.xlu0 %1474
        %v1476 = vsel %vm1445, %v1467, 0.0
        %1477 = vadd.xlane.f32.xlu0 %v1476
        %v1478 = vpop.xlane.xlu0 %1477
        %v1479 = vsel %vm1445, %v1469, 0.0
        %1480 = vadd.xlane.f32.xlu0 %v1479
        %v1481 = vpop.xlane.xlu0 %1480
        %v1482 = vrcp.pop %v1472
        %v1483 = vrcp.pop %v1475
        %v1484 = vrcp.pop %v1478
        %v1485 = vrcp.pop %v1481
        %v1486 = vmul.f32 %v1463, %v1482
        %v1487 = vmul.f32 %v1465, %v1483
        %v1488 = vmul.f32 %v1467, %v1484
        %v1489 = vmul.f32 %v1469, %v1485
        %v1490 = vpack.c.bf16 %v1486, %v1486
        %v1491 = vpack.c.bf16 %v1487, %v1487
        %v1492 = vpack.c.bf16 %v1488, %v1488
        %v1493 = vpack.c.bf16 %v1489, %v1489
        %v1494 = vpack.c.bf16 %v1091, %v1091
        %v1495 = vpack.c.bf16 %v1143, %v1143
        %v1496 = vpack.c.bf16 %v1195, %v1195
        %v1497 = vpack.c.bf16 %v1247, %v1247
        %vm1498 = vcmask 56320
        %v1500 = vsel %vm1498, %v1490, 0
        %vm1502 = vcmask 1042432
        %vm1503 = vcmask 1043456
        %v1504 = vsel %vm1502, 4294967295, 65535
        %v1505 = vsel %vm1503, %v1504, 0
        %v1507 = vand.u32 %v1494, %v1505
        %1509 = vmatprep.subr.bf16.mxu0 0
        %1510 = vmatpush1.bf16.msra.mxu0 0
        %1511 = vmatprep.subr.bf16.mxu0 0
        %1512 = vmatpush1.bf16.msra.mxu0 0
        %1513 = vmatprep.subr.bf16.mxu0 0
        %1514 = vmatpush1.bf16.msra.mxu0 0
        %1515 = vmatprep.subr.bf16.mxu0 0
        %1516 = vmatpush1.bf16.msra.mxu0 0
        %1517 = vmatprep.subr.bf16.mxu0 0
        %1518 = vmatpush1.bf16.msra.mxu0 0
        %1519 = vmatprep.subr.bf16.mxu0 0
        %1520 = vmatpush1.bf16.msra.mxu0 0
        %1521 = vmatprep.subr.bf16.mxu0 0
        %1522 = vmatpush1.bf16.msra.mxu0 0
        %1523 = vmatprep.subr.bf16.mxu0 0
        %1524 = vmatpush1.bf16.msra.mxu0 %v1507
        %1525 = vmatprep.subr.bf16.mxu0 0
        %1526 = vmatpush2.bf16.msra.mxu0 0
        %1527 = vmatprep.subr.bf16.mxu0 0
        %1528 = vmatpush2.bf16.msra.mxu0 0
        %1529 = vmatprep.subr.bf16.mxu0 0
        %1530 = vmatpush2.bf16.msra.mxu0 0
        %1531 = vmatprep.subr.bf16.mxu0 0
        %1532 = vmatpush2.bf16.msra.mxu0 0
        %1533 = vmatprep.subr.bf16.mxu0 0
        %1534 = vmatpush2.bf16.msra.mxu0 0
        %1535 = vmatprep.subr.bf16.mxu0 0
        %1536 = vmatpush2.bf16.msra.mxu0 0
        %1537 = vmatprep.subr.bf16.mxu0 0
        %1538 = vmatpush2.bf16.msra.mxu0 0
        %1539 = vmatprep.subr.bf16.mxu0 0
        %1540 = vmatpush2.bf16.msra.mxu0 0
        %1541 = vmatprep.mubr.bf16.mxu0 0
        %1542 = vmatmul.mubr.bf16.gmra.mxu0 %v1500
        %v1543 = vpop.f32.mrf.mxu0
        %v1544 = vadd.f32 0.0, %v1543
        %v1545 = vpop.f32.mrf.mxu0
        %v1546 = vpop.f32.mrf.mxu0
        %v1547 = vpop.f32.mrf.mxu0
        %1548 = vdwg.mxu0
        %v1550 = vsel %vm1498, %v1491, 0
        %v1553 = vand.u32 %v1495, %v1505
        %1555 = vmatprep.subr.bf16.mxu0 0
        %1556 = vmatpush1.bf16.msra.mxu0 0
        %1557 = vmatprep.subr.bf16.mxu0 0
        %1558 = vmatpush1.bf16.msra.mxu0 0
        %1559 = vmatprep.subr.bf16.mxu0 0
        %1560 = vmatpush1.bf16.msra.mxu0 0
        %1561 = vmatprep.subr.bf16.mxu0 0
        %1562 = vmatpush1.bf16.msra.mxu0 0
        %1563 = vmatprep.subr.bf16.mxu0 0
        %1564 = vmatpush1.bf16.msra.mxu0 0
        %1565 = vmatprep.subr.bf16.mxu0 0
        %1566 = vmatpush1.bf16.msra.mxu0 0
        %1567 = vmatprep.subr.bf16.mxu0 0
        %1568 = vmatpush1.bf16.msra.mxu0 0
        %1569 = vmatprep.subr.bf16.mxu0 0
        %1570 = vmatpush1.bf16.msra.mxu0 %v1553
        %1571 = vmatprep.subr.bf16.mxu0 0
        %1572 = vmatpush2.bf16.msra.mxu0 0
        %1573 = vmatprep.subr.bf16.mxu0 0
        %1574 = vmatpush2.bf16.msra.mxu0 0
        %1575 = vmatprep.subr.bf16.mxu0 0
        %1576 = vmatpush2.bf16.msra.mxu0 0
        %1577 = vmatprep.subr.bf16.mxu0 0
        %1578 = vmatpush2.bf16.msra.mxu0 0
        %1579 = vmatprep.subr.bf16.mxu0 0
        %1580 = vmatpush2.bf16.msra.mxu0 0
        %1581 = vmatprep.subr.bf16.mxu0 0
        %1582 = vmatpush2.bf16.msra.mxu0 0
        %1583 = vmatprep.subr.bf16.mxu0 0
        %1584 = vmatpush2.bf16.msra.mxu0 0
        %1585 = vmatprep.subr.bf16.mxu0 0
        %1586 = vmatpush2.bf16.msra.mxu0 0
        %1587 = vmatprep.mubr.bf16.mxu0 0
        %1588 = vmatmul.mubr.bf16.gmra.mxu0 %v1550
        %v1589 = vpop.f32.mrf.mxu0
        %v1590 = vadd.f32 0.0, %v1589
        %v1591 = vpop.f32.mrf.mxu0
        %v1592 = vpop.f32.mrf.mxu0
        %v1593 = vpop.f32.mrf.mxu0
        %1594 = vdwg.mxu0
        %v1596 = vsel %vm1498, %v1492, 0
        %v1599 = vand.u32 %v1496, %v1505
        %1601 = vmatprep.subr.bf16.mxu0 0
        %1602 = vmatpush1.bf16.msra.mxu0 0
        %1603 = vmatprep.subr.bf16.mxu0 0
        %1604 = vmatpush1.bf16.msra.mxu0 0
        %1605 = vmatprep.subr.bf16.mxu0 0
        %1606 = vmatpush1.bf16.msra.mxu0 0
        %1607 = vmatprep.subr.bf16.mxu0 0
        %1608 = vmatpush1.bf16.msra.mxu0 0
        %1609 = vmatprep.subr.bf16.mxu0 0
        %1610 = vmatpush1.bf16.msra.mxu0 0
        %1611 = vmatprep.subr.bf16.mxu0 0
        %1612 = vmatpush1.bf16.msra.mxu0 0
        %1613 = vmatprep.subr.bf16.mxu0 0
        %1614 = vmatpush1.bf16.msra.mxu0 0
        %1615 = vmatprep.subr.bf16.mxu0 0
        %1616 = vmatpush1.bf16.msra.mxu0 %v1599
        %1617 = vmatprep.subr.bf16.mxu0 0
        %1618 = vmatpush2.bf16.msra.mxu0 0
        %1619 = vmatprep.subr.bf16.mxu0 0
        %1620 = vmatpush2.bf16.msra.mxu0 0
        %1621 = vmatprep.subr.bf16.mxu0 0
        %1622 = vmatpush2.bf16.msra.mxu0 0
        %1623 = vmatprep.subr.bf16.mxu0 0
        %1624 = vmatpush2.bf16.msra.mxu0 0
        %1625 = vmatprep.subr.bf16.mxu0 0
        %1626 = vmatpush2.bf16.msra.mxu0 0
        %1627 = vmatprep.subr.bf16.mxu0 0
        %1628 = vmatpush2.bf16.msra.mxu0 0
        %1629 = vmatprep.subr.bf16.mxu0 0
        %1630 = vmatpush2.bf16.msra.mxu0 0
        %1631 = vmatprep.subr.bf16.mxu0 0
        %1632 = vmatpush2.bf16.msra.mxu0 0
        %1633 = vmatprep.mubr.bf16.mxu0 0
        %1634 = vmatmul.mubr.bf16.gmra.mxu0 %v1596
        %v1635 = vpop.f32.mrf.mxu0
        %v1636 = vadd.f32 0.0, %v1635
        %v1637 = vpop.f32.mrf.mxu0
        %v1638 = vpop.f32.mrf.mxu0
        %v1639 = vpop.f32.mrf.mxu0
        %1640 = vdwg.mxu0
        %v1642 = vsel %vm1498, %v1493, 0
        %v1645 = vand.u32 %v1497, %v1505
        %1647 = vmatprep.subr.bf16.mxu0 0
        %1648 = vmatpush1.bf16.msra.mxu0 0
        %1649 = vmatprep.subr.bf16.mxu0 0
        %1650 = vmatpush1.bf16.msra.mxu0 0
        %1651 = vmatprep.subr.bf16.mxu0 0
        %1652 = vmatpush1.bf16.msra.mxu0 0
        %1653 = vmatprep.subr.bf16.mxu0 0
        %1654 = vmatpush1.bf16.msra.mxu0 0
        %1655 = vmatprep.subr.bf16.mxu0 0
        %1656 = vmatpush1.bf16.msra.mxu0 0
        %1657 = vmatprep.subr.bf16.mxu0 0
        %1658 = vmatpush1.bf16.msra.mxu0 0
        %1659 = vmatprep.subr.bf16.mxu0 0
        %1660 = vmatpush1.bf16.msra.mxu0 0
        %1661 = vmatprep.subr.bf16.mxu0 0
        %1662 = vmatpush1.bf16.msra.mxu0 %v1645
        %1663 = vmatprep.subr.bf16.mxu0 0
        %1664 = vmatpush2.bf16.msra.mxu0 0
        %1665 = vmatprep.subr.bf16.mxu0 0
        %1666 = vmatpush2.bf16.msra.mxu0 0
        %1667 = vmatprep.subr.bf16.mxu0 0
        %1668 = vmatpush2.bf16.msra.mxu0 0
        %1669 = vmatprep.subr.bf16.mxu0 0
        %1670 = vmatpush2.bf16.msra.mxu0 0
        %1671 = vmatprep.subr.bf16.mxu0 0
        %1672 = vmatpush2.bf16.msra.mxu0 0
        %1673 = vmatprep.subr.bf16.mxu0 0
        %1674 = vmatpush2.bf16.msra.mxu0 0
        %1675 = vmatprep.subr.bf16.mxu0 0
        %1676 = vmatpush2.bf16.msra.mxu0 0
        %1677 = vmatprep.subr.bf16.mxu0 0
        %1678 = vmatpush2.bf16.msra.mxu0 0
        %1679 = vmatprep.mubr.bf16.mxu0 0
        %1680 = vmatmul.mubr.bf16.gmra.mxu0 %v1642
        %v1681 = vpop.f32.mrf.mxu0
        %v1682 = vadd.f32 0.0, %v1681
        %v1683 = vpop.f32.mrf.mxu0
        %v1684 = vpop.f32.mrf.mxu0
        %v1685 = vpop.f32.mrf.mxu0
        %1686 = vdwg.mxu0
        %v1687 = vpack.c.bf16 %v1544, %v1544
        %v1688 = vpack.c.bf16 %v1590, %v1590
        %v1689 = vpack.c.bf16 %v1636, %v1636
        %v1690 = vpack.c.bf16 %v1682, %v1682
        %v1691 = vld [vmem:[%s5] sm:$0xf]
        %v1692 = vld [vmem:[%s5 + $0x4] sm:$0xf]
        %v1693 = vld [vmem:[%s5 + $0x8] sm:$0xf]
        %v1694 = vld [vmem:[%s5 + $0xc] sm:$0xf]
        %v1696 = vsel %vm1260, %v1687, 0
        %v1699 = vsel %vm1503, %v1691, 0
        %1701 = vmatprep.subr.bf16.mxu0 0
        %1702 = vmatpush1.bf16.msra.mxu0 0
        %1703 = vmatprep.subr.bf16.mxu0 0
        %1704 = vmatpush1.bf16.msra.mxu0 0
        %1705 = vmatprep.subr.bf16.mxu0 0
        %1706 = vmatpush1.bf16.msra.mxu0 0
        %1707 = vmatprep.subr.bf16.mxu0 0
        %1708 = vmatpush1.bf16.msra.mxu0 0
        %1709 = vmatprep.subr.bf16.mxu0 0
        %1710 = vmatpush1.bf16.msra.mxu0 0
        %1711 = vmatprep.subr.bf16.mxu0 0
        %1712 = vmatpush1.bf16.msra.mxu0 0
        %1713 = vmatprep.subr.bf16.mxu0 0
        %1714 = vmatpush1.bf16.msra.mxu0 0
        %1715 = vmatprep.subr.bf16.mxu0 0
        %1716 = vmatpush1.bf16.msra.mxu0 %v1699
        %1717 = vmatprep.subr.bf16.mxu0 0
        %1718 = vmatpush2.bf16.msra.mxu0 0
        %1719 = vmatprep.subr.bf16.mxu0 0
        %1720 = vmatpush2.bf16.msra.mxu0 0
        %1721 = vmatprep.subr.bf16.mxu0 0
        %1722 = vmatpush2.bf16.msra.mxu0 0
        %1723 = vmatprep.subr.bf16.mxu0 0
        %1724 = vmatpush2.bf16.msra.mxu0 0
        %1725 = vmatprep.subr.bf16.mxu0 0
        %1726 = vmatpush2.bf16.msra.mxu0 0
        %1727 = vmatprep.subr.bf16.mxu0 0
        %1728 = vmatpush2.bf16.msra.mxu0 0
        %1729 = vmatprep.subr.bf16.mxu0 0
        %1730 = vmatpush2.bf16.msra.mxu0 0
        %1731 = vmatprep.subr.bf16.mxu0 0
        %1732 = vmatpush2.bf16.msra.mxu0 0
        %1733 = vmatprep.mubr.bf16.mxu0 0
        %1734 = vmatmul.mubr.bf16.gmra.mxu0 %v1696
        %v1735 = vpop.f32.mrf.mxu0
        %v1736 = vadd.f32 0.0, %v1735
        %v1737 = vpop.f32.mrf.mxu0
        %v1738 = vpop.f32.mrf.mxu0
        %v1739 = vpop.f32.mrf.mxu0
        %1740 = vdwg.mxu0
        %v1742 = vsel %vm1260, %v1688, 0
        %v1745 = vsel %vm1503, %v1692, 0
        %1747 = vmatprep.subr.bf16.mxu0 0
        %1748 = vmatpush1.bf16.msra.mxu0 0
        %1749 = vmatprep.subr.bf16.mxu0 0
        %1750 = vmatpush1.bf16.msra.mxu0 0
        %1751 = vmatprep.subr.bf16.mxu0 0
        %1752 = vmatpush1.bf16.msra.mxu0 0
        %1753 = vmatprep.subr.bf16.mxu0 0
        %1754 = vmatpush1.bf16.msra.mxu0 0
        %1755 = vmatprep.subr.bf16.mxu0 0
        %1756 = vmatpush1.bf16.msra.mxu0 0
        %1757 = vmatprep.subr.bf16.mxu0 0
        %1758 = vmatpush1.bf16.msra.mxu0 0
        %1759 = vmatprep.subr.bf16.mxu0 0
        %1760 = vmatpush1.bf16.msra.mxu0 0
        %1761 = vmatprep.subr.bf16.mxu0 0
        %1762 = vmatpush1.bf16.msra.mxu0 %v1745
        %1763 = vmatprep.subr.bf16.mxu0 0
        %1764 = vmatpush2.bf16.msra.mxu0 0
        %1765 = vmatprep.subr.bf16.mxu0 0
        %1766 = vmatpush2.bf16.msra.mxu0 0
        %1767 = vmatprep.subr.bf16.mxu0 0
        %1768 = vmatpush2.bf16.msra.mxu0 0
        %1769 = vmatprep.subr.bf16.mxu0 0
        %1770 = vmatpush2.bf16.msra.mxu0 0
        %1771 = vmatprep.subr.bf16.mxu0 0
        %1772 = vmatpush2.bf16.msra.mxu0 0
        %1773 = vmatprep.subr.bf16.mxu0 0
        %1774 = vmatpush2.bf16.msra.mxu0 0
        %1775 = vmatprep.subr.bf16.mxu0 0
        %1776 = vmatpush2.bf16.msra.mxu0 0
        %1777 = vmatprep.subr.bf16.mxu0 0
        %1778 = vmatpush2.bf16.msra.mxu0 0
        %1779 = vmatprep.mubr.bf16.mxu0 0
        %1780 = vmatmul.mubr.bf16.gmra.mxu0 %v1742
        %v1781 = vpop.f32.mrf.mxu0
        %v1782 = vadd.f32 0.0, %v1781
        %v1783 = vpop.f32.mrf.mxu0
        %v1784 = vpop.f32.mrf.mxu0
        %v1785 = vpop.f32.mrf.mxu0
        %1786 = vdwg.mxu0
        %v1788 = vsel %vm1260, %v1689, 0
        %v1791 = vsel %vm1503, %v1693, 0
        %1793 = vmatprep.subr.bf16.mxu0 0
        %1794 = vmatpush1.bf16.msra.mxu0 0
        %1795 = vmatprep.subr.bf16.mxu0 0
        %1796 = vmatpush1.bf16.msra.mxu0 0
        %1797 = vmatprep.subr.bf16.mxu0 0
        %1798 = vmatpush1.bf16.msra.mxu0 0
        %1799 = vmatprep.subr.bf16.mxu0 0
        %1800 = vmatpush1.bf16.msra.mxu0 0
        %1801 = vmatprep.subr.bf16.mxu0 0
        %1802 = vmatpush1.bf16.msra.mxu0 0
        %1803 = vmatprep.subr.bf16.mxu0 0
        %1804 = vmatpush1.bf16.msra.mxu0 0
        %1805 = vmatprep.subr.bf16.mxu0 0
        %1806 = vmatpush1.bf16.msra.mxu0 0
        %1807 = vmatprep.subr.bf16.mxu0 0
        %1808 = vmatpush1.bf16.msra.mxu0 %v1791
        %1809 = vmatprep.subr.bf16.mxu0 0
        %1810 = vmatpush2.bf16.msra.mxu0 0
        %1811 = vmatprep.subr.bf16.mxu0 0
        %1812 = vmatpush2.bf16.msra.mxu0 0
        %1813 = vmatprep.subr.bf16.mxu0 0
        %1814 = vmatpush2.bf16.msra.mxu0 0
        %1815 = vmatprep.subr.bf16.mxu0 0
        %1816 = vmatpush2.bf16.msra.mxu0 0
        %1817 = vmatprep.subr.bf16.mxu0 0
        %1818 = vmatpush2.bf16.msra.mxu0 0
        %1819 = vmatprep.subr.bf16.mxu0 0
        %1820 = vmatpush2.bf16.msra.mxu0 0
        %1821 = vmatprep.subr.bf16.mxu0 0
        %1822 = vmatpush2.bf16.msra.mxu0 0
        %1823 = vmatprep.subr.bf16.mxu0 0
        %1824 = vmatpush2.bf16.msra.mxu0 0
        %1825 = vmatprep.mubr.bf16.mxu0 0
        %1826 = vmatmul.mubr.bf16.gmra.mxu0 %v1788
        %v1827 = vpop.f32.mrf.mxu0
        %v1828 = vadd.f32 0.0, %v1827
        %v1829 = vpop.f32.mrf.mxu0
        %v1830 = vpop.f32.mrf.mxu0
        %v1831 = vpop.f32.mrf.mxu0
        %1832 = vdwg.mxu0
        %v1834 = vsel %vm1260, %v1690, 0
        %v1837 = vsel %vm1503, %v1694, 0
        %1839 = vmatprep.subr.bf16.mxu0 0
        %1840 = vmatpush1.bf16.msra.mxu0 0
        %1841 = vmatprep.subr.bf16.mxu0 0
        %1842 = vmatpush1.bf16.msra.mxu0 0
        %1843 = vmatprep.subr.bf16.mxu0 0
        %1844 = vmatpush1.bf16.msra.mxu0 0
        %1845 = vmatprep.subr.bf16.mxu0 0
        %1846 = vmatpush1.bf16.msra.mxu0 0
        %1847 = vmatprep.subr.bf16.mxu0 0
        %1848 = vmatpush1.bf16.msra.mxu0 0
        %1849 = vmatprep.subr.bf16.mxu0 0
        %1850 = vmatpush1.bf16.msra.mxu0 0
        %1851 = vmatprep.subr.bf16.mxu0 0
        %1852 = vmatpush1.bf16.msra.mxu0 0
        %1853 = vmatprep.subr.bf16.mxu0 0
        %1854 = vmatpush1.bf16.msra.mxu0 %v1837
        %1855 = vmatprep.subr.bf16.mxu0 0
        %1856 = vmatpush2.bf16.msra.mxu0 0
        %1857 = vmatprep.subr.bf16.mxu0 0
        %1858 = vmatpush2.bf16.msra.mxu0 0
        %1859 = vmatprep.subr.bf16.mxu0 0
        %1860 = vmatpush2.bf16.msra.mxu0 0
        %1861 = vmatprep.subr.bf16.mxu0 0
        %1862 = vmatpush2.bf16.msra.mxu0 0
        %1863 = vmatprep.subr.bf16.mxu0 0
        %1864 = vmatpush2.bf16.msra.mxu0 0
        %1865 = vmatprep.subr.bf16.mxu0 0
        %1866 = vmatpush2.bf16.msra.mxu0 0
        %1867 = vmatprep.subr.bf16.mxu0 0
        %1868 = vmatpush2.bf16.msra.mxu0 0
        %1869 = vmatprep.subr.bf16.mxu0 0
        %1870 = vmatpush2.bf16.msra.mxu0 0
        %1871 = vmatprep.mubr.bf16.mxu0 0
        %1872 = vmatmul.mubr.bf16.gmra.mxu0 %v1834
        %v1873 = vpop.f32.mrf.mxu0
        %v1874 = vadd.f32 0.0, %v1873
        %v1875 = vpop.f32.mrf.mxu0
        %v1876 = vpop.f32.mrf.mxu0
        %v1877 = vpop.f32.mrf.mxu0
        %1878 = vdwg.mxu0
        %vm1879 = vcmask 260096
        %v1880 = vsel %vm1879, %v1736, 0.0
        %v1881 = vsel %vm1879, %v1782, 0.0
        %v1882 = vadd.f32 %v1880, %v1881
        %v1883 = vsel %vm1879, %v1828, 0.0
        %v1884 = vadd.f32 %v1882, %v1883
        %v1885 = vsel %vm1879, %v1874, 0.0
        %v1886 = vadd.f32 %v1884, %v1885
        %v1887 = vlaneseq
        %v1888 = vshrl.u32 %v1887, 7
        %v1889 = vsub.s32 0, %v1888
        %v1890 = vrot.slane %v490, %v1889
        %v1891 = vadd.f32 %v1886, %v1890
        %v1892 = vadd.f32 %v485, %v1891
        %v1893 = vsel %vm1879, %v1892, 0.0
        %1894 = vadd.xlane.f32.xlu0 %v1893
        %v1895 = vpop.xlane.xlu0 %1894
        %v1896 = vrcp.pop 32.0
        %v1897 = vmul.f32 %v1895, %v1896
        %v1898 = vsub.f32 %v1892, %v1897
        %v1899 = vmul.f32 %v1898, %v1898
        %v1900 = vsel %vm1879, %v1899, 0.0
        %1901 = vadd.xlane.f32.xlu0 %v1900
        %v1902 = vpop.xlane.xlu0 %1901
        %v1903 = vmul.f32 %v1902, %v1896
        %v1904 = vadd.f32 %v1903, 1e-05
        %v1905 = vrsqrt.pop %v1904
        %v1906 = vmul.f32 %v1898, %v1905
        %v1907 = vlaneseq
        %v1908 = vshrl.u32 %v1907, 7
        %v1909 = vsub.s32 1, %v1908
        %v1910 = vrot.slane %v490, %v1909
        %v1911 = vmul.f32 %v1906, %v1910
        %v1912 = vlaneseq
        %v1913 = vshrl.u32 %v1912, 7
        %v1914 = vsub.s32 2, %v1913
        %v1915 = vrot.slane %v490, %v1914
        %v1916 = vadd.f32 %v1911, %v1915
        %v1917 = vpack.c.bf16 %v1916, %v1916
        %v1918 = vld [vmem:[%s6] sm:$0xf]
        %v1919 = vld [vmem:[%s6 + $0x4] sm:$0xf]
        %v1920 = vld [vmem:[%s6 + $0x8] sm:$0xf]
        %v1921 = vld [vmem:[%s6 + $0xc] sm:$0xf]
        %v1922 = vlaneseq
        %v1923 = vshrl.u32 %v1922, 7
        %v1924 = vsub.s32 3, %v1923
        %v1925 = vrot.slane %v490, %v1924
        %v1930 = vunpack.c.l.b16 %v1918
        %v1931 = vunpack.c.l.b16 %v1919
        %v1932 = vunpack.c.l.b16 %v1920
        %v1933 = vunpack.c.l.b16 %v1921
        %v1934 = vpack.c.b16 %v1931, %v1930
        %v1935 = vpack.c.b16 %v1933, %v1932
        %v1939 = vsel %vm636, %v1917, 0
        %1941 = vmatprep.subr.bf16.mxu0 0
        %1942 = vmatpush1.bf16.msra.mxu0 0
        %1943 = vmatprep.subr.bf16.mxu0 0
        %1944 = vmatpush1.bf16.msra.mxu0 0
        %1945 = vmatprep.subr.bf16.mxu0 0
        %1946 = vmatpush1.bf16.msra.mxu0 0
        %1947 = vmatprep.subr.bf16.mxu0 0
        %1948 = vmatpush1.bf16.msra.mxu0 0
        %1949 = vmatprep.subr.bf16.mxu0 0
        %1950 = vmatpush1.bf16.msra.mxu0 0
        %1951 = vmatprep.subr.bf16.mxu0 0
        %1952 = vmatpush1.bf16.msra.mxu0 0
        %1953 = vmatprep.subr.bf16.mxu0 0
        %1954 = vmatpush1.bf16.msra.mxu0 %v1935
        %1955 = vmatprep.subr.bf16.mxu0 0
        %1956 = vmatpush1.bf16.msra.mxu0 %v1934
        %1957 = vmatprep.subr.bf16.mxu0 0
        %1958 = vmatpush2.bf16.msra.mxu0 0
        %1959 = vmatprep.subr.bf16.mxu0 0
        %1960 = vmatpush2.bf16.msra.mxu0 0
        %1961 = vmatprep.subr.bf16.mxu0 0
        %1962 = vmatpush2.bf16.msra.mxu0 0
        %1963 = vmatprep.subr.bf16.mxu0 0
        %1964 = vmatpush2.bf16.msra.mxu0 0
        %1965 = vmatprep.subr.bf16.mxu0 0
        %1966 = vmatpush2.bf16.msra.mxu0 0
        %1967 = vmatprep.subr.bf16.mxu0 0
        %1968 = vmatpush2.bf16.msra.mxu0 0
        %1969 = vmatprep.subr.bf16.mxu0 0
        %1970 = vmatpush2.bf16.msra.mxu0 0
        %1971 = vmatprep.subr.bf16.mxu0 0
        %1972 = vmatpush2.bf16.msra.mxu0 0
        %1973 = vmatprep.mubr.bf16.mxu0 0
        %1974 = vmatmul.mubr.bf16.gmra.mxu0 %v1939
        %v1975 = vpop.f32.mrf.mxu0
        %v1976 = vadd.f32 %v1925, %v1975
        %v1977 = vpop.f32.mrf.mxu0
        %v1978 = vpop.f32.mrf.mxu0
        %v1979 = vpop.f32.mrf.mxu0
        %1980 = vdwg.mxu0
        %v1981 = vmax.f32 %v1976, 0.0
        %v1982 = vpack.c.bf16 %v1981, %v1981
        %v1983 = vld [vmem:[%s7] sm:$0xf]
        %v1984 = vld [vmem:[%s7 + $0x4] sm:$0xf]
        %v1985 = vld [vmem:[%s7 + $0x8] sm:$0xf]
        %v1986 = vld [vmem:[%s7 + $0xc] sm:$0xf]
        %v1987 = vld [vmem:[%s7 + $0x10] sm:$0xf]
        %v1988 = vld [vmem:[%s7 + $0x14] sm:$0xf]
        %v1989 = vld [vmem:[%s7 + $0x18] sm:$0xf]
        %v1990 = vld [vmem:[%s7 + $0x1c] sm:$0xf]
        %v1991 = vld [vmem:[%s7 + $0x20] sm:$0xf]
        %v1992 = vld [vmem:[%s7 + $0x24] sm:$0xf]
        %v1993 = vld [vmem:[%s7 + $0x28] sm:$0xf]
        %v1994 = vld [vmem:[%s7 + $0x2c] sm:$0xf]
        %v1995 = vld [vmem:[%s7 + $0x30] sm:$0xf]
        %v1996 = vld [vmem:[%s7 + $0x34] sm:$0xf]
        %v1997 = vld [vmem:[%s7 + $0x38] sm:$0xf]
        %v1998 = vld [vmem:[%s7 + $0x3c] sm:$0xf]
        %v1999 = vlaneseq
        %v2000 = vshrl.u32 %v1999, 7
        %v2001 = vsub.s32 4, %v2000
        %v2002 = vrot.slane %v490, %v2001
        %v2019 = vunpack.c.l.b16 %v1983
        %v2020 = vunpack.c.l.b16 %v1984
        %v2021 = vunpack.c.l.b16 %v1985
        %v2022 = vunpack.c.l.b16 %v1986
        %v2023 = vunpack.c.l.b16 %v1987
        %v2024 = vunpack.c.l.b16 %v1988
        %v2025 = vunpack.c.l.b16 %v1989
        %v2026 = vunpack.c.l.b16 %v1990
        %v2027 = vunpack.c.l.b16 %v1991
        %v2028 = vunpack.c.l.b16 %v1992
        %v2029 = vunpack.c.l.b16 %v1993
        %v2030 = vunpack.c.l.b16 %v1994
        %v2031 = vunpack.c.l.b16 %v1995
        %v2032 = vunpack.c.l.b16 %v1996
        %v2033 = vunpack.c.l.b16 %v1997
        %v2034 = vunpack.c.l.b16 %v1998
        %v2035 = vpack.c.b16 %v2020, %v2019
        %v2036 = vpack.c.b16 %v2022, %v2021
        %v2037 = vpack.c.b16 %v2024, %v2023
        %v2038 = vpack.c.b16 %v2026, %v2025
        %v2039 = vpack.c.b16 %v2028, %v2027
        %v2040 = vpack.c.b16 %v2030, %v2029
        %v2041 = vpack.c.b16 %v2032, %v2031
        %v2042 = vpack.c.b16 %v2034, %v2033
        %2051 = vmatprep.subr.bf16.mxu0 0
        %2052 = vmatpush1.bf16.msra.mxu0 %v2042
        %2053 = vmatprep.subr.bf16.mxu0 0
        %2054 = vmatpush1.bf16.msra.mxu0 %v2041
        %2055 = vmatprep.subr.bf16.mxu0 0
        %2056 = vmatpush1.bf16.msra.mxu0 %v2040
        %2057 = vmatprep.subr.bf16.mxu0 0
        %2058 = vmatpush1.bf16.msra.mxu0 %v2039
        %2059 = vmatprep.subr.bf16.mxu0 0
        %2060 = vmatpush1.bf16.msra.mxu0 %v2038
        %2061 = vmatprep.subr.bf16.mxu0 0
        %2062 = vmatpush1.bf16.msra.mxu0 %v2037
        %2063 = vmatprep.subr.bf16.mxu0 0
        %2064 = vmatpush1.bf16.msra.mxu0 %v2036
        %2065 = vmatprep.subr.bf16.mxu0 0
        %2066 = vmatpush1.bf16.msra.mxu0 %v2035
        %2067 = vmatprep.subr.bf16.mxu0 0
        %2068 = vmatpush2.bf16.msra.mxu0 0
        %2069 = vmatprep.subr.bf16.mxu0 0
        %2070 = vmatpush2.bf16.msra.mxu0 0
        %2071 = vmatprep.subr.bf16.mxu0 0
        %2072 = vmatpush2.bf16.msra.mxu0 0
        %2073 = vmatprep.subr.bf16.mxu0 0
        %2074 = vmatpush2.bf16.msra.mxu0 0
        %2075 = vmatprep.subr.bf16.mxu0 0
        %2076 = vmatpush2.bf16.msra.mxu0 0
        %2077 = vmatprep.subr.bf16.mxu0 0
        %2078 = vmatpush2.bf16.msra.mxu0 0
        %2079 = vmatprep.subr.bf16.mxu0 0
        %2080 = vmatpush2.bf16.msra.mxu0 0
        %2081 = vmatprep.subr.bf16.mxu0 0
        %2082 = vmatpush2.bf16.msra.mxu0 0
        %2083 = vmatprep.mubr.bf16.mxu0 0
        %2084 = vmatmul.mubr.bf16.gmra.mxu0 %v1982
        %v2085 = vpop.f32.mrf.mxu0
        %v2086 = vadd.f32 %v2002, %v2085
        %v2087 = vpop.f32.mrf.mxu0
        %v2088 = vpop.f32.mrf.mxu0
        %v2089 = vpop.f32.mrf.mxu0
        %2090 = vdwg.mxu0
        %v2091 = vadd.f32 %v1916, %v2086
        %v2092 = vsel %vm1879, %v2091, 0.0
        %2093 = vadd.xlane.f32.xlu0 %v2092
        %v2094 = vpop.xlane.xlu0 %2093
        %v2095 = vmul.f32 %v2094, %v1896
        %v2096 = vsub.f32 %v2091, %v2095
        %v2097 = vmul.f32 %v2096, %v2096
        %v2098 = vsel %vm1879, %v2097, 0.0
        %2099 = vadd.xlane.f32.xlu0 %v2098
        %v2100 = vpop.xlane.xlu0 %2099
        %v2101 = vmul.f32 %v2100, %v1896
        %v2102 = vadd.f32 %v2101, 1e-05
        %v2103 = vrsqrt.pop %v2102
        %v2104 = vmul.f32 %v2096, %v2103
        %v2105 = vlaneseq
        %v2106 = vshrl.u32 %v2105, 7
        %v2107 = vsub.s32 5, %v2106
        %v2108 = vrot.slane %v490, %v2107
        %v2109 = vmul.f32 %v2104, %v2108
        %v2110 = vlaneseq
        %v2111 = vshrl.u32 %v2110, 7
        %v2112 = vsub.s32 6, %v2111
        %v2113 = vrot.slane %v490, %v2112
        %v2114 = vadd.f32 %v2109, %v2113
        %s2115 = scalar_lea.vmem %s8, 8
        %v2116 = vld [vmem:[%s2115] sm:$0xff]
        %v2117 = vpack.c.bf16 %v2114, %v2114
        %s2118 = scalar_lea.vmem %s3, 192
        %v2119 = vld [vmem:[%s2118] sm:$0xf]
        %v2120 = vld [vmem:[%s2118 + $0x4] sm:$0xf]
        %v2121 = vld [vmem:[%s2118 + $0x8] sm:$0xf]
        %v2122 = vld [vmem:[%s2118 + $0xc] sm:$0xf]
        %v2123 = vld [vmem:[%s2118 + $0x10] sm:$0xf]
        %v2124 = vld [vmem:[%s2118 + $0x14] sm:$0xf]
        %v2125 = vld [vmem:[%s2118 + $0x18] sm:$0xf]
        %v2126 = vld [vmem:[%s2118 + $0x1c] sm:$0xf]
        %v2127 = vld [vmem:[%s2118 + $0x20] sm:$0xf]
        %v2128 = vld [vmem:[%s2118 + $0x24] sm:$0xf]
        %v2129 = vld [vmem:[%s2118 + $0x28] sm:$0xf]
        %v2130 = vld [vmem:[%s2118 + $0x2c] sm:$0xf]
        %v2131 = vld [vmem:[%s2118 + $0x30] sm:$0xf]
        %v2132 = vld [vmem:[%s2118 + $0x34] sm:$0xf]
        %v2133 = vld [vmem:[%s2118 + $0x38] sm:$0xf]
        %v2134 = vld [vmem:[%s2118 + $0x3c] sm:$0xf]
        %v2135 = vld [vmem:[%s2118 + $0x40] sm:$0xf]
        %v2136 = vld [vmem:[%s2118 + $0x44] sm:$0xf]
        %v2137 = vld [vmem:[%s2118 + $0x48] sm:$0xf]
        %v2138 = vld [vmem:[%s2118 + $0x4c] sm:$0xf]
        %v2139 = vld [vmem:[%s2118 + $0x50] sm:$0xf]
        %v2140 = vld [vmem:[%s2118 + $0x54] sm:$0xf]
        %v2141 = vld [vmem:[%s2118 + $0x58] sm:$0xf]
        %v2142 = vld [vmem:[%s2118 + $0x5c] sm:$0xf]
        %v2143 = vld [vmem:[%s2118 + $0x60] sm:$0xf]
        %v2144 = vld [vmem:[%s2118 + $0x64] sm:$0xf]
        %v2145 = vld [vmem:[%s2118 + $0x68] sm:$0xf]
        %v2146 = vld [vmem:[%s2118 + $0x6c] sm:$0xf]
        %v2147 = vld [vmem:[%s2118 + $0x70] sm:$0xf]
        %v2148 = vld [vmem:[%s2118 + $0x74] sm:$0xf]
        %v2149 = vld [vmem:[%s2118 + $0x78] sm:$0xf]
        %v2150 = vld [vmem:[%s2118 + $0x7c] sm:$0xf]
        %v2151 = vld [vmem:[%s2118 + $0x80] sm:$0xf]
        %v2152 = vld [vmem:[%s2118 + $0x84] sm:$0xf]
        %v2153 = vld [vmem:[%s2118 + $0x88] sm:$0xf]
        %v2154 = vld [vmem:[%s2118 + $0x8c] sm:$0xf]
        %v2155 = vld [vmem:[%s2118 + $0x90] sm:$0xf]
        %v2156 = vld [vmem:[%s2118 + $0x94] sm:$0xf]
        %v2157 = vld [vmem:[%s2118 + $0x98] sm:$0xf]
        %v2158 = vld [vmem:[%s2118 + $0x9c] sm:$0xf]
        %v2159 = vld [vmem:[%s2118 + $0xa0] sm:$0xf]
        %v2160 = vld [vmem:[%s2118 + $0xa4] sm:$0xf]
        %v2161 = vld [vmem:[%s2118 + $0xa8] sm:$0xf]
        %v2162 = vld [vmem:[%s2118 + $0xac] sm:$0xf]
        %v2163 = vld [vmem:[%s2118 + $0xb0] sm:$0xf]
        %v2164 = vld [vmem:[%s2118 + $0xb4] sm:$0xf]
        %v2165 = vld [vmem:[%s2118 + $0xb8] sm:$0xf]
        %v2166 = vld [vmem:[%s2118 + $0xbc] sm:$0xf]
        %s2167 = scalar_lea.vmem %s4, 12
        %v2168 = vld [vmem:[%s2167] sm:$0x1]
        %v2169 = vld [vmem:[%s2167 + $0x1] sm:$0x1]
        %v2170 = vld [vmem:[%s2167 + $0x2] sm:$0x1]
        %v2171 = vld [vmem:[%s2167 + $0x3] sm:$0x1]
        %v2172 = vld [vmem:[%s2167 + $0x4] sm:$0x1]
        %v2173 = vld [vmem:[%s2167 + $0x5] sm:$0x1]
        %v2174 = vld [vmem:[%s2167 + $0x6] sm:$0x1]
        %v2175 = vld [vmem:[%s2167 + $0x7] sm:$0x1]
        %v2176 = vld [vmem:[%s2167 + $0x8] sm:$0x1]
        %v2177 = vld [vmem:[%s2167 + $0x9] sm:$0x1]
        %v2178 = vld [vmem:[%s2167 + $0xa] sm:$0x1]
        %v2179 = vld [vmem:[%s2167 + $0xb] sm:$0x1]
        %v2192 = vlaneseq
        %v2193 = vshrl.u32 %v2192, 7
        %v2194 = vsub.s32 0, %v2193
        %v2195 = vrot.slane %v2168, %v2194
        %v2196 = vlaneseq
        %v2197 = vshrl.u32 %v2196, 7
        %v2198 = vsub.s32 0, %v2197
        %v2199 = vrot.slane %v2169, %v2198
        %v2200 = vlaneseq
        %v2201 = vshrl.u32 %v2200, 7
        %v2202 = vsub.s32 0, %v2201
        %v2203 = vrot.slane %v2170, %v2202
        %v2204 = vlaneseq
        %v2205 = vshrl.u32 %v2204, 7
        %v2206 = vsub.s32 0, %v2205
        %v2207 = vrot.slane %v2171, %v2206
        %v2208 = vlaneseq
        %v2209 = vshrl.u32 %v2208, 7
        %v2210 = vsub.s32 0, %v2209
        %v2211 = vrot.slane %v2172, %v2210
        %v2212 = vlaneseq
        %v2213 = vshrl.u32 %v2212, 7
        %v2214 = vsub.s32 0, %v2213
        %v2215 = vrot.slane %v2173, %v2214
        %v2216 = vlaneseq
        %v2217 = vshrl.u32 %v2216, 7
        %v2218 = vsub.s32 0, %v2217
        %v2219 = vrot.slane %v2174, %v2218
        %v2220 = vlaneseq
        %v2221 = vshrl.u32 %v2220, 7
        %v2222 = vsub.s32 0, %v2221
        %v2223 = vrot.slane %v2175, %v2222
        %v2224 = vlaneseq
        %v2225 = vshrl.u32 %v2224, 7
        %v2226 = vsub.s32 0, %v2225
        %v2227 = vrot.slane %v2176, %v2226
        %v2228 = vlaneseq
        %v2229 = vshrl.u32 %v2228, 7
        %v2230 = vsub.s32 0, %v2229
        %v2231 = vrot.slane %v2177, %v2230
        %v2232 = vlaneseq
        %v2233 = vshrl.u32 %v2232, 7
        %v2234 = vsub.s32 0, %v2233
        %v2235 = vrot.slane %v2178, %v2234
        %v2236 = vlaneseq
        %v2237 = vshrl.u32 %v2236, 7
        %v2238 = vsub.s32 0, %v2237
        %v2239 = vrot.slane %v2179, %v2238
        %v2256 = vunpack.c.l.b16 %v2119
        %v2257 = vunpack.c.l.b16 %v2120
        %v2258 = vunpack.c.l.b16 %v2121
        %v2259 = vunpack.c.l.b16 %v2122
        %v2260 = vpack.c.b16 %v2257, %v2256
        %v2261 = vpack.c.b16 %v2259, %v2258
        %v2265 = vsel %vm636, %v2117, 0
        %2267 = vmatprep.subr.bf16.mxu0 0
        %2268 = vmatpush1.bf16.msra.mxu0 0
        %2269 = vmatprep.subr.bf16.mxu0 0
        %2270 = vmatpush1.bf16.msra.mxu0 0
        %2271 = vmatprep.subr.bf16.mxu0 0
        %2272 = vmatpush1.bf16.msra.mxu0 0
        %2273 = vmatprep.subr.bf16.mxu0 0
        %2274 = vmatpush1.bf16.msra.mxu0 0
        %2275 = vmatprep.subr.bf16.mxu0 0
        %2276 = vmatpush1.bf16.msra.mxu0 0
        %2277 = vmatprep.subr.bf16.mxu0 0
        %2278 = vmatpush1.bf16.msra.mxu0 0
        %2279 = vmatprep.subr.bf16.mxu0 0
        %2280 = vmatpush1.bf16.msra.mxu0 %v2261
        %2281 = vmatprep.subr.bf16.mxu0 0
        %2282 = vmatpush1.bf16.msra.mxu0 %v2260
        %2283 = vmatprep.subr.bf16.mxu0 0
        %2284 = vmatpush2.bf16.msra.mxu0 0
        %2285 = vmatprep.subr.bf16.mxu0 0
        %2286 = vmatpush2.bf16.msra.mxu0 0
        %2287 = vmatprep.subr.bf16.mxu0 0
        %2288 = vmatpush2.bf16.msra.mxu0 0
        %2289 = vmatprep.subr.bf16.mxu0 0
        %2290 = vmatpush2.bf16.msra.mxu0 0
        %2291 = vmatprep.subr.bf16.mxu0 0
        %2292 = vmatpush2.bf16.msra.mxu0 0
        %2293 = vmatprep.subr.bf16.mxu0 0
        %2294 = vmatpush2.bf16.msra.mxu0 0
        %2295 = vmatprep.subr.bf16.mxu0 0
        %2296 = vmatpush2.bf16.msra.mxu0 0
        %2297 = vmatprep.subr.bf16.mxu0 0
        %2298 = vmatpush2.bf16.msra.mxu0 0
        %2299 = vmatprep.mubr.bf16.mxu0 0
        %2300 = vmatmul.mubr.bf16.gmra.mxu0 %v2265
        %v2301 = vpop.f32.mrf.mxu0
        %v2302 = vadd.f32 %v2195, %v2301
        %v2303 = vpop.f32.mrf.mxu0
        %v2304 = vpop.f32.mrf.mxu0
        %v2305 = vpop.f32.mrf.mxu0
        %2306 = vdwg.mxu0
        %v2311 = vunpack.c.l.b16 %v2123
        %v2312 = vunpack.c.l.b16 %v2124
        %v2313 = vunpack.c.l.b16 %v2125
        %v2314 = vunpack.c.l.b16 %v2126
        %v2315 = vpack.c.b16 %v2312, %v2311
        %v2316 = vpack.c.b16 %v2314, %v2313
        %2319 = vmatprep.subr.bf16.mxu0 0
        %2320 = vmatpush1.bf16.msra.mxu0 0
        %2321 = vmatprep.subr.bf16.mxu0 0
        %2322 = vmatpush1.bf16.msra.mxu0 0
        %2323 = vmatprep.subr.bf16.mxu0 0
        %2324 = vmatpush1.bf16.msra.mxu0 0
        %2325 = vmatprep.subr.bf16.mxu0 0
        %2326 = vmatpush1.bf16.msra.mxu0 0
        %2327 = vmatprep.subr.bf16.mxu0 0
        %2328 = vmatpush1.bf16.msra.mxu0 0
        %2329 = vmatprep.subr.bf16.mxu0 0
        %2330 = vmatpush1.bf16.msra.mxu0 0
        %2331 = vmatprep.subr.bf16.mxu0 0
        %2332 = vmatpush1.bf16.msra.mxu0 %v2316
        %2333 = vmatprep.subr.bf16.mxu0 0
        %2334 = vmatpush1.bf16.msra.mxu0 %v2315
        %2335 = vmatprep.subr.bf16.mxu0 0
        %2336 = vmatpush2.bf16.msra.mxu0 0
        %2337 = vmatprep.subr.bf16.mxu0 0
        %2338 = vmatpush2.bf16.msra.mxu0 0
        %2339 = vmatprep.subr.bf16.mxu0 0
        %2340 = vmatpush2.bf16.msra.mxu0 0
        %2341 = vmatprep.subr.bf16.mxu0 0
        %2342 = vmatpush2.bf16.msra.mxu0 0
        %2343 = vmatprep.subr.bf16.mxu0 0
        %2344 = vmatpush2.bf16.msra.mxu0 0
        %2345 = vmatprep.subr.bf16.mxu0 0
        %2346 = vmatpush2.bf16.msra.mxu0 0
        %2347 = vmatprep.subr.bf16.mxu0 0
        %2348 = vmatpush2.bf16.msra.mxu0 0
        %2349 = vmatprep.subr.bf16.mxu0 0
        %2350 = vmatpush2.bf16.msra.mxu0 0
        %2351 = vmatprep.mubr.bf16.mxu0 0
        %2352 = vmatmul.mubr.bf16.gmra.mxu0 %v2265
        %v2353 = vpop.f32.mrf.mxu0
        %v2354 = vadd.f32 %v2199, %v2353
        %v2355 = vpop.f32.mrf.mxu0
        %v2356 = vpop.f32.mrf.mxu0
        %v2357 = vpop.f32.mrf.mxu0
        %2358 = vdwg.mxu0
        %v2363 = vunpack.c.l.b16 %v2127
        %v2364 = vunpack.c.l.b16 %v2128
        %v2365 = vunpack.c.l.b16 %v2129
        %v2366 = vunpack.c.l.b16 %v2130
        %v2367 = vpack.c.b16 %v2364, %v2363
        %v2368 = vpack.c.b16 %v2366, %v2365
        %2371 = vmatprep.subr.bf16.mxu0 0
        %2372 = vmatpush1.bf16.msra.mxu0 0
        %2373 = vmatprep.subr.bf16.mxu0 0
        %2374 = vmatpush1.bf16.msra.mxu0 0
        %2375 = vmatprep.subr.bf16.mxu0 0
        %2376 = vmatpush1.bf16.msra.mxu0 0
        %2377 = vmatprep.subr.bf16.mxu0 0
        %2378 = vmatpush1.bf16.msra.mxu0 0
        %2379 = vmatprep.subr.bf16.mxu0 0
        %2380 = vmatpush1.bf16.msra.mxu0 0
        %2381 = vmatprep.subr.bf16.mxu0 0
        %2382 = vmatpush1.bf16.msra.mxu0 0
        %2383 = vmatprep.subr.bf16.mxu0 0
        %2384 = vmatpush1.bf16.msra.mxu0 %v2368
        %2385 = vmatprep.subr.bf16.mxu0 0
        %2386 = vmatpush1.bf16.msra.mxu0 %v2367
        %2387 = vmatprep.subr.bf16.mxu0 0
        %2388 = vmatpush2.bf16.msra.mxu0 0
        %2389 = vmatprep.subr.bf16.mxu0 0
        %2390 = vmatpush2.bf16.msra.mxu0 0
        %2391 = vmatprep.subr.bf16.mxu0 0
        %2392 = vmatpush2.bf16.msra.mxu0 0
        %2393 = vmatprep.subr.bf16.mxu0 0
        %2394 = vmatpush2.bf16.msra.mxu0 0
        %2395 = vmatprep.subr.bf16.mxu0 0
        %2396 = vmatpush2.bf16.msra.mxu0 0
        %2397 = vmatprep.subr.bf16.mxu0 0
        %2398 = vmatpush2.bf16.msra.mxu0 0
        %2399 = vmatprep.subr.bf16.mxu0 0
        %2400 = vmatpush2.bf16.msra.mxu0 0
        %2401 = vmatprep.subr.bf16.mxu0 0
        %2402 = vmatpush2.bf16.msra.mxu0 0
        %2403 = vmatprep.mubr.bf16.mxu0 0
        %2404 = vmatmul.mubr.bf16.gmra.mxu0 %v2265
        %v2405 = vpop.f32.mrf.mxu0
        %v2406 = vadd.f32 %v2203, %v2405
        %v2407 = vpop.f32.mrf.mxu0
        %v2408 = vpop.f32.mrf.mxu0
        %v2409 = vpop.f32.mrf.mxu0
        %2410 = vdwg.mxu0
        %v2415 = vunpack.c.l.b16 %v2131
        %v2416 = vunpack.c.l.b16 %v2132
        %v2417 = vunpack.c.l.b16 %v2133
        %v2418 = vunpack.c.l.b16 %v2134
        %v2419 = vpack.c.b16 %v2416, %v2415
        %v2420 = vpack.c.b16 %v2418, %v2417
        %2423 = vmatprep.subr.bf16.mxu0 0
        %2424 = vmatpush1.bf16.msra.mxu0 0
        %2425 = vmatprep.subr.bf16.mxu0 0
        %2426 = vmatpush1.bf16.msra.mxu0 0
        %2427 = vmatprep.subr.bf16.mxu0 0
        %2428 = vmatpush1.bf16.msra.mxu0 0
        %2429 = vmatprep.subr.bf16.mxu0 0
        %2430 = vmatpush1.bf16.msra.mxu0 0
        %2431 = vmatprep.subr.bf16.mxu0 0
        %2432 = vmatpush1.bf16.msra.mxu0 0
        %2433 = vmatprep.subr.bf16.mxu0 0
        %2434 = vmatpush1.bf16.msra.mxu0 0
        %2435 = vmatprep.subr.bf16.mxu0 0
        %2436 = vmatpush1.bf16.msra.mxu0 %v2420
        %2437 = vmatprep.subr.bf16.mxu0 0
        %2438 = vmatpush1.bf16.msra.mxu0 %v2419
        %2439 = vmatprep.subr.bf16.mxu0 0
        %2440 = vmatpush2.bf16.msra.mxu0 0
        %2441 = vmatprep.subr.bf16.mxu0 0
        %2442 = vmatpush2.bf16.msra.mxu0 0
        %2443 = vmatprep.subr.bf16.mxu0 0
        %2444 = vmatpush2.bf16.msra.mxu0 0
        %2445 = vmatprep.subr.bf16.mxu0 0
        %2446 = vmatpush2.bf16.msra.mxu0 0
        %2447 = vmatprep.subr.bf16.mxu0 0
        %2448 = vmatpush2.bf16.msra.mxu0 0
        %2449 = vmatprep.subr.bf16.mxu0 0
        %2450 = vmatpush2.bf16.msra.mxu0 0
        %2451 = vmatprep.subr.bf16.mxu0 0
        %2452 = vmatpush2.bf16.msra.mxu0 0
        %2453 = vmatprep.subr.bf16.mxu0 0
        %2454 = vmatpush2.bf16.msra.mxu0 0
        %2455 = vmatprep.mubr.bf16.mxu0 0
        %2456 = vmatmul.mubr.bf16.gmra.mxu0 %v2265
        %v2457 = vpop.f32.mrf.mxu0
        %v2458 = vadd.f32 %v2207, %v2457
        %v2459 = vpop.f32.mrf.mxu0
        %v2460 = vpop.f32.mrf.mxu0
        %v2461 = vpop.f32.mrf.mxu0
        %2462 = vdwg.mxu0
        %v2467 = vunpack.c.l.b16 %v2135
        %v2468 = vunpack.c.l.b16 %v2136
        %v2469 = vunpack.c.l.b16 %v2137
        %v2470 = vunpack.c.l.b16 %v2138
        %v2471 = vpack.c.b16 %v2468, %v2467
        %v2472 = vpack.c.b16 %v2470, %v2469
        %2475 = vmatprep.subr.bf16.mxu0 0
        %2476 = vmatpush1.bf16.msra.mxu0 0
        %2477 = vmatprep.subr.bf16.mxu0 0
        %2478 = vmatpush1.bf16.msra.mxu0 0
        %2479 = vmatprep.subr.bf16.mxu0 0
        %2480 = vmatpush1.bf16.msra.mxu0 0
        %2481 = vmatprep.subr.bf16.mxu0 0
        %2482 = vmatpush1.bf16.msra.mxu0 0
        %2483 = vmatprep.subr.bf16.mxu0 0
        %2484 = vmatpush1.bf16.msra.mxu0 0
        %2485 = vmatprep.subr.bf16.mxu0 0
        %2486 = vmatpush1.bf16.msra.mxu0 0
        %2487 = vmatprep.subr.bf16.mxu0 0
        %2488 = vmatpush1.bf16.msra.mxu0 %v2472
        %2489 = vmatprep.subr.bf16.mxu0 0
        %2490 = vmatpush1.bf16.msra.mxu0 %v2471
        %2491 = vmatprep.subr.bf16.mxu0 0
        %2492 = vmatpush2.bf16.msra.mxu0 0
        %2493 = vmatprep.subr.bf16.mxu0 0
        %2494 = vmatpush2.bf16.msra.mxu0 0
        %2495 = vmatprep.subr.bf16.mxu0 0
        %2496 = vmatpush2.bf16.msra.mxu0 0
        %2497 = vmatprep.subr.bf16.mxu0 0
        %2498 = vmatpush2.bf16.msra.mxu0 0
        %2499 = vmatprep.subr.bf16.mxu0 0
        %2500 = vmatpush2.bf16.msra.mxu0 0
        %2501 = vmatprep.subr.bf16.mxu0 0
        %2502 = vmatpush2.bf16.msra.mxu0 0
        %2503 = vmatprep.subr.bf16.mxu0 0
        %2504 = vmatpush2.bf16.msra.mxu0 0
        %2505 = vmatprep.subr.bf16.mxu0 0
        %2506 = vmatpush2.bf16.msra.mxu0 0
        %2507 = vmatprep.mubr.bf16.mxu0 0
        %2508 = vmatmul.mubr.bf16.gmra.mxu0 %v2265
        %v2509 = vpop.f32.mrf.mxu0
        %v2510 = vadd.f32 %v2211, %v2509
        %v2511 = vpop.f32.mrf.mxu0
        %v2512 = vpop.f32.mrf.mxu0
        %v2513 = vpop.f32.mrf.mxu0
        %2514 = vdwg.mxu0
        %v2519 = vunpack.c.l.b16 %v2139
        %v2520 = vunpack.c.l.b16 %v2140
        %v2521 = vunpack.c.l.b16 %v2141
        %v2522 = vunpack.c.l.b16 %v2142
        %v2523 = vpack.c.b16 %v2520, %v2519
        %v2524 = vpack.c.b16 %v2522, %v2521
        %2527 = vmatprep.subr.bf16.mxu0 0
        %2528 = vmatpush1.bf16.msra.mxu0 0
        %2529 = vmatprep.subr.bf16.mxu0 0
        %2530 = vmatpush1.bf16.msra.mxu0 0
        %2531 = vmatprep.subr.bf16.mxu0 0
        %2532 = vmatpush1.bf16.msra.mxu0 0
        %2533 = vmatprep.subr.bf16.mxu0 0
        %2534 = vmatpush1.bf16.msra.mxu0 0
        %2535 = vmatprep.subr.bf16.mxu0 0
        %2536 = vmatpush1.bf16.msra.mxu0 0
        %2537 = vmatprep.subr.bf16.mxu0 0
        %2538 = vmatpush1.bf16.msra.mxu0 0
        %2539 = vmatprep.subr.bf16.mxu0 0
        %2540 = vmatpush1.bf16.msra.mxu0 %v2524
        %2541 = vmatprep.subr.bf16.mxu0 0
        %2542 = vmatpush1.bf16.msra.mxu0 %v2523
        %2543 = vmatprep.subr.bf16.mxu0 0
        %2544 = vmatpush2.bf16.msra.mxu0 0
        %2545 = vmatprep.subr.bf16.mxu0 0
        %2546 = vmatpush2.bf16.msra.mxu0 0
        %2547 = vmatprep.subr.bf16.mxu0 0
        %2548 = vmatpush2.bf16.msra.mxu0 0
        %2549 = vmatprep.subr.bf16.mxu0 0
        %2550 = vmatpush2.bf16.msra.mxu0 0
        %2551 = vmatprep.subr.bf16.mxu0 0
        %2552 = vmatpush2.bf16.msra.mxu0 0
        %2553 = vmatprep.subr.bf16.mxu0 0
        %2554 = vmatpush2.bf16.msra.mxu0 0
        %2555 = vmatprep.subr.bf16.mxu0 0
        %2556 = vmatpush2.bf16.msra.mxu0 0
        %2557 = vmatprep.subr.bf16.mxu0 0
        %2558 = vmatpush2.bf16.msra.mxu0 0
        %2559 = vmatprep.mubr.bf16.mxu0 0
        %2560 = vmatmul.mubr.bf16.gmra.mxu0 %v2265
        %v2561 = vpop.f32.mrf.mxu0
        %v2562 = vadd.f32 %v2215, %v2561
        %v2563 = vpop.f32.mrf.mxu0
        %v2564 = vpop.f32.mrf.mxu0
        %v2565 = vpop.f32.mrf.mxu0
        %2566 = vdwg.mxu0
        %v2571 = vunpack.c.l.b16 %v2143
        %v2572 = vunpack.c.l.b16 %v2144
        %v2573 = vunpack.c.l.b16 %v2145
        %v2574 = vunpack.c.l.b16 %v2146
        %v2575 = vpack.c.b16 %v2572, %v2571
        %v2576 = vpack.c.b16 %v2574, %v2573
        %2579 = vmatprep.subr.bf16.mxu0 0
        %2580 = vmatpush1.bf16.msra.mxu0 0
        %2581 = vmatprep.subr.bf16.mxu0 0
        %2582 = vmatpush1.bf16.msra.mxu0 0
        %2583 = vmatprep.subr.bf16.mxu0 0
        %2584 = vmatpush1.bf16.msra.mxu0 0
        %2585 = vmatprep.subr.bf16.mxu0 0
        %2586 = vmatpush1.bf16.msra.mxu0 0
        %2587 = vmatprep.subr.bf16.mxu0 0
        %2588 = vmatpush1.bf16.msra.mxu0 0
        %2589 = vmatprep.subr.bf16.mxu0 0
        %2590 = vmatpush1.bf16.msra.mxu0 0
        %2591 = vmatprep.subr.bf16.mxu0 0
        %2592 = vmatpush1.bf16.msra.mxu0 %v2576
        %2593 = vmatprep.subr.bf16.mxu0 0
        %2594 = vmatpush1.bf16.msra.mxu0 %v2575
        %2595 = vmatprep.subr.bf16.mxu0 0
        %2596 = vmatpush2.bf16.msra.mxu0 0
        %2597 = vmatprep.subr.bf16.mxu0 0
        %2598 = vmatpush2.bf16.msra.mxu0 0
        %2599 = vmatprep.subr.bf16.mxu0 0
        %2600 = vmatpush2.bf16.msra.mxu0 0
        %2601 = vmatprep.subr.bf16.mxu0 0
        %2602 = vmatpush2.bf16.msra.mxu0 0
        %2603 = vmatprep.subr.bf16.mxu0 0
        %2604 = vmatpush2.bf16.msra.mxu0 0
        %2605 = vmatprep.subr.bf16.mxu0 0
        %2606 = vmatpush2.bf16.msra.mxu0 0
        %2607 = vmatprep.subr.bf16.mxu0 0
        %2608 = vmatpush2.bf16.msra.mxu0 0
        %2609 = vmatprep.subr.bf16.mxu0 0
        %2610 = vmatpush2.bf16.msra.mxu0 0
        %2611 = vmatprep.mubr.bf16.mxu0 0
        %2612 = vmatmul.mubr.bf16.gmra.mxu0 %v2265
        %v2613 = vpop.f32.mrf.mxu0
        %v2614 = vadd.f32 %v2219, %v2613
        %v2615 = vpop.f32.mrf.mxu0
        %v2616 = vpop.f32.mrf.mxu0
        %v2617 = vpop.f32.mrf.mxu0
        %2618 = vdwg.mxu0
        %v2623 = vunpack.c.l.b16 %v2147
        %v2624 = vunpack.c.l.b16 %v2148
        %v2625 = vunpack.c.l.b16 %v2149
        %v2626 = vunpack.c.l.b16 %v2150
        %v2627 = vpack.c.b16 %v2624, %v2623
        %v2628 = vpack.c.b16 %v2626, %v2625
        %2631 = vmatprep.subr.bf16.mxu0 0
        %2632 = vmatpush1.bf16.msra.mxu0 0
        %2633 = vmatprep.subr.bf16.mxu0 0
        %2634 = vmatpush1.bf16.msra.mxu0 0
        %2635 = vmatprep.subr.bf16.mxu0 0
        %2636 = vmatpush1.bf16.msra.mxu0 0
        %2637 = vmatprep.subr.bf16.mxu0 0
        %2638 = vmatpush1.bf16.msra.mxu0 0
        %2639 = vmatprep.subr.bf16.mxu0 0
        %2640 = vmatpush1.bf16.msra.mxu0 0
        %2641 = vmatprep.subr.bf16.mxu0 0
        %2642 = vmatpush1.bf16.msra.mxu0 0
        %2643 = vmatprep.subr.bf16.mxu0 0
        %2644 = vmatpush1.bf16.msra.mxu0 %v2628
        %2645 = vmatprep.subr.bf16.mxu0 0
        %2646 = vmatpush1.bf16.msra.mxu0 %v2627
        %2647 = vmatprep.subr.bf16.mxu0 0
        %2648 = vmatpush2.bf16.msra.mxu0 0
        %2649 = vmatprep.subr.bf16.mxu0 0
        %2650 = vmatpush2.bf16.msra.mxu0 0
        %2651 = vmatprep.subr.bf16.mxu0 0
        %2652 = vmatpush2.bf16.msra.mxu0 0
        %2653 = vmatprep.subr.bf16.mxu0 0
        %2654 = vmatpush2.bf16.msra.mxu0 0
        %2655 = vmatprep.subr.bf16.mxu0 0
        %2656 = vmatpush2.bf16.msra.mxu0 0
        %2657 = vmatprep.subr.bf16.mxu0 0
        %2658 = vmatpush2.bf16.msra.mxu0 0
        %2659 = vmatprep.subr.bf16.mxu0 0
        %2660 = vmatpush2.bf16.msra.mxu0 0
        %2661 = vmatprep.subr.bf16.mxu0 0
        %2662 = vmatpush2.bf16.msra.mxu0 0
        %2663 = vmatprep.mubr.bf16.mxu0 0
        %2664 = vmatmul.mubr.bf16.gmra.mxu0 %v2265
        %v2665 = vpop.f32.mrf.mxu0
        %v2666 = vadd.f32 %v2223, %v2665
        %v2667 = vpop.f32.mrf.mxu0
        %v2668 = vpop.f32.mrf.mxu0
        %v2669 = vpop.f32.mrf.mxu0
        %2670 = vdwg.mxu0
        %v2675 = vunpack.c.l.b16 %v2151
        %v2676 = vunpack.c.l.b16 %v2152
        %v2677 = vunpack.c.l.b16 %v2153
        %v2678 = vunpack.c.l.b16 %v2154
        %v2679 = vpack.c.b16 %v2676, %v2675
        %v2680 = vpack.c.b16 %v2678, %v2677
        %2683 = vmatprep.subr.bf16.mxu0 0
        %2684 = vmatpush1.bf16.msra.mxu0 0
        %2685 = vmatprep.subr.bf16.mxu0 0
        %2686 = vmatpush1.bf16.msra.mxu0 0
        %2687 = vmatprep.subr.bf16.mxu0 0
        %2688 = vmatpush1.bf16.msra.mxu0 0
        %2689 = vmatprep.subr.bf16.mxu0 0
        %2690 = vmatpush1.bf16.msra.mxu0 0
        %2691 = vmatprep.subr.bf16.mxu0 0
        %2692 = vmatpush1.bf16.msra.mxu0 0
        %2693 = vmatprep.subr.bf16.mxu0 0
        %2694 = vmatpush1.bf16.msra.mxu0 0
        %2695 = vmatprep.subr.bf16.mxu0 0
        %2696 = vmatpush1.bf16.msra.mxu0 %v2680
        %2697 = vmatprep.subr.bf16.mxu0 0
        %2698 = vmatpush1.bf16.msra.mxu0 %v2679
        %2699 = vmatprep.subr.bf16.mxu0 0
        %2700 = vmatpush2.bf16.msra.mxu0 0
        %2701 = vmatprep.subr.bf16.mxu0 0
        %2702 = vmatpush2.bf16.msra.mxu0 0
        %2703 = vmatprep.subr.bf16.mxu0 0
        %2704 = vmatpush2.bf16.msra.mxu0 0
        %2705 = vmatprep.subr.bf16.mxu0 0
        %2706 = vmatpush2.bf16.msra.mxu0 0
        %2707 = vmatprep.subr.bf16.mxu0 0
        %2708 = vmatpush2.bf16.msra.mxu0 0
        %2709 = vmatprep.subr.bf16.mxu0 0
        %2710 = vmatpush2.bf16.msra.mxu0 0
        %2711 = vmatprep.subr.bf16.mxu0 0
        %2712 = vmatpush2.bf16.msra.mxu0 0
        %2713 = vmatprep.subr.bf16.mxu0 0
        %2714 = vmatpush2.bf16.msra.mxu0 0
        %2715 = vmatprep.mubr.bf16.mxu0 0
        %2716 = vmatmul.mubr.bf16.gmra.mxu0 %v2265
        %v2717 = vpop.f32.mrf.mxu0
        %v2718 = vadd.f32 %v2227, %v2717
        %v2719 = vpop.f32.mrf.mxu0
        %v2720 = vpop.f32.mrf.mxu0
        %v2721 = vpop.f32.mrf.mxu0
        %2722 = vdwg.mxu0
        %v2727 = vunpack.c.l.b16 %v2155
        %v2728 = vunpack.c.l.b16 %v2156
        %v2729 = vunpack.c.l.b16 %v2157
        %v2730 = vunpack.c.l.b16 %v2158
        %v2731 = vpack.c.b16 %v2728, %v2727
        %v2732 = vpack.c.b16 %v2730, %v2729
        %2735 = vmatprep.subr.bf16.mxu0 0
        %2736 = vmatpush1.bf16.msra.mxu0 0
        %2737 = vmatprep.subr.bf16.mxu0 0
        %2738 = vmatpush1.bf16.msra.mxu0 0
        %2739 = vmatprep.subr.bf16.mxu0 0
        %2740 = vmatpush1.bf16.msra.mxu0 0
        %2741 = vmatprep.subr.bf16.mxu0 0
        %2742 = vmatpush1.bf16.msra.mxu0 0
        %2743 = vmatprep.subr.bf16.mxu0 0
        %2744 = vmatpush1.bf16.msra.mxu0 0
        %2745 = vmatprep.subr.bf16.mxu0 0
        %2746 = vmatpush1.bf16.msra.mxu0 0
        %2747 = vmatprep.subr.bf16.mxu0 0
        %2748 = vmatpush1.bf16.msra.mxu0 %v2732
        %2749 = vmatprep.subr.bf16.mxu0 0
        %2750 = vmatpush1.bf16.msra.mxu0 %v2731
        %2751 = vmatprep.subr.bf16.mxu0 0
        %2752 = vmatpush2.bf16.msra.mxu0 0
        %2753 = vmatprep.subr.bf16.mxu0 0
        %2754 = vmatpush2.bf16.msra.mxu0 0
        %2755 = vmatprep.subr.bf16.mxu0 0
        %2756 = vmatpush2.bf16.msra.mxu0 0
        %2757 = vmatprep.subr.bf16.mxu0 0
        %2758 = vmatpush2.bf16.msra.mxu0 0
        %2759 = vmatprep.subr.bf16.mxu0 0
        %2760 = vmatpush2.bf16.msra.mxu0 0
        %2761 = vmatprep.subr.bf16.mxu0 0
        %2762 = vmatpush2.bf16.msra.mxu0 0
        %2763 = vmatprep.subr.bf16.mxu0 0
        %2764 = vmatpush2.bf16.msra.mxu0 0
        %2765 = vmatprep.subr.bf16.mxu0 0
        %2766 = vmatpush2.bf16.msra.mxu0 0
        %2767 = vmatprep.mubr.bf16.mxu0 0
        %2768 = vmatmul.mubr.bf16.gmra.mxu0 %v2265
        %v2769 = vpop.f32.mrf.mxu0
        %v2770 = vadd.f32 %v2231, %v2769
        %v2771 = vpop.f32.mrf.mxu0
        %v2772 = vpop.f32.mrf.mxu0
        %v2773 = vpop.f32.mrf.mxu0
        %2774 = vdwg.mxu0
        %v2779 = vunpack.c.l.b16 %v2159
        %v2780 = vunpack.c.l.b16 %v2160
        %v2781 = vunpack.c.l.b16 %v2161
        %v2782 = vunpack.c.l.b16 %v2162
        %v2783 = vpack.c.b16 %v2780, %v2779
        %v2784 = vpack.c.b16 %v2782, %v2781
        %2787 = vmatprep.subr.bf16.mxu0 0
        %2788 = vmatpush1.bf16.msra.mxu0 0
        %2789 = vmatprep.subr.bf16.mxu0 0
        %2790 = vmatpush1.bf16.msra.mxu0 0
        %2791 = vmatprep.subr.bf16.mxu0 0
        %2792 = vmatpush1.bf16.msra.mxu0 0
        %2793 = vmatprep.subr.bf16.mxu0 0
        %2794 = vmatpush1.bf16.msra.mxu0 0
        %2795 = vmatprep.subr.bf16.mxu0 0
        %2796 = vmatpush1.bf16.msra.mxu0 0
        %2797 = vmatprep.subr.bf16.mxu0 0
        %2798 = vmatpush1.bf16.msra.mxu0 0
        %2799 = vmatprep.subr.bf16.mxu0 0
        %2800 = vmatpush1.bf16.msra.mxu0 %v2784
        %2801 = vmatprep.subr.bf16.mxu0 0
        %2802 = vmatpush1.bf16.msra.mxu0 %v2783
        %2803 = vmatprep.subr.bf16.mxu0 0
        %2804 = vmatpush2.bf16.msra.mxu0 0
        %2805 = vmatprep.subr.bf16.mxu0 0
        %2806 = vmatpush2.bf16.msra.mxu0 0
        %2807 = vmatprep.subr.bf16.mxu0 0
        %2808 = vmatpush2.bf16.msra.mxu0 0
        %2809 = vmatprep.subr.bf16.mxu0 0
        %2810 = vmatpush2.bf16.msra.mxu0 0
        %2811 = vmatprep.subr.bf16.mxu0 0
        %2812 = vmatpush2.bf16.msra.mxu0 0
        %2813 = vmatprep.subr.bf16.mxu0 0
        %2814 = vmatpush2.bf16.msra.mxu0 0
        %2815 = vmatprep.subr.bf16.mxu0 0
        %2816 = vmatpush2.bf16.msra.mxu0 0
        %2817 = vmatprep.subr.bf16.mxu0 0
        %2818 = vmatpush2.bf16.msra.mxu0 0
        %2819 = vmatprep.mubr.bf16.mxu0 0
        %2820 = vmatmul.mubr.bf16.gmra.mxu0 %v2265
        %v2821 = vpop.f32.mrf.mxu0
        %v2822 = vadd.f32 %v2235, %v2821
        %v2823 = vpop.f32.mrf.mxu0
        %v2824 = vpop.f32.mrf.mxu0
        %v2825 = vpop.f32.mrf.mxu0
        %2826 = vdwg.mxu0
        %v2831 = vunpack.c.l.b16 %v2163
        %v2832 = vunpack.c.l.b16 %v2164
        %v2833 = vunpack.c.l.b16 %v2165
        %v2834 = vunpack.c.l.b16 %v2166
        %v2835 = vpack.c.b16 %v2832, %v2831
        %v2836 = vpack.c.b16 %v2834, %v2833
        %2839 = vmatprep.subr.bf16.mxu0 0
        %2840 = vmatpush1.bf16.msra.mxu0 0
        %2841 = vmatprep.subr.bf16.mxu0 0
        %2842 = vmatpush1.bf16.msra.mxu0 0
        %2843 = vmatprep.subr.bf16.mxu0 0
        %2844 = vmatpush1.bf16.msra.mxu0 0
        %2845 = vmatprep.subr.bf16.mxu0 0
        %2846 = vmatpush1.bf16.msra.mxu0 0
        %2847 = vmatprep.subr.bf16.mxu0 0
        %2848 = vmatpush1.bf16.msra.mxu0 0
        %2849 = vmatprep.subr.bf16.mxu0 0
        %2850 = vmatpush1.bf16.msra.mxu0 0
        %2851 = vmatprep.subr.bf16.mxu0 0
        %2852 = vmatpush1.bf16.msra.mxu0 %v2836
        %2853 = vmatprep.subr.bf16.mxu0 0
        %2854 = vmatpush1.bf16.msra.mxu0 %v2835
        %2855 = vmatprep.subr.bf16.mxu0 0
        %2856 = vmatpush2.bf16.msra.mxu0 0
        %2857 = vmatprep.subr.bf16.mxu0 0
        %2858 = vmatpush2.bf16.msra.mxu0 0
        %2859 = vmatprep.subr.bf16.mxu0 0
        %2860 = vmatpush2.bf16.msra.mxu0 0
        %2861 = vmatprep.subr.bf16.mxu0 0
        %2862 = vmatpush2.bf16.msra.mxu0 0
        %2863 = vmatprep.subr.bf16.mxu0 0
        %2864 = vmatpush2.bf16.msra.mxu0 0
        %2865 = vmatprep.subr.bf16.mxu0 0
        %2866 = vmatpush2.bf16.msra.mxu0 0
        %2867 = vmatprep.subr.bf16.mxu0 0
        %2868 = vmatpush2.bf16.msra.mxu0 0
        %2869 = vmatprep.subr.bf16.mxu0 0
        %2870 = vmatpush2.bf16.msra.mxu0 0
        %2871 = vmatprep.mubr.bf16.mxu0 0
        %2872 = vmatmul.mubr.bf16.gmra.mxu0 %v2265
        %v2873 = vpop.f32.mrf.mxu0
        %v2874 = vadd.f32 %v2239, %v2873
        %v2875 = vpop.f32.mrf.mxu0
        %v2876 = vpop.f32.mrf.mxu0
        %v2877 = vpop.f32.mrf.mxu0
        %2878 = vdwg.mxu0
        %v2879 = vpack.c.bf16 %v2302, %v2302
        %v2880 = vpack.c.bf16 %v2354, %v2354
        %v2881 = vpack.c.bf16 %v2406, %v2406
        %v2882 = vpack.c.bf16 %v2458, %v2458
        %v2883 = vpack.c.bf16 %v2510, %v2510
        %v2884 = vpack.c.bf16 %v2562, %v2562
        %v2885 = vpack.c.bf16 %v2614, %v2614
        %v2886 = vpack.c.bf16 %v2666, %v2666
        %v2888 = vsel %vm1260, %v2879, 0
        %v2891 = vsel %vm1260, %v2883, 0
        %2893 = vmatprep.subr.bf16.mxu0 0
        %2894 = vmatpush1.bf16.xpose.msra.mxu0 0
        %2895 = vmatprep.subr.bf16.mxu0 0
        %2896 = vmatpush1.bf16.xpose.msra.mxu0 0
        %2897 = vmatprep.subr.bf16.mxu0 0
        %2898 = vmatpush1.bf16.xpose.msra.mxu0 0
        %2899 = vmatprep.subr.bf16.mxu0 0
        %2900 = vmatpush1.bf16.xpose.msra.mxu0 0
        %2901 = vmatprep.subr.bf16.mxu0 0
        %2902 = vmatpush1.bf16.xpose.msra.mxu0 0
        %2903 = vmatprep.subr.bf16.mxu0 0
        %2904 = vmatpush1.bf16.xpose.msra.mxu0 0
        %2905 = vmatprep.subr.bf16.mxu0 0
        %2906 = vmatpush1.bf16.xpose.msra.mxu0 0
        %2907 = vmatprep.subr.bf16.mxu0 0
        %2908 = vmatpush1.bf16.xpose.msra.mxu0 %v2891
        %2909 = vmatprep.subr.bf16.mxu0 0
        %2910 = vmatpush2.bf16.xpose.msra.mxu0 0
        %2911 = vmatprep.subr.bf16.mxu0 0
        %2912 = vmatpush2.bf16.xpose.msra.mxu0 0
        %2913 = vmatprep.subr.bf16.mxu0 0
        %2914 = vmatpush2.bf16.xpose.msra.mxu0 0
        %2915 = vmatprep.subr.bf16.mxu0 0
        %2916 = vmatpush2.bf16.xpose.msra.mxu0 0
        %2917 = vmatprep.subr.bf16.mxu0 0
        %2918 = vmatpush2.bf16.xpose.msra.mxu0 0
        %2919 = vmatprep.subr.bf16.mxu0 0
        %2920 = vmatpush2.bf16.xpose.msra.mxu0 0
        %2921 = vmatprep.subr.bf16.mxu0 0
        %2922 = vmatpush2.bf16.xpose.msra.mxu0 0
        %2923 = vmatprep.subr.bf16.mxu0 0
        %2924 = vmatpush2.bf16.xpose.msra.mxu0 0
        %2925 = vmatprep.mubr.bf16.mxu0 0
        %2926 = vmatmul.mubr.bf16.gmra.mxu0 %v2888
        %v2927 = vpop.f32.mrf.mxu0
        %v2928 = vadd.f32 0.0, %v2927
        %v2929 = vpop.f32.mrf.mxu0
        %v2930 = vpop.f32.mrf.mxu0
        %v2931 = vpop.f32.mrf.mxu0
        %2932 = vdwg.mxu0
        %v2934 = vsel %vm1260, %v2880, 0
        %v2937 = vsel %vm1260, %v2884, 0
        %2939 = vmatprep.subr.bf16.mxu0 0
        %2940 = vmatpush1.bf16.xpose.msra.mxu0 0
        %2941 = vmatprep.subr.bf16.mxu0 0
        %2942 = vmatpush1.bf16.xpose.msra.mxu0 0
        %2943 = vmatprep.subr.bf16.mxu0 0
        %2944 = vmatpush1.bf16.xpose.msra.mxu0 0
        %2945 = vmatprep.subr.bf16.mxu0 0
        %2946 = vmatpush1.bf16.xpose.msra.mxu0 0
        %2947 = vmatprep.subr.bf16.mxu0 0
        %2948 = vmatpush1.bf16.xpose.msra.mxu0 0
        %2949 = vmatprep.subr.bf16.mxu0 0
        %2950 = vmatpush1.bf16.xpose.msra.mxu0 0
        %2951 = vmatprep.subr.bf16.mxu0 0
        %2952 = vmatpush1.bf16.xpose.msra.mxu0 0
        %2953 = vmatprep.subr.bf16.mxu0 0
        %2954 = vmatpush1.bf16.xpose.msra.mxu0 %v2937
        %2955 = vmatprep.subr.bf16.mxu0 0
        %2956 = vmatpush2.bf16.xpose.msra.mxu0 0
        %2957 = vmatprep.subr.bf16.mxu0 0
        %2958 = vmatpush2.bf16.xpose.msra.mxu0 0
        %2959 = vmatprep.subr.bf16.mxu0 0
        %2960 = vmatpush2.bf16.xpose.msra.mxu0 0
        %2961 = vmatprep.subr.bf16.mxu0 0
        %2962 = vmatpush2.bf16.xpose.msra.mxu0 0
        %2963 = vmatprep.subr.bf16.mxu0 0
        %2964 = vmatpush2.bf16.xpose.msra.mxu0 0
        %2965 = vmatprep.subr.bf16.mxu0 0
        %2966 = vmatpush2.bf16.xpose.msra.mxu0 0
        %2967 = vmatprep.subr.bf16.mxu0 0
        %2968 = vmatpush2.bf16.xpose.msra.mxu0 0
        %2969 = vmatprep.subr.bf16.mxu0 0
        %2970 = vmatpush2.bf16.xpose.msra.mxu0 0
        %2971 = vmatprep.mubr.bf16.mxu0 0
        %2972 = vmatmul.mubr.bf16.gmra.mxu0 %v2934
        %v2973 = vpop.f32.mrf.mxu0
        %v2974 = vadd.f32 0.0, %v2973
        %v2975 = vpop.f32.mrf.mxu0
        %v2976 = vpop.f32.mrf.mxu0
        %v2977 = vpop.f32.mrf.mxu0
        %2978 = vdwg.mxu0
        %v2980 = vsel %vm1260, %v2881, 0
        %v2983 = vsel %vm1260, %v2885, 0
        %2985 = vmatprep.subr.bf16.mxu0 0
        %2986 = vmatpush1.bf16.xpose.msra.mxu0 0
        %2987 = vmatprep.subr.bf16.mxu0 0
        %2988 = vmatpush1.bf16.xpose.msra.mxu0 0
        %2989 = vmatprep.subr.bf16.mxu0 0
        %2990 = vmatpush1.bf16.xpose.msra.mxu0 0
        %2991 = vmatprep.subr.bf16.mxu0 0
        %2992 = vmatpush1.bf16.xpose.msra.mxu0 0
        %2993 = vmatprep.subr.bf16.mxu0 0
        %2994 = vmatpush1.bf16.xpose.msra.mxu0 0
        %2995 = vmatprep.subr.bf16.mxu0 0
        %2996 = vmatpush1.bf16.xpose.msra.mxu0 0
        %2997 = vmatprep.subr.bf16.mxu0 0
        %2998 = vmatpush1.bf16.xpose.msra.mxu0 0
        %2999 = vmatprep.subr.bf16.mxu0 0
        %3000 = vmatpush1.bf16.xpose.msra.mxu0 %v2983
        %3001 = vmatprep.subr.bf16.mxu0 0
        %3002 = vmatpush2.bf16.xpose.msra.mxu0 0
        %3003 = vmatprep.subr.bf16.mxu0 0
        %3004 = vmatpush2.bf16.xpose.msra.mxu0 0
        %3005 = vmatprep.subr.bf16.mxu0 0
        %3006 = vmatpush2.bf16.xpose.msra.mxu0 0
        %3007 = vmatprep.subr.bf16.mxu0 0
        %3008 = vmatpush2.bf16.xpose.msra.mxu0 0
        %3009 = vmatprep.subr.bf16.mxu0 0
        %3010 = vmatpush2.bf16.xpose.msra.mxu0 0
        %3011 = vmatprep.subr.bf16.mxu0 0
        %3012 = vmatpush2.bf16.xpose.msra.mxu0 0
        %3013 = vmatprep.subr.bf16.mxu0 0
        %3014 = vmatpush2.bf16.xpose.msra.mxu0 0
        %3015 = vmatprep.subr.bf16.mxu0 0
        %3016 = vmatpush2.bf16.xpose.msra.mxu0 0
        %3017 = vmatprep.mubr.bf16.mxu0 0
        %3018 = vmatmul.mubr.bf16.gmra.mxu0 %v2980
        %v3019 = vpop.f32.mrf.mxu0
        %v3020 = vadd.f32 0.0, %v3019
        %v3021 = vpop.f32.mrf.mxu0
        %v3022 = vpop.f32.mrf.mxu0
        %v3023 = vpop.f32.mrf.mxu0
        %3024 = vdwg.mxu0
        %v3026 = vsel %vm1260, %v2882, 0
        %v3029 = vsel %vm1260, %v2886, 0
        %3031 = vmatprep.subr.bf16.mxu0 0
        %3032 = vmatpush1.bf16.xpose.msra.mxu0 0
        %3033 = vmatprep.subr.bf16.mxu0 0
        %3034 = vmatpush1.bf16.xpose.msra.mxu0 0
        %3035 = vmatprep.subr.bf16.mxu0 0
        %3036 = vmatpush1.bf16.xpose.msra.mxu0 0
        %3037 = vmatprep.subr.bf16.mxu0 0
        %3038 = vmatpush1.bf16.xpose.msra.mxu0 0
        %3039 = vmatprep.subr.bf16.mxu0 0
        %3040 = vmatpush1.bf16.xpose.msra.mxu0 0
        %3041 = vmatprep.subr.bf16.mxu0 0
        %3042 = vmatpush1.bf16.xpose.msra.mxu0 0
        %3043 = vmatprep.subr.bf16.mxu0 0
        %3044 = vmatpush1.bf16.xpose.msra.mxu0 0
        %3045 = vmatprep.subr.bf16.mxu0 0
        %3046 = vmatpush1.bf16.xpose.msra.mxu0 %v3029
        %3047 = vmatprep.subr.bf16.mxu0 0
        %3048 = vmatpush2.bf16.xpose.msra.mxu0 0
        %3049 = vmatprep.subr.bf16.mxu0 0
        %3050 = vmatpush2.bf16.xpose.msra.mxu0 0
        %3051 = vmatprep.subr.bf16.mxu0 0
        %3052 = vmatpush2.bf16.xpose.msra.mxu0 0
        %3053 = vmatprep.subr.bf16.mxu0 0
        %3054 = vmatpush2.bf16.xpose.msra.mxu0 0
        %3055 = vmatprep.subr.bf16.mxu0 0
        %3056 = vmatpush2.bf16.xpose.msra.mxu0 0
        %3057 = vmatprep.subr.bf16.mxu0 0
        %3058 = vmatpush2.bf16.xpose.msra.mxu0 0
        %3059 = vmatprep.subr.bf16.mxu0 0
        %3060 = vmatpush2.bf16.xpose.msra.mxu0 0
        %3061 = vmatprep.subr.bf16.mxu0 0
        %3062 = vmatpush2.bf16.xpose.msra.mxu0 0
        %3063 = vmatprep.mubr.bf16.mxu0 0
        %3064 = vmatmul.mubr.bf16.gmra.mxu0 %v3026
        %v3065 = vpop.f32.mrf.mxu0
        %v3066 = vadd.f32 0.0, %v3065
        %v3067 = vpop.f32.mrf.mxu0
        %v3068 = vpop.f32.mrf.mxu0
        %v3069 = vpop.f32.mrf.mxu0
        %3070 = vdwg.mxu0
        %v3071 = vsel %vm1445, %v2928, -inf
        %3072 = vmax.xlane.f32.xlu0 %v3071
        %v3073 = vpop.xlane.xlu0 %3072
        %v3074 = vsel %vm1445, %v2974, -inf
        %3075 = vmax.xlane.f32.xlu0 %v3074
        %v3076 = vpop.xlane.xlu0 %3075
        %v3077 = vsel %vm1445, %v3020, -inf
        %3078 = vmax.xlane.f32.xlu0 %v3077
        %v3079 = vpop.xlane.xlu0 %3078
        %v3080 = vsel %vm1445, %v3066, -inf
        %3081 = vmax.xlane.f32.xlu0 %v3080
        %v3082 = vpop.xlane.xlu0 %3081
        %v3083 = vsub.f32 %v2928, %v3073
        %v3084 = vsub.f32 %v2974, %v3076
        %v3085 = vsub.f32 %v3020, %v3079
        %v3086 = vsub.f32 %v3066, %v3082
        %v3087 = vmul.f32 %v3083, 1.442695
        %v3088 = vpow.pop %v3087
        %v3089 = vmul.f32 %v3084, 1.442695
        %v3090 = vpow.pop %v3089
        %v3091 = vmul.f32 %v3085, 1.442695
        %v3092 = vpow.pop %v3091
        %v3093 = vmul.f32 %v3086, 1.442695
        %v3094 = vpow.pop %v3093
        %v3095 = vsel %vm1445, %v3088, 0.0
        %3096 = vadd.xlane.f32.xlu0 %v3095
        %v3097 = vpop.xlane.xlu0 %3096
        %v3098 = vsel %vm1445, %v3090, 0.0
        %3099 = vadd.xlane.f32.xlu0 %v3098
        %v3100 = vpop.xlane.xlu0 %3099
        %v3101 = vsel %vm1445, %v3092, 0.0
        %3102 = vadd.xlane.f32.xlu0 %v3101
        %v3103 = vpop.xlane.xlu0 %3102
        %v3104 = vsel %vm1445, %v3094, 0.0
        %3105 = vadd.xlane.f32.xlu0 %v3104
        %v3106 = vpop.xlane.xlu0 %3105
        %v3107 = vrcp.pop %v3097
        %v3108 = vrcp.pop %v3100
        %v3109 = vrcp.pop %v3103
        %v3110 = vrcp.pop %v3106
        %v3111 = vmul.f32 %v3088, %v3107
        %v3112 = vmul.f32 %v3090, %v3108
        %v3113 = vmul.f32 %v3092, %v3109
        %v3114 = vmul.f32 %v3094, %v3110
        %v3115 = vpack.c.bf16 %v3111, %v3111
        %v3116 = vpack.c.bf16 %v3112, %v3112
        %v3117 = vpack.c.bf16 %v3113, %v3113
        %v3118 = vpack.c.bf16 %v3114, %v3114
        %v3119 = vpack.c.bf16 %v2718, %v2718
        %v3120 = vpack.c.bf16 %v2770, %v2770
        %v3121 = vpack.c.bf16 %v2822, %v2822
        %v3122 = vpack.c.bf16 %v2874, %v2874
        %v3124 = vsel %vm1498, %v3115, 0
        %v3127 = vand.u32 %v3119, %v1505
        %3129 = vmatprep.subr.bf16.mxu0 0
        %3130 = vmatpush1.bf16.msra.mxu0 0
        %3131 = vmatprep.subr.bf16.mxu0 0
        %3132 = vmatpush1.bf16.msra.mxu0 0
        %3133 = vmatprep.subr.bf16.mxu0 0
        %3134 = vmatpush1.bf16.msra.mxu0 0
        %3135 = vmatprep.subr.bf16.mxu0 0
        %3136 = vmatpush1.bf16.msra.mxu0 0
        %3137 = vmatprep.subr.bf16.mxu0 0
        %3138 = vmatpush1.bf16.msra.mxu0 0
        %3139 = vmatprep.subr.bf16.mxu0 0
        %3140 = vmatpush1.bf16.msra.mxu0 0
        %3141 = vmatprep.subr.bf16.mxu0 0
        %3142 = vmatpush1.bf16.msra.mxu0 0
        %3143 = vmatprep.subr.bf16.mxu0 0
        %3144 = vmatpush1.bf16.msra.mxu0 %v3127
        %3145 = vmatprep.subr.bf16.mxu0 0
        %3146 = vmatpush2.bf16.msra.mxu0 0
        %3147 = vmatprep.subr.bf16.mxu0 0
        %3148 = vmatpush2.bf16.msra.mxu0 0
        %3149 = vmatprep.subr.bf16.mxu0 0
        %3150 = vmatpush2.bf16.msra.mxu0 0
        %3151 = vmatprep.subr.bf16.mxu0 0
        %3152 = vmatpush2.bf16.msra.mxu0 0
        %3153 = vmatprep.subr.bf16.mxu0 0
        %3154 = vmatpush2.bf16.msra.mxu0 0
        %3155 = vmatprep.subr.bf16.mxu0 0
        %3156 = vmatpush2.bf16.msra.mxu0 0
        %3157 = vmatprep.subr.bf16.mxu0 0
        %3158 = vmatpush2.bf16.msra.mxu0 0
        %3159 = vmatprep.subr.bf16.mxu0 0
        %3160 = vmatpush2.bf16.msra.mxu0 0
        %3161 = vmatprep.mubr.bf16.mxu0 0
        %3162 = vmatmul.mubr.bf16.gmra.mxu0 %v3124
        %v3163 = vpop.f32.mrf.mxu0
        %v3164 = vadd.f32 0.0, %v3163
        %v3165 = vpop.f32.mrf.mxu0
        %v3166 = vpop.f32.mrf.mxu0
        %v3167 = vpop.f32.mrf.mxu0
        %3168 = vdwg.mxu0
        %v3170 = vsel %vm1498, %v3116, 0
        %v3173 = vand.u32 %v3120, %v1505
        %3175 = vmatprep.subr.bf16.mxu0 0
        %3176 = vmatpush1.bf16.msra.mxu0 0
        %3177 = vmatprep.subr.bf16.mxu0 0
        %3178 = vmatpush1.bf16.msra.mxu0 0
        %3179 = vmatprep.subr.bf16.mxu0 0
        %3180 = vmatpush1.bf16.msra.mxu0 0
        %3181 = vmatprep.subr.bf16.mxu0 0
        %3182 = vmatpush1.bf16.msra.mxu0 0
        %3183 = vmatprep.subr.bf16.mxu0 0
        %3184 = vmatpush1.bf16.msra.mxu0 0
        %3185 = vmatprep.subr.bf16.mxu0 0
        %3186 = vmatpush1.bf16.msra.mxu0 0
        %3187 = vmatprep.subr.bf16.mxu0 0
        %3188 = vmatpush1.bf16.msra.mxu0 0
        %3189 = vmatprep.subr.bf16.mxu0 0
        %3190 = vmatpush1.bf16.msra.mxu0 %v3173
        %3191 = vmatprep.subr.bf16.mxu0 0
        %3192 = vmatpush2.bf16.msra.mxu0 0
        %3193 = vmatprep.subr.bf16.mxu0 0
        %3194 = vmatpush2.bf16.msra.mxu0 0
        %3195 = vmatprep.subr.bf16.mxu0 0
        %3196 = vmatpush2.bf16.msra.mxu0 0
        %3197 = vmatprep.subr.bf16.mxu0 0
        %3198 = vmatpush2.bf16.msra.mxu0 0
        %3199 = vmatprep.subr.bf16.mxu0 0
        %3200 = vmatpush2.bf16.msra.mxu0 0
        %3201 = vmatprep.subr.bf16.mxu0 0
        %3202 = vmatpush2.bf16.msra.mxu0 0
        %3203 = vmatprep.subr.bf16.mxu0 0
        %3204 = vmatpush2.bf16.msra.mxu0 0
        %3205 = vmatprep.subr.bf16.mxu0 0
        %3206 = vmatpush2.bf16.msra.mxu0 0
        %3207 = vmatprep.mubr.bf16.mxu0 0
        %3208 = vmatmul.mubr.bf16.gmra.mxu0 %v3170
        %v3209 = vpop.f32.mrf.mxu0
        %v3210 = vadd.f32 0.0, %v3209
        %v3211 = vpop.f32.mrf.mxu0
        %v3212 = vpop.f32.mrf.mxu0
        %v3213 = vpop.f32.mrf.mxu0
        %3214 = vdwg.mxu0
        %v3216 = vsel %vm1498, %v3117, 0
        %v3219 = vand.u32 %v3121, %v1505
        %3221 = vmatprep.subr.bf16.mxu0 0
        %3222 = vmatpush1.bf16.msra.mxu0 0
        %3223 = vmatprep.subr.bf16.mxu0 0
        %3224 = vmatpush1.bf16.msra.mxu0 0
        %3225 = vmatprep.subr.bf16.mxu0 0
        %3226 = vmatpush1.bf16.msra.mxu0 0
        %3227 = vmatprep.subr.bf16.mxu0 0
        %3228 = vmatpush1.bf16.msra.mxu0 0
        %3229 = vmatprep.subr.bf16.mxu0 0
        %3230 = vmatpush1.bf16.msra.mxu0 0
        %3231 = vmatprep.subr.bf16.mxu0 0
        %3232 = vmatpush1.bf16.msra.mxu0 0
        %3233 = vmatprep.subr.bf16.mxu0 0
        %3234 = vmatpush1.bf16.msra.mxu0 0
        %3235 = vmatprep.subr.bf16.mxu0 0
        %3236 = vmatpush1.bf16.msra.mxu0 %v3219
        %3237 = vmatprep.subr.bf16.mxu0 0
        %3238 = vmatpush2.bf16.msra.mxu0 0
        %3239 = vmatprep.subr.bf16.mxu0 0
        %3240 = vmatpush2.bf16.msra.mxu0 0
        %3241 = vmatprep.subr.bf16.mxu0 0
        %3242 = vmatpush2.bf16.msra.mxu0 0
        %3243 = vmatprep.subr.bf16.mxu0 0
        %3244 = vmatpush2.bf16.msra.mxu0 0
        %3245 = vmatprep.subr.bf16.mxu0 0
        %3246 = vmatpush2.bf16.msra.mxu0 0
        %3247 = vmatprep.subr.bf16.mxu0 0
        %3248 = vmatpush2.bf16.msra.mxu0 0
        %3249 = vmatprep.subr.bf16.mxu0 0
        %3250 = vmatpush2.bf16.msra.mxu0 0
        %3251 = vmatprep.subr.bf16.mxu0 0
        %3252 = vmatpush2.bf16.msra.mxu0 0
        %3253 = vmatprep.mubr.bf16.mxu0 0
        %3254 = vmatmul.mubr.bf16.gmra.mxu0 %v3216
        %v3255 = vpop.f32.mrf.mxu0
        %v3256 = vadd.f32 0.0, %v3255
        %v3257 = vpop.f32.mrf.mxu0
        %v3258 = vpop.f32.mrf.mxu0
        %v3259 = vpop.f32.mrf.mxu0
        %3260 = vdwg.mxu0
        %v3262 = vsel %vm1498, %v3118, 0
        %v3265 = vand.u32 %v3122, %v1505
        %3267 = vmatprep.subr.bf16.mxu0 0
        %3268 = vmatpush1.bf16.msra.mxu0 0
        %3269 = vmatprep.subr.bf16.mxu0 0
        %3270 = vmatpush1.bf16.msra.mxu0 0
        %3271 = vmatprep.subr.bf16.mxu0 0
        %3272 = vmatpush1.bf16.msra.mxu0 0
        %3273 = vmatprep.subr.bf16.mxu0 0
        %3274 = vmatpush1.bf16.msra.mxu0 0
        %3275 = vmatprep.subr.bf16.mxu0 0
        %3276 = vmatpush1.bf16.msra.mxu0 0
        %3277 = vmatprep.subr.bf16.mxu0 0
        %3278 = vmatpush1.bf16.msra.mxu0 0
        %3279 = vmatprep.subr.bf16.mxu0 0
        %3280 = vmatpush1.bf16.msra.mxu0 0
        %3281 = vmatprep.subr.bf16.mxu0 0
        %3282 = vmatpush1.bf16.msra.mxu0 %v3265
        %3283 = vmatprep.subr.bf16.mxu0 0
        %3284 = vmatpush2.bf16.msra.mxu0 0
        %3285 = vmatprep.subr.bf16.mxu0 0
        %3286 = vmatpush2.bf16.msra.mxu0 0
        %3287 = vmatprep.subr.bf16.mxu0 0
        %3288 = vmatpush2.bf16.msra.mxu0 0
        %3289 = vmatprep.subr.bf16.mxu0 0
        %3290 = vmatpush2.bf16.msra.mxu0 0
        %3291 = vmatprep.subr.bf16.mxu0 0
        %3292 = vmatpush2.bf16.msra.mxu0 0
        %3293 = vmatprep.subr.bf16.mxu0 0
        %3294 = vmatpush2.bf16.msra.mxu0 0
        %3295 = vmatprep.subr.bf16.mxu0 0
        %3296 = vmatpush2.bf16.msra.mxu0 0
        %3297 = vmatprep.subr.bf16.mxu0 0
        %3298 = vmatpush2.bf16.msra.mxu0 0
        %3299 = vmatprep.mubr.bf16.mxu0 0
        %3300 = vmatmul.mubr.bf16.gmra.mxu0 %v3262
        %v3301 = vpop.f32.mrf.mxu0
        %v3302 = vadd.f32 0.0, %v3301
        %v3303 = vpop.f32.mrf.mxu0
        %v3304 = vpop.f32.mrf.mxu0
        %v3305 = vpop.f32.mrf.mxu0
        %3306 = vdwg.mxu0
        %v3307 = vpack.c.bf16 %v3164, %v3164
        %v3308 = vpack.c.bf16 %v3210, %v3210
        %v3309 = vpack.c.bf16 %v3256, %v3256
        %v3310 = vpack.c.bf16 %v3302, %v3302
        %s3311 = scalar_lea.vmem %s5, 16
        %v3312 = vld [vmem:[%s3311] sm:$0xf]
        %v3313 = vld [vmem:[%s3311 + $0x4] sm:$0xf]
        %v3314 = vld [vmem:[%s3311 + $0x8] sm:$0xf]
        %v3315 = vld [vmem:[%s3311 + $0xc] sm:$0xf]
        %v3317 = vsel %vm1260, %v3307, 0
        %v3320 = vsel %vm1503, %v3312, 0
        %3322 = vmatprep.subr.bf16.mxu0 0
        %3323 = vmatpush1.bf16.msra.mxu0 0
        %3324 = vmatprep.subr.bf16.mxu0 0
        %3325 = vmatpush1.bf16.msra.mxu0 0
        %3326 = vmatprep.subr.bf16.mxu0 0
        %3327 = vmatpush1.bf16.msra.mxu0 0
        %3328 = vmatprep.subr.bf16.mxu0 0
        %3329 = vmatpush1.bf16.msra.mxu0 0
        %3330 = vmatprep.subr.bf16.mxu0 0
        %3331 = vmatpush1.bf16.msra.mxu0 0
        %3332 = vmatprep.subr.bf16.mxu0 0
        %3333 = vmatpush1.bf16.msra.mxu0 0
        %3334 = vmatprep.subr.bf16.mxu0 0
        %3335 = vmatpush1.bf16.msra.mxu0 0
        %3336 = vmatprep.subr.bf16.mxu0 0
        %3337 = vmatpush1.bf16.msra.mxu0 %v3320
        %3338 = vmatprep.subr.bf16.mxu0 0
        %3339 = vmatpush2.bf16.msra.mxu0 0
        %3340 = vmatprep.subr.bf16.mxu0 0
        %3341 = vmatpush2.bf16.msra.mxu0 0
        %3342 = vmatprep.subr.bf16.mxu0 0
        %3343 = vmatpush2.bf16.msra.mxu0 0
        %3344 = vmatprep.subr.bf16.mxu0 0
        %3345 = vmatpush2.bf16.msra.mxu0 0
        %3346 = vmatprep.subr.bf16.mxu0 0
        %3347 = vmatpush2.bf16.msra.mxu0 0
        %3348 = vmatprep.subr.bf16.mxu0 0
        %3349 = vmatpush2.bf16.msra.mxu0 0
        %3350 = vmatprep.subr.bf16.mxu0 0
        %3351 = vmatpush2.bf16.msra.mxu0 0
        %3352 = vmatprep.subr.bf16.mxu0 0
        %3353 = vmatpush2.bf16.msra.mxu0 0
        %3354 = vmatprep.mubr.bf16.mxu0 0
        %3355 = vmatmul.mubr.bf16.gmra.mxu0 %v3317
        %v3356 = vpop.f32.mrf.mxu0
        %v3357 = vadd.f32 0.0, %v3356
        %v3358 = vpop.f32.mrf.mxu0
        %v3359 = vpop.f32.mrf.mxu0
        %v3360 = vpop.f32.mrf.mxu0
        %3361 = vdwg.mxu0
        %v3363 = vsel %vm1260, %v3308, 0
        %v3366 = vsel %vm1503, %v3313, 0
        %3368 = vmatprep.subr.bf16.mxu0 0
        %3369 = vmatpush1.bf16.msra.mxu0 0
        %3370 = vmatprep.subr.bf16.mxu0 0
        %3371 = vmatpush1.bf16.msra.mxu0 0
        %3372 = vmatprep.subr.bf16.mxu0 0
        %3373 = vmatpush1.bf16.msra.mxu0 0
        %3374 = vmatprep.subr.bf16.mxu0 0
        %3375 = vmatpush1.bf16.msra.mxu0 0
        %3376 = vmatprep.subr.bf16.mxu0 0
        %3377 = vmatpush1.bf16.msra.mxu0 0
        %3378 = vmatprep.subr.bf16.mxu0 0
        %3379 = vmatpush1.bf16.msra.mxu0 0
        %3380 = vmatprep.subr.bf16.mxu0 0
        %3381 = vmatpush1.bf16.msra.mxu0 0
        %3382 = vmatprep.subr.bf16.mxu0 0
        %3383 = vmatpush1.bf16.msra.mxu0 %v3366
        %3384 = vmatprep.subr.bf16.mxu0 0
        %3385 = vmatpush2.bf16.msra.mxu0 0
        %3386 = vmatprep.subr.bf16.mxu0 0
        %3387 = vmatpush2.bf16.msra.mxu0 0
        %3388 = vmatprep.subr.bf16.mxu0 0
        %3389 = vmatpush2.bf16.msra.mxu0 0
        %3390 = vmatprep.subr.bf16.mxu0 0
        %3391 = vmatpush2.bf16.msra.mxu0 0
        %3392 = vmatprep.subr.bf16.mxu0 0
        %3393 = vmatpush2.bf16.msra.mxu0 0
        %3394 = vmatprep.subr.bf16.mxu0 0
        %3395 = vmatpush2.bf16.msra.mxu0 0
        %3396 = vmatprep.subr.bf16.mxu0 0
        %3397 = vmatpush2.bf16.msra.mxu0 0
        %3398 = vmatprep.subr.bf16.mxu0 0
        %3399 = vmatpush2.bf16.msra.mxu0 0
        %3400 = vmatprep.mubr.bf16.mxu0 0
        %3401 = vmatmul.mubr.bf16.gmra.mxu0 %v3363
        %v3402 = vpop.f32.mrf.mxu0
        %v3403 = vadd.f32 0.0, %v3402
        %v3404 = vpop.f32.mrf.mxu0
        %v3405 = vpop.f32.mrf.mxu0
        %v3406 = vpop.f32.mrf.mxu0
        %3407 = vdwg.mxu0
        %v3409 = vsel %vm1260, %v3309, 0
        %v3412 = vsel %vm1503, %v3314, 0
        %3414 = vmatprep.subr.bf16.mxu0 0
        %3415 = vmatpush1.bf16.msra.mxu0 0
        %3416 = vmatprep.subr.bf16.mxu0 0
        %3417 = vmatpush1.bf16.msra.mxu0 0
        %3418 = vmatprep.subr.bf16.mxu0 0
        %3419 = vmatpush1.bf16.msra.mxu0 0
        %3420 = vmatprep.subr.bf16.mxu0 0
        %3421 = vmatpush1.bf16.msra.mxu0 0
        %3422 = vmatprep.subr.bf16.mxu0 0
        %3423 = vmatpush1.bf16.msra.mxu0 0
        %3424 = vmatprep.subr.bf16.mxu0 0
        %3425 = vmatpush1.bf16.msra.mxu0 0
        %3426 = vmatprep.subr.bf16.mxu0 0
        %3427 = vmatpush1.bf16.msra.mxu0 0
        %3428 = vmatprep.subr.bf16.mxu0 0
        %3429 = vmatpush1.bf16.msra.mxu0 %v3412
        %3430 = vmatprep.subr.bf16.mxu0 0
        %3431 = vmatpush2.bf16.msra.mxu0 0
        %3432 = vmatprep.subr.bf16.mxu0 0
        %3433 = vmatpush2.bf16.msra.mxu0 0
        %3434 = vmatprep.subr.bf16.mxu0 0
        %3435 = vmatpush2.bf16.msra.mxu0 0
        %3436 = vmatprep.subr.bf16.mxu0 0
        %3437 = vmatpush2.bf16.msra.mxu0 0
        %3438 = vmatprep.subr.bf16.mxu0 0
        %3439 = vmatpush2.bf16.msra.mxu0 0
        %3440 = vmatprep.subr.bf16.mxu0 0
        %3441 = vmatpush2.bf16.msra.mxu0 0
        %3442 = vmatprep.subr.bf16.mxu0 0
        %3443 = vmatpush2.bf16.msra.mxu0 0
        %3444 = vmatprep.subr.bf16.mxu0 0
        %3445 = vmatpush2.bf16.msra.mxu0 0
        %3446 = vmatprep.mubr.bf16.mxu0 0
        %3447 = vmatmul.mubr.bf16.gmra.mxu0 %v3409
        %v3448 = vpop.f32.mrf.mxu0
        %v3449 = vadd.f32 0.0, %v3448
        %v3450 = vpop.f32.mrf.mxu0
        %v3451 = vpop.f32.mrf.mxu0
        %v3452 = vpop.f32.mrf.mxu0
        %3453 = vdwg.mxu0
        %v3455 = vsel %vm1260, %v3310, 0
        %v3458 = vsel %vm1503, %v3315, 0
        %3460 = vmatprep.subr.bf16.mxu0 0
        %3461 = vmatpush1.bf16.msra.mxu0 0
        %3462 = vmatprep.subr.bf16.mxu0 0
        %3463 = vmatpush1.bf16.msra.mxu0 0
        %3464 = vmatprep.subr.bf16.mxu0 0
        %3465 = vmatpush1.bf16.msra.mxu0 0
        %3466 = vmatprep.subr.bf16.mxu0 0
        %3467 = vmatpush1.bf16.msra.mxu0 0
        %3468 = vmatprep.subr.bf16.mxu0 0
        %3469 = vmatpush1.bf16.msra.mxu0 0
        %3470 = vmatprep.subr.bf16.mxu0 0
        %3471 = vmatpush1.bf16.msra.mxu0 0
        %3472 = vmatprep.subr.bf16.mxu0 0
        %3473 = vmatpush1.bf16.msra.mxu0 0
        %3474 = vmatprep.subr.bf16.mxu0 0
        %3475 = vmatpush1.bf16.msra.mxu0 %v3458
        %3476 = vmatprep.subr.bf16.mxu0 0
        %3477 = vmatpush2.bf16.msra.mxu0 0
        %3478 = vmatprep.subr.bf16.mxu0 0
        %3479 = vmatpush2.bf16.msra.mxu0 0
        %3480 = vmatprep.subr.bf16.mxu0 0
        %3481 = vmatpush2.bf16.msra.mxu0 0
        %3482 = vmatprep.subr.bf16.mxu0 0
        %3483 = vmatpush2.bf16.msra.mxu0 0
        %3484 = vmatprep.subr.bf16.mxu0 0
        %3485 = vmatpush2.bf16.msra.mxu0 0
        %3486 = vmatprep.subr.bf16.mxu0 0
        %3487 = vmatpush2.bf16.msra.mxu0 0
        %3488 = vmatprep.subr.bf16.mxu0 0
        %3489 = vmatpush2.bf16.msra.mxu0 0
        %3490 = vmatprep.subr.bf16.mxu0 0
        %3491 = vmatpush2.bf16.msra.mxu0 0
        %3492 = vmatprep.mubr.bf16.mxu0 0
        %3493 = vmatmul.mubr.bf16.gmra.mxu0 %v3455
        %v3494 = vpop.f32.mrf.mxu0
        %v3495 = vadd.f32 0.0, %v3494
        %v3496 = vpop.f32.mrf.mxu0
        %v3497 = vpop.f32.mrf.mxu0
        %v3498 = vpop.f32.mrf.mxu0
        %3499 = vdwg.mxu0
        %v3500 = vsel %vm1879, %v3357, 0.0
        %v3501 = vsel %vm1879, %v3403, 0.0
        %v3502 = vadd.f32 %v3500, %v3501
        %v3503 = vsel %vm1879, %v3449, 0.0
        %v3504 = vadd.f32 %v3502, %v3503
        %v3505 = vsel %vm1879, %v3495, 0.0
        %v3506 = vadd.f32 %v3504, %v3505
        %v3507 = vlaneseq
        %v3508 = vshrl.u32 %v3507, 7
        %v3509 = vsub.s32 0, %v3508
        %v3510 = vrot.slane %v2116, %v3509
        %v3511 = vadd.f32 %v3506, %v3510
        %v3512 = vadd.f32 %v2114, %v3511
        %v3513 = vsel %vm1879, %v3512, 0.0
        %3514 = vadd.xlane.f32.xlu0 %v3513
        %v3515 = vpop.xlane.xlu0 %3514
        %v3516 = vmul.f32 %v3515, %v1896
        %v3517 = vsub.f32 %v3512, %v3516
        %v3518 = vmul.f32 %v3517, %v3517
        %v3519 = vsel %vm1879, %v3518, 0.0
        %3520 = vadd.xlane.f32.xlu0 %v3519
        %v3521 = vpop.xlane.xlu0 %3520
        %v3522 = vmul.f32 %v3521, %v1896
        %v3523 = vadd.f32 %v3522, 1e-05
        %v3524 = vrsqrt.pop %v3523
        %v3525 = vmul.f32 %v3517, %v3524
        %v3526 = vlaneseq
        %v3527 = vshrl.u32 %v3526, 7
        %v3528 = vsub.s32 1, %v3527
        %v3529 = vrot.slane %v2116, %v3528
        %v3530 = vmul.f32 %v3525, %v3529
        %v3531 = vlaneseq
        %v3532 = vshrl.u32 %v3531, 7
        %v3533 = vsub.s32 2, %v3532
        %v3534 = vrot.slane %v2116, %v3533
        %v3535 = vadd.f32 %v3530, %v3534
        %v3536 = vpack.c.bf16 %v3535, %v3535
        %s3537 = scalar_lea.vmem %s6, 16
        %v3538 = vld [vmem:[%s3537] sm:$0xf]
        %v3539 = vld [vmem:[%s3537 + $0x4] sm:$0xf]
        %v3540 = vld [vmem:[%s3537 + $0x8] sm:$0xf]
        %v3541 = vld [vmem:[%s3537 + $0xc] sm:$0xf]
        %v3542 = vlaneseq
        %v3543 = vshrl.u32 %v3542, 7
        %v3544 = vsub.s32 3, %v3543
        %v3545 = vrot.slane %v2116, %v3544
        %v3550 = vunpack.c.l.b16 %v3538
        %v3551 = vunpack.c.l.b16 %v3539
        %v3552 = vunpack.c.l.b16 %v3540
        %v3553 = vunpack.c.l.b16 %v3541
        %v3554 = vpack.c.b16 %v3551, %v3550
        %v3555 = vpack.c.b16 %v3553, %v3552
        %v3559 = vsel %vm636, %v3536, 0
        %3561 = vmatprep.subr.bf16.mxu0 0
        %3562 = vmatpush1.bf16.msra.mxu0 0
        %3563 = vmatprep.subr.bf16.mxu0 0
        %3564 = vmatpush1.bf16.msra.mxu0 0
        %3565 = vmatprep.subr.bf16.mxu0 0
        %3566 = vmatpush1.bf16.msra.mxu0 0
        %3567 = vmatprep.subr.bf16.mxu0 0
        %3568 = vmatpush1.bf16.msra.mxu0 0
        %3569 = vmatprep.subr.bf16.mxu0 0
        %3570 = vmatpush1.bf16.msra.mxu0 0
        %3571 = vmatprep.subr.bf16.mxu0 0
        %3572 = vmatpush1.bf16.msra.mxu0 0
        %3573 = vmatprep.subr.bf16.mxu0 0
        %3574 = vmatpush1.bf16.msra.mxu0 %v3555
        %3575 = vmatprep.subr.bf16.mxu0 0
        %3576 = vmatpush1.bf16.msra.mxu0 %v3554
        %3577 = vmatprep.subr.bf16.mxu0 0
        %3578 = vmatpush2.bf16.msra.mxu0 0
        %3579 = vmatprep.subr.bf16.mxu0 0
        %3580 = vmatpush2.bf16.msra.mxu0 0
        %3581 = vmatprep.subr.bf16.mxu0 0
        %3582 = vmatpush2.bf16.msra.mxu0 0
        %3583 = vmatprep.subr.bf16.mxu0 0
        %3584 = vmatpush2.bf16.msra.mxu0 0
        %3585 = vmatprep.subr.bf16.mxu0 0
        %3586 = vmatpush2.bf16.msra.mxu0 0
        %3587 = vmatprep.subr.bf16.mxu0 0
        %3588 = vmatpush2.bf16.msra.mxu0 0
        %3589 = vmatprep.subr.bf16.mxu0 0
        %3590 = vmatpush2.bf16.msra.mxu0 0
        %3591 = vmatprep.subr.bf16.mxu0 0
        %3592 = vmatpush2.bf16.msra.mxu0 0
        %3593 = vmatprep.mubr.bf16.mxu0 0
        %3594 = vmatmul.mubr.bf16.gmra.mxu0 %v3559
        %v3595 = vpop.f32.mrf.mxu0
        %v3596 = vadd.f32 %v3545, %v3595
        %v3597 = vpop.f32.mrf.mxu0
        %v3598 = vpop.f32.mrf.mxu0
        %v3599 = vpop.f32.mrf.mxu0
        %3600 = vdwg.mxu0
        %v3601 = vmax.f32 %v3596, 0.0
        %v3602 = vpack.c.bf16 %v3601, %v3601
        %s3603 = scalar_lea.vmem %s7, 64
        %v3604 = vld [vmem:[%s3603] sm:$0xf]
        %v3605 = vld [vmem:[%s3603 + $0x4] sm:$0xf]
        %v3606 = vld [vmem:[%s3603 + $0x8] sm:$0xf]
        %v3607 = vld [vmem:[%s3603 + $0xc] sm:$0xf]
        %v3608 = vld [vmem:[%s3603 + $0x10] sm:$0xf]
        %v3609 = vld [vmem:[%s3603 + $0x14] sm:$0xf]
        %v3610 = vld [vmem:[%s3603 + $0x18] sm:$0xf]
        %v3611 = vld [vmem:[%s3603 + $0x1c] sm:$0xf]
        %v3612 = vld [vmem:[%s3603 + $0x20] sm:$0xf]
        %v3613 = vld [vmem:[%s3603 + $0x24] sm:$0xf]
        %v3614 = vld [vmem:[%s3603 + $0x28] sm:$0xf]
        %v3615 = vld [vmem:[%s3603 + $0x2c] sm:$0xf]
        %v3616 = vld [vmem:[%s3603 + $0x30] sm:$0xf]
        %v3617 = vld [vmem:[%s3603 + $0x34] sm:$0xf]
        %v3618 = vld [vmem:[%s3603 + $0x38] sm:$0xf]
        %v3619 = vld [vmem:[%s3603 + $0x3c] sm:$0xf]
        %v3620 = vlaneseq
        %v3621 = vshrl.u32 %v3620, 7
        %v3622 = vsub.s32 4, %v3621
        %v3623 = vrot.slane %v2116, %v3622
        %v3640 = vunpack.c.l.b16 %v3604
        %v3641 = vunpack.c.l.b16 %v3605
        %v3642 = vunpack.c.l.b16 %v3606
        %v3643 = vunpack.c.l.b16 %v3607
        %v3644 = vunpack.c.l.b16 %v3608
        %v3645 = vunpack.c.l.b16 %v3609
        %v3646 = vunpack.c.l.b16 %v3610
        %v3647 = vunpack.c.l.b16 %v3611
        %v3648 = vunpack.c.l.b16 %v3612
        %v3649 = vunpack.c.l.b16 %v3613
        %v3650 = vunpack.c.l.b16 %v3614
        %v3651 = vunpack.c.l.b16 %v3615
        %v3652 = vunpack.c.l.b16 %v3616
        %v3653 = vunpack.c.l.b16 %v3617
        %v3654 = vunpack.c.l.b16 %v3618
        %v3655 = vunpack.c.l.b16 %v3619
        %v3656 = vpack.c.b16 %v3641, %v3640
        %v3657 = vpack.c.b16 %v3643, %v3642
        %v3658 = vpack.c.b16 %v3645, %v3644
        %v3659 = vpack.c.b16 %v3647, %v3646
        %v3660 = vpack.c.b16 %v3649, %v3648
        %v3661 = vpack.c.b16 %v3651, %v3650
        %v3662 = vpack.c.b16 %v3653, %v3652
        %v3663 = vpack.c.b16 %v3655, %v3654
        %3672 = vmatprep.subr.bf16.mxu0 0
        %3673 = vmatpush1.bf16.msra.mxu0 %v3663
        %3674 = vmatprep.subr.bf16.mxu0 0
        %3675 = vmatpush1.bf16.msra.mxu0 %v3662
        %3676 = vmatprep.subr.bf16.mxu0 0
        %3677 = vmatpush1.bf16.msra.mxu0 %v3661
        %3678 = vmatprep.subr.bf16.mxu0 0
        %3679 = vmatpush1.bf16.msra.mxu0 %v3660
        %3680 = vmatprep.subr.bf16.mxu0 0
        %3681 = vmatpush1.bf16.msra.mxu0 %v3659
        %3682 = vmatprep.subr.bf16.mxu0 0
        %3683 = vmatpush1.bf16.msra.mxu0 %v3658
        %3684 = vmatprep.subr.bf16.mxu0 0
        %3685 = vmatpush1.bf16.msra.mxu0 %v3657
        %3686 = vmatprep.subr.bf16.mxu0 0
        %3687 = vmatpush1.bf16.msra.mxu0 %v3656
        %3688 = vmatprep.subr.bf16.mxu0 0
        %3689 = vmatpush2.bf16.msra.mxu0 0
        %3690 = vmatprep.subr.bf16.mxu0 0
        %3691 = vmatpush2.bf16.msra.mxu0 0
        %3692 = vmatprep.subr.bf16.mxu0 0
        %3693 = vmatpush2.bf16.msra.mxu0 0
        %3694 = vmatprep.subr.bf16.mxu0 0
        %3695 = vmatpush2.bf16.msra.mxu0 0
        %3696 = vmatprep.subr.bf16.mxu0 0
        %3697 = vmatpush2.bf16.msra.mxu0 0
        %3698 = vmatprep.subr.bf16.mxu0 0
        %3699 = vmatpush2.bf16.msra.mxu0 0
        %3700 = vmatprep.subr.bf16.mxu0 0
        %3701 = vmatpush2.bf16.msra.mxu0 0
        %3702 = vmatprep.subr.bf16.mxu0 0
        %3703 = vmatpush2.bf16.msra.mxu0 0
        %3704 = vmatprep.mubr.bf16.mxu0 0
        %3705 = vmatmul.mubr.bf16.gmra.mxu0 %v3602
        %v3706 = vpop.f32.mrf.mxu0
        %v3707 = vadd.f32 %v3623, %v3706
        %v3708 = vpop.f32.mrf.mxu0
        %v3709 = vpop.f32.mrf.mxu0
        %v3710 = vpop.f32.mrf.mxu0
        %3711 = vdwg.mxu0
        %v3712 = vadd.f32 %v3535, %v3707
        %v3713 = vsel %vm1879, %v3712, 0.0
        %3714 = vadd.xlane.f32.xlu0 %v3713
        %v3715 = vpop.xlane.xlu0 %3714
        %v3716 = vmul.f32 %v3715, %v1896
        %v3717 = vsub.f32 %v3712, %v3716
        %v3718 = vmul.f32 %v3717, %v3717
        %v3719 = vsel %vm1879, %v3718, 0.0
        %3720 = vadd.xlane.f32.xlu0 %v3719
        %v3721 = vpop.xlane.xlu0 %3720
        %v3722 = vmul.f32 %v3721, %v1896
        %v3723 = vadd.f32 %v3722, 1e-05
        %v3724 = vrsqrt.pop %v3723
        %v3725 = vmul.f32 %v3717, %v3724
        %v3726 = vlaneseq
        %v3727 = vshrl.u32 %v3726, 7
        %v3728 = vsub.s32 5, %v3727
        %v3729 = vrot.slane %v2116, %v3728
        %v3730 = vmul.f32 %v3725, %v3729
        %v3731 = vlaneseq
        %v3732 = vshrl.u32 %v3731, 7
        %v3733 = vsub.s32 6, %v3732
        %v3734 = vrot.slane %v2116, %v3733
        %v3735 = vadd.f32 %v3730, %v3734
        %v3736 = vld [vmem:[%s10] sm:$0x1]
        %v3737 = vpack.c.bf16 %v3735, %v3735
        %v3739 = vsel %vm1498, %v3736, 0
        %v3742 = vand.u32 %v3737, %v1505
        %3744 = vmatprep.subr.bf16.mxu0 0
        %3745 = vmatpush1.bf16.msra.mxu0 0
        %3746 = vmatprep.subr.bf16.mxu0 0
        %3747 = vmatpush1.bf16.msra.mxu0 0
        %3748 = vmatprep.subr.bf16.mxu0 0
        %3749 = vmatpush1.bf16.msra.mxu0 0
        %3750 = vmatprep.subr.bf16.mxu0 0
        %3751 = vmatpush1.bf16.msra.mxu0 0
        %3752 = vmatprep.subr.bf16.mxu0 0
        %3753 = vmatpush1.bf16.msra.mxu0 0
        %3754 = vmatprep.subr.bf16.mxu0 0
        %3755 = vmatpush1.bf16.msra.mxu0 0
        %3756 = vmatprep.subr.bf16.mxu0 0
        %3757 = vmatpush1.bf16.msra.mxu0 0
        %3758 = vmatprep.subr.bf16.mxu0 0
        %3759 = vmatpush1.bf16.msra.mxu0 %v3742
        %3760 = vmatprep.subr.bf16.mxu0 0
        %3761 = vmatpush2.bf16.msra.mxu0 0
        %3762 = vmatprep.subr.bf16.mxu0 0
        %3763 = vmatpush2.bf16.msra.mxu0 0
        %3764 = vmatprep.subr.bf16.mxu0 0
        %3765 = vmatpush2.bf16.msra.mxu0 0
        %3766 = vmatprep.subr.bf16.mxu0 0
        %3767 = vmatpush2.bf16.msra.mxu0 0
        %3768 = vmatprep.subr.bf16.mxu0 0
        %3769 = vmatpush2.bf16.msra.mxu0 0
        %3770 = vmatprep.subr.bf16.mxu0 0
        %3771 = vmatpush2.bf16.msra.mxu0 0
        %3772 = vmatprep.subr.bf16.mxu0 0
        %3773 = vmatpush2.bf16.msra.mxu0 0
        %3774 = vmatprep.subr.bf16.mxu0 0
        %3775 = vmatpush2.bf16.msra.mxu0 0
        %3776 = vmatprep.mubr.bf16.mxu0 0
        %3777 = vmatmul.mubr.bf16.gmra.mxu0 %v3739
        %v3778 = vpop.f32.mrf.mxu0
        %v3779 = vadd.f32 0.0, %v3778
        %v3780 = vpop.f32.mrf.mxu0
        %v3781 = vpop.f32.mrf.mxu0
        %v3782 = vpop.f32.mrf.mxu0
        %3783 = vdwg.mxu0
        %v3784 = vmul.f32 %v3779, 0.14285715
        %v3785 = vpack.c.bf16 %v3784, %v3784
        %v3786 = vld [vmem:[%s11] sm:$0xf]
        %v3787 = vld [vmem:[%s11 + $0x4] sm:$0xf]
        %v3788 = vld [vmem:[%s11 + $0x8] sm:$0xf]
        %v3789 = vld [vmem:[%s11 + $0xc] sm:$0xf]
        %v3790 = vld [vmem:[%s12] sm:$0x1]
        %v3795 = vunpack.c.l.b16 %v3786
        %v3796 = vunpack.c.l.b16 %v3787
        %v3797 = vunpack.c.l.b16 %v3788
        %v3798 = vunpack.c.l.b16 %v3789
        %v3799 = vpack.c.b16 %v3796, %v3795
        %v3800 = vpack.c.b16 %v3798, %v3797
        %v3804 = vsel %vm636, %v3785, 0
        %3806 = vmatprep.subr.bf16.mxu0 0
        %3807 = vmatpush1.bf16.msra.mxu0 0
        %3808 = vmatprep.subr.bf16.mxu0 0
        %3809 = vmatpush1.bf16.msra.mxu0 0
        %3810 = vmatprep.subr.bf16.mxu0 0
        %3811 = vmatpush1.bf16.msra.mxu0 0
        %3812 = vmatprep.subr.bf16.mxu0 0
        %3813 = vmatpush1.bf16.msra.mxu0 0
        %3814 = vmatprep.subr.bf16.mxu0 0
        %3815 = vmatpush1.bf16.msra.mxu0 0
        %3816 = vmatprep.subr.bf16.mxu0 0
        %3817 = vmatpush1.bf16.msra.mxu0 0
        %3818 = vmatprep.subr.bf16.mxu0 0
        %3819 = vmatpush1.bf16.msra.mxu0 %v3800
        %3820 = vmatprep.subr.bf16.mxu0 0
        %3821 = vmatpush1.bf16.msra.mxu0 %v3799
        %3822 = vmatprep.subr.bf16.mxu0 0
        %3823 = vmatpush2.bf16.msra.mxu0 0
        %3824 = vmatprep.subr.bf16.mxu0 0
        %3825 = vmatpush2.bf16.msra.mxu0 0
        %3826 = vmatprep.subr.bf16.mxu0 0
        %3827 = vmatpush2.bf16.msra.mxu0 0
        %3828 = vmatprep.subr.bf16.mxu0 0
        %3829 = vmatpush2.bf16.msra.mxu0 0
        %3830 = vmatprep.subr.bf16.mxu0 0
        %3831 = vmatpush2.bf16.msra.mxu0 0
        %3832 = vmatprep.subr.bf16.mxu0 0
        %3833 = vmatpush2.bf16.msra.mxu0 0
        %3834 = vmatprep.subr.bf16.mxu0 0
        %3835 = vmatpush2.bf16.msra.mxu0 0
        %3836 = vmatprep.subr.bf16.mxu0 0
        %3837 = vmatpush2.bf16.msra.mxu0 0
        %3838 = vmatprep.mubr.bf16.mxu0 0
        %3839 = vmatmul.mubr.bf16.gmra.mxu0 %v3804
        %v3840 = vpop.f32.mrf.mxu0
        %v3841 = vadd.f32 %v3790, %v3840
        %v3842 = vpop.f32.mrf.mxu0
        %v3843 = vpop.f32.mrf.mxu0
        %v3844 = vpop.f32.mrf.mxu0
        %3845 = vdwg.mxu0
        %3846 = vst [vmem:[%s430] sm:$0x1] %v3841
        %s3847 = sand.u32 %s313, 1
        %s3848 = scalar_lea.sflag [#allocation3], %s3847
        %s3849 = sand.u32 %s313, 1
        %s3850 = scalar_lea.vmem [#allocation2], %s3849
        // Predicated region
        $region73: #{tpu_custom_call.1} parent=71 // pred_check
          %p3851 = pneg %p323
        $region74: #{tpu_custom_call.1} parent=71 // pred_check_branch
          %3853 = sbr.rel (%p3851) target = $region76
        $region75: #{tpu_custom_call.1} parent=71 // pred_region
          %s3855 = ssub.s32 16, 16
          %3856 = vsyncadd %s3848, %s3855
          %s3857 = smul.addr %s27, 16
          %s3858 = scalar_lea.hbm %s13, %s3857
          %s3860 = sshll.u32 %s3850, 4
          %s3861 = int_to_ptr.vmem [resolvable:$true] %s3860
          %3863 = dma.vmem_to_hbm [thread:$0]  %s3861, 16, %s3858, %s3848
        $region76: #{tpu_custom_call.1} parent=71 // pred_fallthru
          _
      $region72: #{tpu_custom_call.1} parent=5 // pred_fallthru
        _
      %p3864 = scmp.le.s32.totalorder 2, %s22
      // Predicated region
      $region77: #{tpu_custom_call.1} parent=5 // pred_check
        %p3865 = pneg %p3864
      $region78: #{tpu_custom_call.1} parent=5 // pred_check_branch
        %3867 = sbr.rel (%p3865) target = $region80
      $region79: #{tpu_custom_call.1} parent=5 // pred_region
        %s3868 = ssub.s32 %s22, 2
        // Predicated region
        $region81: #{tpu_custom_call.1} parent=79 // pred_check
          %p3869 = pneg %p329
        $region82: #{tpu_custom_call.1} parent=79 // pred_check_branch
          %3871 = sbr.rel (%p3869) target = $region84
        $region83: #{tpu_custom_call.1} parent=79 // pred_region
          %s3872 = sand.u32 %s314, 1
          %s3873 = scalar_lea.sflag [#allocation3], %s3872
          %s3874 = sand.u32 %s314, 1
          %s3875 = scalar_lea.vmem [#allocation2], %s3874
          %3876 = dma.done %s3873, 16
        $region84: #{tpu_custom_call.1} parent=79 // pred_fallthru
          _
      $region80: #{tpu_custom_call.1} parent=5 // pred_fallthru
        _
    $region6: #{tpu_custom_call.1} parent=1 // loop_footer
      %s26 = sadd.s32 1, %s22
    $region7: #{tpu_custom_call.1} parent=1 // loop_footer_branch
      %21 = sbr.rel target = $region3
    $region8: #{tpu_custom_call.1} parent=1 // loop_exit
      _
    %3877 = vsyncpa [#allocation3], 1
    %s3878 = scalar_lea.sflag [#allocation3], 1
    %3879 = vsyncpa %s3878, 1

</llo_original>
